<compile_context>
chip_gen: v5e
topology: v5e:2x2
jax: 0.10.0
libtpu: 0.0.40
codegen_flags: <defaults>
</compile_context>

<pallas_src>
import functools

import jax
import jax.numpy as jnp
import numpy as np
from jax import lax
from jax.experimental import pallas as pl
from jax.experimental.pallas import tpu as pltpu


# ---------------------------------------------------------------------------
# Fused kernel: 1x1 conv + split vector quantization + per-tile stats
# ---------------------------------------------------------------------------
def _fused_kernel(x_ref, wct_ref, b_ref, wbdt_ref, wsq_ref, wbd_ref,
                  quant_ref, idx_ref, cnt_ref, sq_ref,
                  enc_ref,
                  *, n_embed, split):
    K = n_embed
    f32 = jnp.float32
    t_tile = x_ref.shape[-1]

    # --- 1x1 conv in NCL orientation: z[e, t] = sum_c W[e, c] * x[c, t] + b[e]
    x_ct = x_ref[0].astype(f32)                                        # [Cin, t]
    z_t = jnp.dot(wct_ref[...], x_ct, preferred_element_type=f32)      # [E, t]
    z_t = z_t + b_ref[...]                                             # bias [E,1]

    # --- distances to all split*K codes at once (block-diagonal codebook)
    #     dist[g*K+k, t] = ||w_k||^2 - 2 <z_g(t), w_k>
    #     (||z_g||^2 dropped: constant per column -> argmin-preserving)
    dots = jnp.dot(wbdt_ref[...], z_t, preferred_element_type=f32)     # [GK, t]
    dist = wsq_ref[...] - 2.0 * dots                                   # [GK, t]

    row_kf = lax.broadcasted_iota(jnp.int32, (K, t_tile), 0).astype(f32)
    grow = lax.broadcasted_iota(jnp.int32, (split, t_tile), 0)
    idx = jnp.zeros((split, t_tile), jnp.int32)

    # Static unroll over the (small) number of split groups; each group works
    # on a [K, t_tile] static slice -- no full-height masking passes.
    for g in range(split):
        dg = dist[g * K:(g + 1) * K, :]                                # [K, t]
        mg = jnp.min(dg, axis=0, keepdims=True)                        # [1, t]
        # tie-break: smallest code index (torch.argmin first occurrence)
        cand = jnp.where(dg == mg, row_kf, float(K))
        win = jnp.min(cand, axis=0, keepdims=True)                     # [1, t]
        onehot = (row_kf == win).astype(f32)                           # [K, t]
        enc_ref[g * K:(g + 1) * K, :] = onehot
        cnt_ref[0, 0, g * K:(g + 1) * K, :] = jnp.sum(
            onehot, axis=1, keepdims=True)                             # [K, 1]
        idx = jnp.where(grow == g, win.astype(jnp.int32), idx)

    # --- quantized vectors, already in NCL orientation
    q_t = jnp.dot(wbd_ref[...], enc_ref[...], preferred_element_type=f32)  # [E, t]

    quant_ref[0] = q_t.astype(quant_ref.dtype)                         # [1, E, t]
    idx_ref[0] = idx                                                   # [1, split, t]
    diff = q_t - z_t
    sq_ref[0, 0] = jnp.sum(diff * diff, axis=1, keepdims=True)         # [E, 1]


# ---------------------------------------------------------------------------
# Tiling helper: t_tile always divides T (or equals it) -> no ragged tiles
# ---------------------------------------------------------------------------
def _pick_t_tile(T, B):
    for cand in (512, 256, 128):
        if T % cand == 0:
            # v7x has 2 TensorCores: with a single batch row keep >= 2 time
            # tiles so both cores get grid steps (no effect on v5e/v6e).
            if B == 1 and T == cand and cand >= 256:
                return cand // 2
            return cand
    return T  # small / odd T: one full-width tile (block == full array dim)


# ---------------------------------------------------------------------------
# split_quant forward (all heavy lifting inside the single fused kernel)
# ---------------------------------------------------------------------------
@functools.partial(jax.jit, static_argnums=(4,))
def split_quant_forward(enc3, conv_w, conv_b, embed_w, split, e_loss_weight=0.25):
    f32 = jnp.float32
    B, Cin, T = enc3.shape
    E = conv_w.shape[0]                     # embed_dim
    K, part = embed_w.shape                 # n_embed, embed_dim // split
    assert E == split * part, "embed_dim must equal split * part"
    GK = split * K

    # ---- per-call invariants, hoisted out of the kernel ----
    w_ct = conv_w[:, :, 0].astype(f32)                                # [E, Cin]
    b_col = conv_b.reshape(E, 1).astype(f32)                          # [E, 1]
    emb = embed_w.astype(f32)                                         # [K, part]
    eye = jnp.eye(split, dtype=f32)
    # block-diag codebook: w_bd[g*part + d, g*K + k] = emb[k, d]
    w_bd = (eye[:, None, :, None] * emb.T[None, :, None, :]).reshape(E, GK)
    w_bd_t = w_bd.T                                                   # [GK, E]
    wsq_col = jnp.tile(jnp.sum(emb * emb, axis=1), split).reshape(GK, 1)

    # ---- tiling over time (lane) axis ----
    t_tile = _pick_t_tile(T, B)
    num_t = pl.cdiv(T, t_tile)
    assert num_t * t_tile == T  # by construction: no ragged tiles

    kernel = functools.partial(_fused_kernel, n_embed=K, split=split)

    quant, idx_bst, counts, sqerr = pl.pallas_call(
        kernel,
        grid=(B, num_t),
        in_specs=[
            pl.BlockSpec((1, Cin, t_tile), lambda b, t: (b, 0, t)),   # enc3 tile
            pl.BlockSpec((E, Cin), lambda b, t: (0, 0)),              # conv weight
            pl.BlockSpec((E, 1), lambda b, t: (0, 0)),                # conv bias
            pl.BlockSpec((GK, E), lambda b, t: (0, 0)),               # block-diag cb^T
            pl.BlockSpec((GK, 1), lambda b, t: (0, 0)),               # ||codes||^2
            pl.BlockSpec((E, GK), lambda b, t: (0, 0)),               # block-diag cb
        ],
        out_specs=(
            pl.BlockSpec((1, E, t_tile), lambda b, t: (b, 0, t)),     # quant (NCL)
            pl.BlockSpec((1, split, t_tile), lambda b, t: (b, 0, t)), # indices
            pl.BlockSpec((1, 1, GK, 1), lambda b, t: (b, t, 0, 0)),   # per-tile counts
            pl.BlockSpec((1, 1, E, 1), lambda b, t: (b, t, 0, 0)),    # per-tile sq err
        ),
        out_shape=(
            jax.ShapeDtypeStruct((B, E, T), enc3.dtype),
            jax.ShapeDtypeStruct((B, split, T), jnp.int32),
            jax.ShapeDtypeStruct((B, num_t, GK, 1), f32),
            jax.ShapeDtypeStruct((B, num_t, E, 1), f32),
        ),
        scratch_shapes=[pltpu.VMEM((GK, t_tile), f32)],               # one-hot enc
        compiler_params=pltpu.CompilerParams(
            dimension_semantics=("parallel", "parallel"),
            vmem_limit_bytes=32 * 1024 * 1024,
        ),
    )(enc3, w_ct, b_col, w_bd_t, wsq_col, w_bd)

    # ---- tiny scalar epilogue ----
    N = B * T * split
    counts_per_code = counts.reshape(-1, split, K).sum(axis=(0, 1))   # [K]
    avg_probs = counts_per_code / N
    perplexity = jnp.exp(-jnp.sum(avg_probs * jnp.log(avg_probs + 1e-10)))
    loss = e_loss_weight * jnp.sum(sqerr) / (N * part)                # weighted MSE
    index = jnp.transpose(idx_bst, (0, 2, 1))                         # [B, T, split]
    # straight-through forward value == quantized value; quant is already [B, E, T]
    return quant, loss, index, perplexity


# ---------------------------------------------------------------------------
# Pure-JAX reference (for a sanity check)
# ---------------------------------------------------------------------------
def ref_forward(enc3, conv_w, conv_b, embed_w, split, e_loss_weight=0.25):
    B, Cin, T = enc3.shape
    E = conv_w.shape[0]
    part = E // split
    hi = jax.lax.Precision.HIGHEST
    x = jnp.transpose(enc3, (0, 2, 1)).reshape(B * T, Cin)
    z_e = jnp.dot(x, conv_w[:, :, 0].T, precision=hi) + conv_b[None, :]
    z = z_e.reshape(-1, part)
    d = (jnp.sum(z ** 2, 1, keepdims=True) + jnp.sum(embed_w ** 2, 1)
         - 2.0 * jnp.dot(z, embed_w.T, precision=hi))
    idx = jnp.argmin(d, axis=1)
    q = embed_w[idx]
    loss = e_loss_weight * jnp.mean((q - z) ** 2)
    enc = jax.nn.one_hot(idx, embed_w.shape[0], dtype=jnp.float32)
    avg = jnp.mean(enc, axis=0)
    perp = jnp.exp(-jnp.sum(avg * jnp.log(avg + 1e-10)))
    quant = q.reshape(B, T, E).transpose(0, 2, 1)
    return quant, loss, idx.reshape(B, T, split).astype(jnp.int32), perp


if __name__ == "__main__":
    # Small shapes consistent with the module: enc_channel=32, embed_dim=32,
    # n_embed=32, split=4 -> part=8, split*K=128 (full lane width); enc3 is NCL.
    B, Cin, T = 2, 32, 1024
    embed_dim, split, n_embed = 32, 4, 32
    part = embed_dim // split

    key = jax.random.PRNGKey(0)
    k1, k2, k3, k4 = jax.random.split(key, 4)
    enc3 = jax.random.normal(k1, (B, Cin, T), dtype=jnp.float32)
    conv_w = jax.random.normal(k2, (embed_dim, Cin, 1), dtype=jnp.float32) * 0.1
    conv_b = jax.random.normal(k3, (embed_dim,), dtype=jnp.float32) * 0.1
    embed_w = jax.random.normal(k4, (n_embed, part), dtype=jnp.float32)  # codebook

    quant, loss, index, perp = jax.block_until_ready(
        split_quant_forward(enc3, conv_w, conv_b, embed_w, split)
    )

    # sanity check against pure-JAX reference
    rq, rl, ri, rp = ref_forward(enc3, conv_w, conv_b, embed_w, split)
    assert quant.shape == (B, embed_dim, T)
    assert index.shape == (B, T, split)

    idx_np, ref_idx = np.asarray(index), np.asarray(ri)
    mism = idx_np != ref_idx
    # near-tie argmin flips from f32 re-association are legitimate; require
    # (essentially) exact parity but tolerate a vanishing fraction of ties.
    assert mism.mean() < 1e-3, f"index mismatch fraction {mism.mean()}"
    ok_cols = ~mism.any(axis=-1)                           # [B, T] full-agreement cols
    qk = np.asarray(quant).transpose(0, 2, 1)[ok_cols]
    qr = np.asarray(rq).transpose(0, 2, 1)[ok_cols]
    assert np.allclose(qk, qr, rtol=1e-3, atol=1e-3)
    assert np.allclose(float(loss), float(rl), rtol=1e-3, atol=1e-4)
    assert np.allclose(float(perp), float(rp), rtol=5e-3, atol=1e-3)

    print("KERNEL_OK")
</pallas_src>

<mosaic_0001>
module attributes {stable_mosaic.version = 11 : i64} {
  func.func @_fused_kernel(%arg0: i32, %arg1: i32, %arg2: memref<1x32x512xf32, #tpu.memory_space<vmem>>, %arg3: memref<32x32xf32, #tpu.memory_space<vmem>>, %arg4: memref<32x1xf32, #tpu.memory_space<vmem>>, %arg5: memref<128x32xf32, #tpu.memory_space<vmem>>, %arg6: memref<128x1xf32, #tpu.memory_space<vmem>>, %arg7: memref<32x128xf32, #tpu.memory_space<vmem>>, %arg8: memref<1x32x512xf32, #tpu.memory_space<vmem>>, %arg9: memref<1x4x512xi32, #tpu.memory_space<vmem>>, %arg10: memref<1x1x128x1xf32, #tpu.memory_space<vmem>>, %arg11: memref<1x1x32x1xf32, #tpu.memory_space<vmem>>, %arg12: memref<128x512xf32, #tpu.memory_space<vmem>>) attributes {dimension_semantics = [#tpu.dimension_semantics<parallel>, #tpu.dimension_semantics<parallel>], iteration_bounds = array<i64: 2, 2>, scalar_prefetch = 0 : i64, scratch_operands = 1 : i64, tpu.core_type = #tpu.core_type<tc>, window_params = [{transform_indices = @transform_0, window_bounds = array<i64: 1, 32, 512>}, {pipeline_mode = #tpu.pipeline_mode<synchronous>, transform_indices = @transform_1, window_bounds = array<i64: 32, 32>}, {pipeline_mode = #tpu.pipeline_mode<synchronous>, transform_indices = @transform_2, window_bounds = array<i64: 32, 1>}, {pipeline_mode = #tpu.pipeline_mode<synchronous>, transform_indices = @transform_3, window_bounds = array<i64: 128, 32>}, {pipeline_mode = #tpu.pipeline_mode<synchronous>, transform_indices = @transform_4, window_bounds = array<i64: 128, 1>}, {pipeline_mode = #tpu.pipeline_mode<synchronous>, transform_indices = @transform_5, window_bounds = array<i64: 32, 128>}, {transform_indices = @transform_6, window_bounds = array<i64: 1, 32, 512>}, {transform_indices = @transform_7, window_bounds = array<i64: 1, 4, 512>}, {transform_indices = @transform_8, window_bounds = array<i64: 1, 1, 128, 1>}, {transform_indices = @transform_9, window_bounds = array<i64: 1, 1, 32, 1>}]} {
    %c0 = arith.constant 0 : index
    %c0_0 = arith.constant 0 : index
    %c0_1 = arith.constant 0 : index
    %0 = vector.load %arg2[%c0, %c0_0, %c0_1] : memref<1x32x512xf32, #tpu.memory_space<vmem>>, vector<1x32x512xf32>
    %1 = vector.shape_cast %0 : vector<1x32x512xf32> to vector<32x512xf32>
    %c0_2 = arith.constant 0 : index
    %c0_3 = arith.constant 0 : index
    %2 = vector.load %arg3[%c0_2, %c0_3] : memref<32x32xf32, #tpu.memory_space<vmem>>, vector<32x32xf32>
    %cst = arith.constant dense<0.000000e+00> : vector<32x512xf32>
    %3 = tpu.matmul %2, %1, %cst {dimension_numbers = #tpu.dot_dimension_numbers<[1], [0], [0], [1], [0, 0, 1, 1], [], []>} : vector<32x32xf32>, vector<32x512xf32>, vector<32x512xf32> -> vector<32x512xf32>
    %c0_4 = arith.constant 0 : index
    %c0_5 = arith.constant 0 : index
    %4 = vector.load %arg4[%c0_4, %c0_5] : memref<32x1xf32, #tpu.memory_space<vmem>>, vector<32x1xf32>
    %5 = vector.broadcast %4 : vector<32x1xf32> to vector<32x512xf32>
    %6 = arith.addf %3, %5 : vector<32x512xf32>
    %c0_6 = arith.constant 0 : index
    %c0_7 = arith.constant 0 : index
    %7 = vector.load %arg5[%c0_6, %c0_7] : memref<128x32xf32, #tpu.memory_space<vmem>>, vector<128x32xf32>
    %cst_8 = arith.constant dense<0.000000e+00> : vector<128x512xf32>
    %8 = tpu.matmul %7, %6, %cst_8 {dimension_numbers = #tpu.dot_dimension_numbers<[1], [0], [0], [1], [0, 0, 1, 1], [], []>} : vector<128x32xf32>, vector<32x512xf32>, vector<128x512xf32> -> vector<128x512xf32>
    %c0_9 = arith.constant 0 : index
    %c0_10 = arith.constant 0 : index
    %9 = vector.load %arg6[%c0_9, %c0_10] : memref<128x1xf32, #tpu.memory_space<vmem>>, vector<128x1xf32>
    %cst_11 = arith.constant 2.000000e+00 : f32
    %10 = vector.broadcast %cst_11 : f32 to vector<128x512xf32>
    %11 = arith.mulf %10, %8 : vector<128x512xf32>
    %12 = vector.broadcast %9 : vector<128x1xf32> to vector<128x512xf32>
    %13 = arith.subf %12, %11 : vector<128x512xf32>
    %14 = tpu.iota {dimensions = array<i32: 0>} : vector<32x512xi32>
    %15 = arith.sitofp %14 : vector<32x512xi32> to vector<32x512xf32>
    %16 = tpu.iota {dimensions = array<i32: 0>} : vector<4x512xi32>
    %c0_i32 = arith.constant 0 : i32
    %17 = vector.broadcast %c0_i32 : i32 to vector<4x512xi32>
    %18 = vector.extract_strided_slice %13 {offsets = [0, 0], sizes = [32, 512], strides = [1, 1]} : vector<128x512xf32> to vector<32x512xf32>
    %cst_12 = arith.constant dense<0x7F800000> : vector<512xf32>
    %19 = vector.multi_reduction <minimumf>, %18, %cst_12 [0] : vector<32x512xf32> to vector<512xf32>
    %20 = vector.shape_cast %19 : vector<512xf32> to vector<1x512xf32>
    %21 = vector.broadcast %20 : vector<1x512xf32> to vector<32x512xf32>
    %22 = arith.cmpf oeq, %18, %21 : vector<32x512xf32>
    %cst_13 = arith.constant 3.200000e+01 : f32
    %23 = vector.broadcast %cst_13 : f32 to vector<32x512xf32>
    %24 = arith.select %22, %15, %23 : vector<32x512xi1>, vector<32x512xf32>
    %cst_14 = arith.constant dense<0x7F800000> : vector<512xf32>
    %25 = vector.multi_reduction <minimumf>, %24, %cst_14 [0] : vector<32x512xf32> to vector<512xf32>
    %26 = vector.shape_cast %25 : vector<512xf32> to vector<1x512xf32>
    %27 = vector.broadcast %26 : vector<1x512xf32> to vector<32x512xf32>
    %28 = arith.cmpf oeq, %15, %27 : vector<32x512xf32>
    %29 = arith.extui %28 : vector<32x512xi1> to vector<32x512xi32>
    %30 = arith.sitofp %29 : vector<32x512xi32> to vector<32x512xf32>
    %c0_15 = arith.constant 0 : index
    %c0_16 = arith.constant 0 : index
    %31 = vector.load %arg12[%c0_15, %c0_16] : memref<128x512xf32, #tpu.memory_space<vmem>>, vector<32x512xf32>
    tpu.vector_store %arg12[%c0_15, %c0_16], %30 {strides = array<i32>} : memref<128x512xf32, #tpu.memory_space<vmem>>, vector<32x512xf32>,
    %cst_17 = arith.constant dense<0.000000e+00> : vector<32xf32>
    %32 = vector.multi_reduction <add>, %30, %cst_17 [1] : vector<32x512xf32> to vector<32xf32>
    %33 = vector.shape_cast %32 : vector<32xf32> to vector<32x1xf32>
    %c0_18 = arith.constant 0 : index
    %c0_19 = arith.constant 0 : index
    %c0_20 = arith.constant 0 : index
    %c0_21 = arith.constant 0 : index
    %34 = vector.load %arg10[%c0_18, %c0_19, %c0_20, %c0_21] : memref<1x1x128x1xf32, #tpu.memory_space<vmem>>, vector<1x1x32x1xf32>
    %35 = vector.shape_cast %34 : vector<1x1x32x1xf32> to vector<32x1xf32>
    %36 = vector.shape_cast %33 : vector<32x1xf32> to vector<1x1x32x1xf32>
    tpu.vector_store %arg10[%c0_18, %c0_19, %c0_20, %c0_21], %36 {strides = array<i32>} : memref<1x1x128x1xf32, #tpu.memory_space<vmem>>, vector<1x1x32x1xf32>,
    %c0_i32_22 = arith.constant 0 : i32
    %37 = vector.broadcast %c0_i32_22 : i32 to vector<4x512xi32>
    %38 = arith.cmpi eq, %16, %37 : vector<4x512xi32>
    %39 = arith.fptosi %26 : vector<1x512xf32> to vector<1x512xi32>
    %40 = vector.shape_cast %39 : vector<1x512xi32> to vector<1x512xi32>
    %41 = vector.broadcast %40 : vector<1x512xi32> to vector<4x512xi32>
    %42 = arith.select %38, %41, %17 : vector<4x512xi1>, vector<4x512xi32>
    %43 = vector.extract_strided_slice %13 {offsets = [32, 0], sizes = [32, 512], strides = [1, 1]} : vector<128x512xf32> to vector<32x512xf32>
    %cst_23 = arith.constant dense<0x7F800000> : vector<512xf32>
    %44 = vector.multi_reduction <minimumf>, %43, %cst_23 [0] : vector<32x512xf32> to vector<512xf32>
    %45 = vector.shape_cast %44 : vector<512xf32> to vector<1x512xf32>
    %46 = vector.broadcast %45 : vector<1x512xf32> to vector<32x512xf32>
    %47 = arith.cmpf oeq, %43, %46 : vector<32x512xf32>
    %cst_24 = arith.constant 3.200000e+01 : f32
    %48 = vector.broadcast %cst_24 : f32 to vector<32x512xf32>
    %49 = arith.select %47, %15, %48 : vector<32x512xi1>, vector<32x512xf32>
    %cst_25 = arith.constant dense<0x7F800000> : vector<512xf32>
    %50 = vector.multi_reduction <minimumf>, %49, %cst_25 [0] : vector<32x512xf32> to vector<512xf32>
    %51 = vector.shape_cast %50 : vector<512xf32> to vector<1x512xf32>
    %52 = vector.broadcast %51 : vector<1x512xf32> to vector<32x512xf32>
    %53 = arith.cmpf oeq, %15, %52 : vector<32x512xf32>
    %54 = arith.extui %53 : vector<32x512xi1> to vector<32x512xi32>
    %55 = arith.sitofp %54 : vector<32x512xi32> to vector<32x512xf32>
    %c32 = arith.constant 32 : index
    %c0_26 = arith.constant 0 : index
    %56 = vector.load %arg12[%c32, %c0_26] : memref<128x512xf32, #tpu.memory_space<vmem>>, vector<32x512xf32>
    tpu.vector_store %arg12[%c32, %c0_26], %55 {strides = array<i32>} : memref<128x512xf32, #tpu.memory_space<vmem>>, vector<32x512xf32>,
    %cst_27 = arith.constant dense<0.000000e+00> : vector<32xf32>
    %57 = vector.multi_reduction <add>, %55, %cst_27 [1] : vector<32x512xf32> to vector<32xf32>
    %58 = vector.shape_cast %57 : vector<32xf32> to vector<32x1xf32>
    %c0_28 = arith.constant 0 : index
    %c0_29 = arith.constant 0 : index
    %c32_30 = arith.constant 32 : index
    %c0_31 = arith.constant 0 : index
    %59 = vector.load %arg10[%c0_28, %c0_29, %c32_30, %c0_31] : memref<1x1x128x1xf32, #tpu.memory_space<vmem>>, vector<1x1x32x1xf32>
    %60 = vector.shape_cast %59 : vector<1x1x32x1xf32> to vector<32x1xf32>
    %61 = vector.shape_cast %58 : vector<32x1xf32> to vector<1x1x32x1xf32>
    tpu.vector_store %arg10[%c0_28, %c0_29, %c32_30, %c0_31], %61 {strides = array<i32>} : memref<1x1x128x1xf32, #tpu.memory_space<vmem>>, vector<1x1x32x1xf32>,
    %c1_i32 = arith.constant 1 : i32
    %62 = vector.broadcast %c1_i32 : i32 to vector<4x512xi32>
    %63 = arith.cmpi eq, %16, %62 : vector<4x512xi32>
    %64 = arith.fptosi %51 : vector<1x512xf32> to vector<1x512xi32>
    %65 = vector.shape_cast %64 : vector<1x512xi32> to vector<1x512xi32>
    %66 = vector.broadcast %65 : vector<1x512xi32> to vector<4x512xi32>
    %67 = arith.select %63, %66, %42 : vector<4x512xi1>, vector<4x512xi32>
    %68 = vector.extract_strided_slice %13 {offsets = [64, 0], sizes = [32, 512], strides = [1, 1]} : vector<128x512xf32> to vector<32x512xf32>
    %cst_32 = arith.constant dense<0x7F800000> : vector<512xf32>
    %69 = vector.multi_reduction <minimumf>, %68, %cst_32 [0] : vector<32x512xf32> to vector<512xf32>
    %70 = vector.shape_cast %69 : vector<512xf32> to vector<1x512xf32>
    %71 = vector.broadcast %70 : vector<1x512xf32> to vector<32x512xf32>
    %72 = arith.cmpf oeq, %68, %71 : vector<32x512xf32>
    %cst_33 = arith.constant 3.200000e+01 : f32
    %73 = vector.broadcast %cst_33 : f32 to vector<32x512xf32>
    %74 = arith.select %72, %15, %73 : vector<32x512xi1>, vector<32x512xf32>
    %cst_34 = arith.constant dense<0x7F800000> : vector<512xf32>
    %75 = vector.multi_reduction <minimumf>, %74, %cst_34 [0] : vector<32x512xf32> to vector<512xf32>
    %76 = vector.shape_cast %75 : vector<512xf32> to vector<1x512xf32>
    %77 = vector.broadcast %76 : vector<1x512xf32> to vector<32x512xf32>
    %78 = arith.cmpf oeq, %15, %77 : vector<32x512xf32>
    %79 = arith.extui %78 : vector<32x512xi1> to vector<32x512xi32>
    %80 = arith.sitofp %79 : vector<32x512xi32> to vector<32x512xf32>
    %c64 = arith.constant 64 : index
    %c0_35 = arith.constant 0 : index
    %81 = vector.load %arg12[%c64, %c0_35] : memref<128x512xf32, #tpu.memory_space<vmem>>, vector<32x512xf32>
    tpu.vector_store %arg12[%c64, %c0_35], %80 {strides = array<i32>} : memref<128x512xf32, #tpu.memory_space<vmem>>, vector<32x512xf32>,
    %cst_36 = arith.constant dense<0.000000e+00> : vector<32xf32>
    %82 = vector.multi_reduction <add>, %80, %cst_36 [1] : vector<32x512xf32> to vector<32xf32>
    %83 = vector.shape_cast %82 : vector<32xf32> to vector<32x1xf32>
    %c0_37 = arith.constant 0 : index
    %c0_38 = arith.constant 0 : index
    %c64_39 = arith.constant 64 : index
    %c0_40 = arith.constant 0 : index
    %84 = vector.load %arg10[%c0_37, %c0_38, %c64_39, %c0_40] : memref<1x1x128x1xf32, #tpu.memory_space<vmem>>, vector<1x1x32x1xf32>
    %85 = vector.shape_cast %84 : vector<1x1x32x1xf32> to vector<32x1xf32>
    %86 = vector.shape_cast %83 : vector<32x1xf32> to vector<1x1x32x1xf32>
    tpu.vector_store %arg10[%c0_37, %c0_38, %c64_39, %c0_40], %86 {strides = array<i32>} : memref<1x1x128x1xf32, #tpu.memory_space<vmem>>, vector<1x1x32x1xf32>,
    %c2_i32 = arith.constant 2 : i32
    %87 = vector.broadcast %c2_i32 : i32 to vector<4x512xi32>
    %88 = arith.cmpi eq, %16, %87 : vector<4x512xi32>
    %89 = arith.fptosi %76 : vector<1x512xf32> to vector<1x512xi32>
    %90 = vector.shape_cast %89 : vector<1x512xi32> to vector<1x512xi32>
    %91 = vector.broadcast %90 : vector<1x512xi32> to vector<4x512xi32>
    %92 = arith.select %88, %91, %67 : vector<4x512xi1>, vector<4x512xi32>
    %93 = vector.extract_strided_slice %13 {offsets = [96, 0], sizes = [32, 512], strides = [1, 1]} : vector<128x512xf32> to vector<32x512xf32>
    %cst_41 = arith.constant dense<0x7F800000> : vector<512xf32>
    %94 = vector.multi_reduction <minimumf>, %93, %cst_41 [0] : vector<32x512xf32> to vector<512xf32>
    %95 = vector.shape_cast %94 : vector<512xf32> to vector<1x512xf32>
    %96 = vector.broadcast %95 : vector<1x512xf32> to vector<32x512xf32>
    %97 = arith.cmpf oeq, %93, %96 : vector<32x512xf32>
    %cst_42 = arith.constant 3.200000e+01 : f32
    %98 = vector.broadcast %cst_42 : f32 to vector<32x512xf32>
    %99 = arith.select %97, %15, %98 : vector<32x512xi1>, vector<32x512xf32>
    %cst_43 = arith.constant dense<0x7F800000> : vector<512xf32>
    %100 = vector.multi_reduction <minimumf>, %99, %cst_43 [0] : vector<32x512xf32> to vector<512xf32>
    %101 = vector.shape_cast %100 : vector<512xf32> to vector<1x512xf32>
    %102 = vector.broadcast %101 : vector<1x512xf32> to vector<32x512xf32>
    %103 = arith.cmpf oeq, %15, %102 : vector<32x512xf32>
    %104 = arith.extui %103 : vector<32x512xi1> to vector<32x512xi32>
    %105 = arith.sitofp %104 : vector<32x512xi32> to vector<32x512xf32>
    %c96 = arith.constant 96 : index
    %c0_44 = arith.constant 0 : index
    %106 = vector.load %arg12[%c96, %c0_44] : memref<128x512xf32, #tpu.memory_space<vmem>>, vector<32x512xf32>
    tpu.vector_store %arg12[%c96, %c0_44], %105 {strides = array<i32>} : memref<128x512xf32, #tpu.memory_space<vmem>>, vector<32x512xf32>,
    %cst_45 = arith.constant dense<0.000000e+00> : vector<32xf32>
    %107 = vector.multi_reduction <add>, %105, %cst_45 [1] : vector<32x512xf32> to vector<32xf32>
    %108 = vector.shape_cast %107 : vector<32xf32> to vector<32x1xf32>
    %c0_46 = arith.constant 0 : index
    %c0_47 = arith.constant 0 : index
    %c96_48 = arith.constant 96 : index
    %c0_49 = arith.constant 0 : index
    %109 = vector.load %arg10[%c0_46, %c0_47, %c96_48, %c0_49] : memref<1x1x128x1xf32, #tpu.memory_space<vmem>>, vector<1x1x32x1xf32>
    %110 = vector.shape_cast %109 : vector<1x1x32x1xf32> to vector<32x1xf32>
    %111 = vector.shape_cast %108 : vector<32x1xf32> to vector<1x1x32x1xf32>
    tpu.vector_store %arg10[%c0_46, %c0_47, %c96_48, %c0_49], %111 {strides = array<i32>} : memref<1x1x128x1xf32, #tpu.memory_space<vmem>>, vector<1x1x32x1xf32>,
    %c3_i32 = arith.constant 3 : i32
    %112 = vector.broadcast %c3_i32 : i32 to vector<4x512xi32>
    %113 = arith.cmpi eq, %16, %112 : vector<4x512xi32>
    %114 = arith.fptosi %101 : vector<1x512xf32> to vector<1x512xi32>
    %115 = vector.shape_cast %114 : vector<1x512xi32> to vector<1x512xi32>
    %116 = vector.broadcast %115 : vector<1x512xi32> to vector<4x512xi32>
    %117 = arith.select %113, %116, %92 : vector<4x512xi1>, vector<4x512xi32>
    %c0_50 = arith.constant 0 : index
    %c0_51 = arith.constant 0 : index
    %118 = vector.load %arg7[%c0_50, %c0_51] : memref<32x128xf32, #tpu.memory_space<vmem>>, vector<32x128xf32>
    %c0_52 = arith.constant 0 : index
    %c0_53 = arith.constant 0 : index
    %119 = vector.load %arg12[%c0_52, %c0_53] : memref<128x512xf32, #tpu.memory_space<vmem>>, vector<128x512xf32>
    %cst_54 = arith.constant dense<0.000000e+00> : vector<32x512xf32>
    %120 = tpu.matmul %118, %119, %cst_54 {dimension_numbers = #tpu.dot_dimension_numbers<[1], [0], [0], [1], [0, 0, 1, 1], [], []>} : vector<32x128xf32>, vector<128x512xf32>, vector<32x512xf32> -> vector<32x512xf32>
    %c0_55 = arith.constant 0 : index
    %c0_56 = arith.constant 0 : index
    %c0_57 = arith.constant 0 : index
    %121 = vector.load %arg8[%c0_55, %c0_56, %c0_57] : memref<1x32x512xf32, #tpu.memory_space<vmem>>, vector<1x32x512xf32>
    %122 = vector.shape_cast %121 : vector<1x32x512xf32> to vector<32x512xf32>
    %123 = vector.shape_cast %120 : vector<32x512xf32> to vector<1x32x512xf32>
    tpu.vector_store %arg8[%c0_55, %c0_56, %c0_57], %123 {strides = array<i32>} : memref<1x32x512xf32, #tpu.memory_space<vmem>>, vector<1x32x512xf32>,
    %c0_58 = arith.constant 0 : index
    %c0_59 = arith.constant 0 : index
    %c0_60 = arith.constant 0 : index
    %124 = vector.load %arg9[%c0_58, %c0_59, %c0_60] : memref<1x4x512xi32, #tpu.memory_space<vmem>>, vector<1x4x512xi32>
    %125 = vector.shape_cast %124 : vector<1x4x512xi32> to vector<4x512xi32>
    %126 = vector.shape_cast %117 : vector<4x512xi32> to vector<1x4x512xi32>
    tpu.vector_store %arg9[%c0_58, %c0_59, %c0_60], %126 {strides = array<i32>} : memref<1x4x512xi32, #tpu.memory_space<vmem>>, vector<1x4x512xi32>,
    %127 = arith.subf %120, %6 : vector<32x512xf32>
    %128 = arith.mulf %127, %127 : vector<32x512xf32>
    %cst_61 = arith.constant dense<0.000000e+00> : vector<32xf32>
    %129 = vector.multi_reduction <add>, %128, %cst_61 [1] : vector<32x512xf32> to vector<32xf32>
    %130 = vector.shape_cast %129 : vector<32xf32> to vector<32x1xf32>
    %c0_62 = arith.constant 0 : index
    %c0_63 = arith.constant 0 : index
    %c0_64 = arith.constant 0 : index
    %c0_65 = arith.constant 0 : index
    %131 = vector.load %arg11[%c0_62, %c0_63, %c0_64, %c0_65] : memref<1x1x32x1xf32, #tpu.memory_space<vmem>>, vector<1x1x32x1xf32>
    %132 = vector.shape_cast %131 : vector<1x1x32x1xf32> to vector<32x1xf32>
    %133 = vector.shape_cast %130 : vector<32x1xf32> to vector<1x1x32x1xf32>
    tpu.vector_store %arg11[%c0_62, %c0_63, %c0_64, %c0_65], %133 {strides = array<i32>} : memref<1x1x32x1xf32, #tpu.memory_space<vmem>>, vector<1x1x32x1xf32>,
    return
  }
  func.func @transform_0(%arg0: i32, %arg1: i32) -> (i32, i32, i32) {
    %c0_i32 = arith.constant 0 : i32
    %c0_i32_0 = arith.constant 0 : i32
    return %arg0, %c0_i32, %arg1 : i32, i32, i32
  }
  func.func @transform_1(%arg0: i32, %arg1: i32) -> (i32, i32) {
    %c0_i32 = arith.constant 0 : i32
    %c0_i32_0 = arith.constant 0 : i32
    %c0_i32_1 = arith.constant 0 : i32
    return %c0_i32, %c0_i32_0 : i32, i32
  }
  func.func @transform_2(%arg0: i32, %arg1: i32) -> (i32, i32) {
    %c0_i32 = arith.constant 0 : i32
    %c0_i32_0 = arith.constant 0 : i32
    %c0_i32_1 = arith.constant 0 : i32
    return %c0_i32, %c0_i32_0 : i32, i32
  }
  func.func @transform_3(%arg0: i32, %arg1: i32) -> (i32, i32) {
    %c0_i32 = arith.constant 0 : i32
    %c0_i32_0 = arith.constant 0 : i32
    %c0_i32_1 = arith.constant 0 : i32
    return %c0_i32, %c0_i32_0 : i32, i32
  }
  func.func @transform_4(%arg0: i32, %arg1: i32) -> (i32, i32) {
    %c0_i32 = arith.constant 0 : i32
    %c0_i32_0 = arith.constant 0 : i32
    %c0_i32_1 = arith.constant 0 : i32
    return %c0_i32, %c0_i32_0 : i32, i32
  }
  func.func @transform_5(%arg0: i32, %arg1: i32) -> (i32, i32) {
    %c0_i32 = arith.constant 0 : i32
    %c0_i32_0 = arith.constant 0 : i32
    %c0_i32_1 = arith.constant 0 : i32
    return %c0_i32, %c0_i32_0 : i32, i32
  }
  func.func @transform_6(%arg0: i32, %arg1: i32) -> (i32, i32, i32) {
    %c0_i32 = arith.constant 0 : i32
    %c0_i32_0 = arith.constant 0 : i32
    return %arg0, %c0_i32, %arg1 : i32, i32, i32
  }
  func.func @transform_7(%arg0: i32, %arg1: i32) -> (i32, i32, i32) {
    %c0_i32 = arith.constant 0 : i32
    %c0_i32_0 = arith.constant 0 : i32
    return %arg0, %c0_i32, %arg1 : i32, i32, i32
  }
  func.func @transform_8(%arg0: i32, %arg1: i32) -> (i32, i32, i32, i32) {
    %c0_i32 = arith.constant 0 : i32
    %c0_i32_0 = arith.constant 0 : i32
    %c0_i32_1 = arith.constant 0 : i32
    return %arg0, %arg1, %c0_i32, %c0_i32_0 : i32, i32, i32, i32
  }
  func.func @transform_9(%arg0: i32, %arg1: i32) -> (i32, i32, i32, i32) {
    %c0_i32 = arith.constant 0 : i32
    %c0_i32_0 = arith.constant 0 : i32
    %c0_i32_1 = arith.constant 0 : i32
    return %arg0, %arg1, %c0_i32, %c0_i32_0 : i32, i32, i32, i32
  }
}

</mosaic_0001>

<llo_original>
// kernel: tile.8
$region0: #{tile.8}
  #allocation0 [shape = 's32[1]{0}', space=sflag, size = 0x4, scoped, tag = 'scoped memory for tile.8']
  %s0 = inlined_call_operand.vmem [shape: f32[32], index: 0, kind: input, shape index: {}]
  %s1 = inlined_call_operand.vmem [shape: f32[4,32], index: 1, kind: output, shape index: {}]
  // Predicated region
  $region2: #{tile.8} parent=0 // pred_check
    _
  $region3: #{tile.8} parent=0 // pred_check_branch
    %3 = sbr.rel (0) target = $region5
  $region4: #{tile.8} parent=0 // pred_region
    _
  $region5: #{tile.8} parent=0 // pred_fallthru
    _
  %v4 = vld [vmem:[%s0] ss:$0 sm:$0xff]
  %5 = vst [vmem:[%s1] sm:$0xf] %v4

// kernel: tile.0
$region0: #{tile.0}
  %s0 = inlined_call_operand.vmem [shape: f32[4,32], index: 0, kind: input, shape index: {}]
  %s1 = inlined_call_operand.vmem [shape: f32[128,1], index: 1, kind: output, shape index: {}]
  $region1: #{tile.0} parent=0
    #allocation0 [shape = 'u8[4096]{0}', space=vmem, size = 0x1000, scoped, tag = 'scoped mem for input reshape']
    %s3 = ssub.s32 16, 1
    %v4 = vld [vmem:[%s0] sm:%s3]
    %5 = vst [vmem:[#allocation0] sm:%s3] %v4
    %v6 = vld [vmem:[#allocation0] sm:$0xf]
    %vm7 = vcmask 7168
    %8 = vst.msk [vmem:[%s1] sm:$0x1] %vm7, %v6
    %s9 = scalar_lea.vmem %s1, 31
    %10 = vst.msk [vmem:[%s9] sm:$0x2] %vm7, %v6
    %s11 = scalar_lea.vmem %s1, 62
    %12 = vst.msk [vmem:[%s11] sm:$0x4] %vm7, %v6
    %s13 = scalar_lea.vmem %s1, 93
    %14 = vst.msk [vmem:[%s13] sm:$0x8] %vm7, %v6
    %v15 = vld [vmem:[#allocation0] sm:$0xf]
    %16 = vrot.lane.b32.xlu0 %v15, 127
    %v17 = vpop.permute.xlu0 %16
    %vm18 = vcmask 7168
    %s19 = scalar_lea.vmem %s1, 1
    %20 = vst.msk [vmem:[%s19] sm:$0x1] %vm18, %v17
    %s21 = scalar_lea.vmem %s1, 32
    %22 = vst.msk [vmem:[%s21] sm:$0x2] %vm18, %v17
    %s23 = scalar_lea.vmem %s1, 63
    %24 = vst.msk [vmem:[%s23] sm:$0x4] %vm18, %v17
    %s25 = scalar_lea.vmem %s1, 94
    %26 = vst.msk [vmem:[%s25] sm:$0x8] %vm18, %v17
    %v27 = vld [vmem:[#allocation0] sm:$0xf]
    %28 = vrot.lane.b32.xlu0 %v27, 126
    %v29 = vpop.permute.xlu0 %28
    %vm30 = vcmask 7168
    %s31 = scalar_lea.vmem %s1, 2
    %32 = vst.msk [vmem:[%s31] sm:$0x1] %vm30, %v29
    %s33 = scalar_lea.vmem %s1, 33
    %34 = vst.msk [vmem:[%s33] sm:$0x2] %vm30, %v29
    %s35 = scalar_lea.vmem %s1, 64
    %36 = vst.msk [vmem:[%s35] sm:$0x4] %vm30, %v29
    %s37 = scalar_lea.vmem %s1, 95
    %38 = vst.msk [vmem:[%s37] sm:$0x8] %vm30, %v29
    %v39 = vld [vmem:[#allocation0] sm:$0xf]
    %40 = vrot.lane.b32.xlu0 %v39, 125
    %v41 = vpop.permute.xlu0 %40
    %vm42 = vcmask 7168
    %s43 = scalar_lea.vmem %s1, 3
    %44 = vst.msk [vmem:[%s43] sm:$0x1] %vm42, %v41
    %s45 = scalar_lea.vmem %s1, 34
    %46 = vst.msk [vmem:[%s45] sm:$0x2] %vm42, %v41
    %s47 = scalar_lea.vmem %s1, 65
    %48 = vst.msk [vmem:[%s47] sm:$0x4] %vm42, %v41
    %s49 = scalar_lea.vmem %s1, 96
    %50 = vst.msk [vmem:[%s49] sm:$0x8] %vm42, %v41
    %v51 = vld [vmem:[#allocation0] sm:$0xf]
    %52 = vrot.lane.b32.xlu0 %v51, 124
    %v53 = vpop.permute.xlu0 %52
    %vm54 = vcmask 7168
    %s55 = scalar_lea.vmem %s1, 4
    %56 = vst.msk [vmem:[%s55] sm:$0x1] %vm54, %v53
    %s57 = scalar_lea.vmem %s1, 35
    %58 = vst.msk [vmem:[%s57] sm:$0x2] %vm54, %v53
    %s59 = scalar_lea.vmem %s1, 66
    %60 = vst.msk [vmem:[%s59] sm:$0x4] %vm54, %v53
    %s61 = scalar_lea.vmem %s1, 97
    %62 = vst.msk [vmem:[%s61] sm:$0x8] %vm54, %v53
    %v63 = vld [vmem:[#allocation0] sm:$0xf]
    %64 = vrot.lane.b32.xlu0 %v63, 123
    %v65 = vpop.permute.xlu0 %64
    %vm66 = vcmask 7168
    %s67 = scalar_lea.vmem %s1, 5
    %68 = vst.msk [vmem:[%s67] sm:$0x1] %vm66, %v65
    %s69 = scalar_lea.vmem %s1, 36
    %70 = vst.msk [vmem:[%s69] sm:$0x2] %vm66, %v65
    %s71 = scalar_lea.vmem %s1, 67
    %72 = vst.msk [vmem:[%s71] sm:$0x4] %vm66, %v65
    %s73 = scalar_lea.vmem %s1, 98
    %74 = vst.msk [vmem:[%s73] sm:$0x8] %vm66, %v65
    %v75 = vld [vmem:[#allocation0] sm:$0xf]
    %76 = vrot.lane.b32.xlu0 %v75, 122
    %v77 = vpop.permute.xlu0 %76
    %vm78 = vcmask 7168
    %s79 = scalar_lea.vmem %s1, 6
    %80 = vst.msk [vmem:[%s79] sm:$0x1] %vm78, %v77
    %s81 = scalar_lea.vmem %s1, 37
    %82 = vst.msk [vmem:[%s81] sm:$0x2] %vm78, %v77
    %s83 = scalar_lea.vmem %s1, 68
    %84 = vst.msk [vmem:[%s83] sm:$0x4] %vm78, %v77
    %s85 = scalar_lea.vmem %s1, 99
    %86 = vst.msk [vmem:[%s85] sm:$0x8] %vm78, %v77
    %v87 = vld [vmem:[#allocation0] sm:$0xf]
    %88 = vrot.lane.b32.xlu0 %v87, 121
    %v89 = vpop.permute.xlu0 %88
    %vm90 = vcmask 7168
    %s91 = scalar_lea.vmem %s1, 7
    %92 = vst.msk [vmem:[%s91] sm:$0x1] %vm90, %v89
    %s93 = scalar_lea.vmem %s1, 38
    %94 = vst.msk [vmem:[%s93] sm:$0x2] %vm90, %v89
    %s95 = scalar_lea.vmem %s1, 69
    %96 = vst.msk [vmem:[%s95] sm:$0x4] %vm90, %v89
    %s97 = scalar_lea.vmem %s1, 100
    %98 = vst.msk [vmem:[%s97] sm:$0x8] %vm90, %v89
    %v99 = vld [vmem:[#allocation0] sm:$0xf]
    %100 = vrot.lane.b32.xlu0 %v99, 120
    %v101 = vpop.permute.xlu0 %100
    %vm102 = vcmask 7168
    %s103 = scalar_lea.vmem %s1, 8
    %104 = vst.msk [vmem:[%s103] sm:$0x1] %vm102, %v101
    %s105 = scalar_lea.vmem %s1, 39
    %106 = vst.msk [vmem:[%s105] sm:$0x2] %vm102, %v101
    %s107 = scalar_lea.vmem %s1, 70
    %108 = vst.msk [vmem:[%s107] sm:$0x4] %vm102, %v101
    %s109 = scalar_lea.vmem %s1, 101
    %110 = vst.msk [vmem:[%s109] sm:$0x8] %vm102, %v101
    %v111 = vld [vmem:[#allocation0] sm:$0xf]
    %112 = vrot.lane.b32.xlu0 %v111, 119
    %v113 = vpop.permute.xlu0 %112
    %vm114 = vcmask 7168
    %s115 = scalar_lea.vmem %s1, 9
    %116 = vst.msk [vmem:[%s115] sm:$0x1] %vm114, %v113
    %s117 = scalar_lea.vmem %s1, 40
    %118 = vst.msk [vmem:[%s117] sm:$0x2] %vm114, %v113
    %s119 = scalar_lea.vmem %s1, 71
    %120 = vst.msk [vmem:[%s119] sm:$0x4] %vm114, %v113
    %s121 = scalar_lea.vmem %s1, 102
    %122 = vst.msk [vmem:[%s121] sm:$0x8] %vm114, %v113
    %v123 = vld [vmem:[#allocation0] sm:$0xf]
    %124 = vrot.lane.b32.xlu0 %v123, 118
    %v125 = vpop.permute.xlu0 %124
    %vm126 = vcmask 7168
    %s127 = scalar_lea.vmem %s1, 10
    %128 = vst.msk [vmem:[%s127] sm:$0x1] %vm126, %v125
    %s129 = scalar_lea.vmem %s1, 41
    %130 = vst.msk [vmem:[%s129] sm:$0x2] %vm126, %v125
    %s131 = scalar_lea.vmem %s1, 72
    %132 = vst.msk [vmem:[%s131] sm:$0x4] %vm126, %v125
    %s133 = scalar_lea.vmem %s1, 103
    %134 = vst.msk [vmem:[%s133] sm:$0x8] %vm126, %v125
    %v135 = vld [vmem:[#allocation0] sm:$0xf]
    %136 = vrot.lane.b32.xlu0 %v135, 117
    %v137 = vpop.permute.xlu0 %136
    %vm138 = vcmask 7168
    %s139 = scalar_lea.vmem %s1, 11
    %140 = vst.msk [vmem:[%s139] sm:$0x1] %vm138, %v137
    %s141 = scalar_lea.vmem %s1, 42
    %142 = vst.msk [vmem:[%s141] sm:$0x2] %vm138, %v137
    %s143 = scalar_lea.vmem %s1, 73
    %144 = vst.msk [vmem:[%s143] sm:$0x4] %vm138, %v137
    %s145 = scalar_lea.vmem %s1, 104
    %146 = vst.msk [vmem:[%s145] sm:$0x8] %vm138, %v137
    %v147 = vld [vmem:[#allocation0] sm:$0xf]
    %148 = vrot.lane.b32.xlu0 %v147, 116
    %v149 = vpop.permute.xlu0 %148
    %vm150 = vcmask 7168
    %s151 = scalar_lea.vmem %s1, 12
    %152 = vst.msk [vmem:[%s151] sm:$0x1] %vm150, %v149
    %s153 = scalar_lea.vmem %s1, 43
    %154 = vst.msk [vmem:[%s153] sm:$0x2] %vm150, %v149
    %s155 = scalar_lea.vmem %s1, 74
    %156 = vst.msk [vmem:[%s155] sm:$0x4] %vm150, %v149
    %s157 = scalar_lea.vmem %s1, 105
    %158 = vst.msk [vmem:[%s157] sm:$0x8] %vm150, %v149
    %v159 = vld [vmem:[#allocation0] sm:$0xf]
    %160 = vrot.lane.b32.xlu0 %v159, 115
    %v161 = vpop.permute.xlu0 %160
    %vm162 = vcmask 7168
    %s163 = scalar_lea.vmem %s1, 13
    %164 = vst.msk [vmem:[%s163] sm:$0x1] %vm162, %v161
    %s165 = scalar_lea.vmem %s1, 44
    %166 = vst.msk [vmem:[%s165] sm:$0x2] %vm162, %v161
    %s167 = scalar_lea.vmem %s1, 75
    %168 = vst.msk [vmem:[%s167] sm:$0x4] %vm162, %v161
    %s169 = scalar_lea.vmem %s1, 106
    %170 = vst.msk [vmem:[%s169] sm:$0x8] %vm162, %v161
    %v171 = vld [vmem:[#allocation0] sm:$0xf]
    %172 = vrot.lane.b32.xlu0 %v171, 114
    %v173 = vpop.permute.xlu0 %172
    %vm174 = vcmask 7168
    %s175 = scalar_lea.vmem %s1, 14
    %176 = vst.msk [vmem:[%s175] sm:$0x1] %vm174, %v173
    %s177 = scalar_lea.vmem %s1, 45
    %178 = vst.msk [vmem:[%s177] sm:$0x2] %vm174, %v173
    %s179 = scalar_lea.vmem %s1, 76
    %180 = vst.msk [vmem:[%s179] sm:$0x4] %vm174, %v173
    %s181 = scalar_lea.vmem %s1, 107
    %182 = vst.msk [vmem:[%s181] sm:$0x8] %vm174, %v173
    %v183 = vld [vmem:[#allocation0] sm:$0xf]
    %184 = vrot.lane.b32.xlu0 %v183, 113
    %v185 = vpop.permute.xlu0 %184
    %vm186 = vcmask 7168
    %s187 = scalar_lea.vmem %s1, 15
    %188 = vst.msk [vmem:[%s187] sm:$0x1] %vm186, %v185
    %s189 = scalar_lea.vmem %s1, 46
    %190 = vst.msk [vmem:[%s189] sm:$0x2] %vm186, %v185
    %s191 = scalar_lea.vmem %s1, 77
    %192 = vst.msk [vmem:[%s191] sm:$0x4] %vm186, %v185
    %s193 = scalar_lea.vmem %s1, 108
    %194 = vst.msk [vmem:[%s193] sm:$0x8] %vm186, %v185
    %v195 = vld [vmem:[#allocation0] sm:$0xf]
    %196 = vrot.lane.b32.xlu0 %v195, 112
    %v197 = vpop.permute.xlu0 %196
    %vm198 = vcmask 7168
    %s199 = scalar_lea.vmem %s1, 16
    %200 = vst.msk [vmem:[%s199] sm:$0x1] %vm198, %v197
    %s201 = scalar_lea.vmem %s1, 47
    %202 = vst.msk [vmem:[%s201] sm:$0x2] %vm198, %v197
    %s203 = scalar_lea.vmem %s1, 78
    %204 = vst.msk [vmem:[%s203] sm:$0x4] %vm198, %v197
    %s205 = scalar_lea.vmem %s1, 109
    %206 = vst.msk [vmem:[%s205] sm:$0x8] %vm198, %v197
    %v207 = vld [vmem:[#allocation0] sm:$0xf]
    %208 = vrot.lane.b32.xlu0 %v207, 111
    %v209 = vpop.permute.xlu0 %208
    %vm210 = vcmask 7168
    %s211 = scalar_lea.vmem %s1, 17
    %212 = vst.msk [vmem:[%s211] sm:$0x1] %vm210, %v209
    %s213 = scalar_lea.vmem %s1, 48
    %214 = vst.msk [vmem:[%s213] sm:$0x2] %vm210, %v209
    %s215 = scalar_lea.vmem %s1, 79
    %216 = vst.msk [vmem:[%s215] sm:$0x4] %vm210, %v209
    %s217 = scalar_lea.vmem %s1, 110
    %218 = vst.msk [vmem:[%s217] sm:$0x8] %vm210, %v209
    %v219 = vld [vmem:[#allocation0] sm:$0xf]
    %220 = vrot.lane.b32.xlu0 %v219, 110
    %v221 = vpop.permute.xlu0 %220
    %vm222 = vcmask 7168
    %s223 = scalar_lea.vmem %s1, 18
    %224 = vst.msk [vmem:[%s223] sm:$0x1] %vm222, %v221
    %s225 = scalar_lea.vmem %s1, 49
    %226 = vst.msk [vmem:[%s225] sm:$0x2] %vm222, %v221
    %s227 = scalar_lea.vmem %s1, 80
    %228 = vst.msk [vmem:[%s227] sm:$0x4] %vm222, %v221
    %s229 = scalar_lea.vmem %s1, 111
    %230 = vst.msk [vmem:[%s229] sm:$0x8] %vm222, %v221
    %v231 = vld [vmem:[#allocation0] sm:$0xf]
    %232 = vrot.lane.b32.xlu0 %v231, 109
    %v233 = vpop.permute.xlu0 %232
    %vm234 = vcmask 7168
    %s235 = scalar_lea.vmem %s1, 19
    %236 = vst.msk [vmem:[%s235] sm:$0x1] %vm234, %v233
    %s237 = scalar_lea.vmem %s1, 50
    %238 = vst.msk [vmem:[%s237] sm:$0x2] %vm234, %v233
    %s239 = scalar_lea.vmem %s1, 81
    %240 = vst.msk [vmem:[%s239] sm:$0x4] %vm234, %v233
    %s241 = scalar_lea.vmem %s1, 112
    %242 = vst.msk [vmem:[%s241] sm:$0x8] %vm234, %v233
    %v243 = vld [vmem:[#allocation0] sm:$0xf]
    %244 = vrot.lane.b32.xlu0 %v243, 108
    %v245 = vpop.permute.xlu0 %244
    %vm246 = vcmask 7168
    %s247 = scalar_lea.vmem %s1, 20
    %248 = vst.msk [vmem:[%s247] sm:$0x1] %vm246, %v245
    %s249 = scalar_lea.vmem %s1, 51
    %250 = vst.msk [vmem:[%s249] sm:$0x2] %vm246, %v245
    %s251 = scalar_lea.vmem %s1, 82
    %252 = vst.msk [vmem:[%s251] sm:$0x4] %vm246, %v245
    %s253 = scalar_lea.vmem %s1, 113
    %254 = vst.msk [vmem:[%s253] sm:$0x8] %vm246, %v245
    %v255 = vld [vmem:[#allocation0] sm:$0xf]
    %256 = vrot.lane.b32.xlu0 %v255, 107
    %v257 = vpop.permute.xlu0 %256
    %vm258 = vcmask 7168
    %s259 = scalar_lea.vmem %s1, 21
    %260 = vst.msk [vmem:[%s259] sm:$0x1] %vm258, %v257
    %s261 = scalar_lea.vmem %s1, 52
    %262 = vst.msk [vmem:[%s261] sm:$0x2] %vm258, %v257
    %s263 = scalar_lea.vmem %s1, 83
    %264 = vst.msk [vmem:[%s263] sm:$0x4] %vm258, %v257
    %s265 = scalar_lea.vmem %s1, 114
    %266 = vst.msk [vmem:[%s265] sm:$0x8] %vm258, %v257
    %v267 = vld [vmem:[#allocation0] sm:$0xf]
    %268 = vrot.lane.b32.xlu0 %v267, 106
    %v269 = vpop.permute.xlu0 %268
    %vm270 = vcmask 7168
    %s271 = scalar_lea.vmem %s1, 22
    %272 = vst.msk [vmem:[%s271] sm:$0x1] %vm270, %v269
    %s273 = scalar_lea.vmem %s1, 53
    %274 = vst.msk [vmem:[%s273] sm:$0x2] %vm270, %v269
    %s275 = scalar_lea.vmem %s1, 84
    %276 = vst.msk [vmem:[%s275] sm:$0x4] %vm270, %v269
    %s277 = scalar_lea.vmem %s1, 115
    %278 = vst.msk [vmem:[%s277] sm:$0x8] %vm270, %v269
    %v279 = vld [vmem:[#allocation0] sm:$0xf]
    %280 = vrot.lane.b32.xlu0 %v279, 105
    %v281 = vpop.permute.xlu0 %280
    %vm282 = vcmask 7168
    %s283 = scalar_lea.vmem %s1, 23
    %284 = vst.msk [vmem:[%s283] sm:$0x1] %vm282, %v281
    %s285 = scalar_lea.vmem %s1, 54
    %286 = vst.msk [vmem:[%s285] sm:$0x2] %vm282, %v281
    %s287 = scalar_lea.vmem %s1, 85
    %288 = vst.msk [vmem:[%s287] sm:$0x4] %vm282, %v281
    %s289 = scalar_lea.vmem %s1, 116
    %290 = vst.msk [vmem:[%s289] sm:$0x8] %vm282, %v281
    %v291 = vld [vmem:[#allocation0] sm:$0xf]
    %292 = vrot.lane.b32.xlu0 %v291, 104
    %v293 = vpop.permute.xlu0 %292
    %vm294 = vcmask 7168
    %s295 = scalar_lea.vmem %s1, 24
    %296 = vst.msk [vmem:[%s295] sm:$0x1] %vm294, %v293
    %s297 = scalar_lea.vmem %s1, 55
    %298 = vst.msk [vmem:[%s297] sm:$0x2] %vm294, %v293
    %s299 = scalar_lea.vmem %s1, 86
    %300 = vst.msk [vmem:[%s299] sm:$0x4] %vm294, %v293
    %s301 = scalar_lea.vmem %s1, 117
    %302 = vst.msk [vmem:[%s301] sm:$0x8] %vm294, %v293
    %v303 = vld [vmem:[#allocation0] sm:$0xf]
    %304 = vrot.lane.b32.xlu0 %v303, 103
    %v305 = vpop.permute.xlu0 %304
    %vm306 = vcmask 7168
    %s307 = scalar_lea.vmem %s1, 25
    %308 = vst.msk [vmem:[%s307] sm:$0x1] %vm306, %v305
    %s309 = scalar_lea.vmem %s1, 56
    %310 = vst.msk [vmem:[%s309] sm:$0x2] %vm306, %v305
    %s311 = scalar_lea.vmem %s1, 87
    %312 = vst.msk [vmem:[%s311] sm:$0x4] %vm306, %v305
    %s313 = scalar_lea.vmem %s1, 118
    %314 = vst.msk [vmem:[%s313] sm:$0x8] %vm306, %v305
    %v315 = vld [vmem:[#allocation0] sm:$0xf]
    %316 = vrot.lane.b32.xlu0 %v315, 102
    %v317 = vpop.permute.xlu0 %316
    %vm318 = vcmask 7168
    %s319 = scalar_lea.vmem %s1, 26
    %320 = vst.msk [vmem:[%s319] sm:$0x1] %vm318, %v317
    %s321 = scalar_lea.vmem %s1, 57
    %322 = vst.msk [vmem:[%s321] sm:$0x2] %vm318, %v317
    %s323 = scalar_lea.vmem %s1, 88
    %324 = vst.msk [vmem:[%s323] sm:$0x4] %vm318, %v317
    %s325 = scalar_lea.vmem %s1, 119
    %326 = vst.msk [vmem:[%s325] sm:$0x8] %vm318, %v317
    %v327 = vld [vmem:[#allocation0] sm:$0xf]
    %328 = vrot.lane.b32.xlu0 %v327, 101
    %v329 = vpop.permute.xlu0 %328
    %vm330 = vcmask 7168
    %s331 = scalar_lea.vmem %s1, 27
    %332 = vst.msk [vmem:[%s331] sm:$0x1] %vm330, %v329
    %s333 = scalar_lea.vmem %s1, 58
    %334 = vst.msk [vmem:[%s333] sm:$0x2] %vm330, %v329
    %s335 = scalar_lea.vmem %s1, 89
    %336 = vst.msk [vmem:[%s335] sm:$0x4] %vm330, %v329
    %s337 = scalar_lea.vmem %s1, 120
    %338 = vst.msk [vmem:[%s337] sm:$0x8] %vm330, %v329
    %v339 = vld [vmem:[#allocation0] sm:$0xf]
    %340 = vrot.lane.b32.xlu0 %v339, 100
    %v341 = vpop.permute.xlu0 %340
    %vm342 = vcmask 7168
    %s343 = scalar_lea.vmem %s1, 28
    %344 = vst.msk [vmem:[%s343] sm:$0x1] %vm342, %v341
    %s345 = scalar_lea.vmem %s1, 59
    %346 = vst.msk [vmem:[%s345] sm:$0x2] %vm342, %v341
    %s347 = scalar_lea.vmem %s1, 90
    %348 = vst.msk [vmem:[%s347] sm:$0x4] %vm342, %v341
    %s349 = scalar_lea.vmem %s1, 121
    %350 = vst.msk [vmem:[%s349] sm:$0x8] %vm342, %v341
    %v351 = vld [vmem:[#allocation0] sm:$0xf]
    %352 = vrot.lane.b32.xlu0 %v351, 99
    %v353 = vpop.permute.xlu0 %352
    %vm354 = vcmask 7168
    %s355 = scalar_lea.vmem %s1, 29
    %356 = vst.msk [vmem:[%s355] sm:$0x1] %vm354, %v353
    %s357 = scalar_lea.vmem %s1, 60
    %358 = vst.msk [vmem:[%s357] sm:$0x2] %vm354, %v353
    %s359 = scalar_lea.vmem %s1, 91
    %360 = vst.msk [vmem:[%s359] sm:$0x4] %vm354, %v353
    %s361 = scalar_lea.vmem %s1, 122
    %362 = vst.msk [vmem:[%s361] sm:$0x8] %vm354, %v353
    %v363 = vld [vmem:[#allocation0] sm:$0xf]
    %364 = vrot.lane.b32.xlu0 %v363, 98
    %v365 = vpop.permute.xlu0 %364
    %vm366 = vcmask 7168
    %s367 = scalar_lea.vmem %s1, 30
    %368 = vst.msk [vmem:[%s367] sm:$0x1] %vm366, %v365
    %s369 = scalar_lea.vmem %s1, 61
    %370 = vst.msk [vmem:[%s369] sm:$0x2] %vm366, %v365
    %s371 = scalar_lea.vmem %s1, 92
    %372 = vst.msk [vmem:[%s371] sm:$0x4] %vm366, %v365
    %s373 = scalar_lea.vmem %s1, 123
    %374 = vst.msk [vmem:[%s373] sm:$0x8] %vm366, %v365
    %v375 = vld [vmem:[#allocation0] sm:$0xf]
    %376 = vrot.lane.b32.xlu0 %v375, 97
    %v377 = vpop.permute.xlu0 %376
    %vm378 = vcmask 7168
    %s379 = scalar_lea.vmem %s1, 31
    %380 = vst.msk [vmem:[%s379] sm:$0x1] %vm378, %v377
    %s381 = scalar_lea.vmem %s1, 62
    %382 = vst.msk [vmem:[%s381] sm:$0x2] %vm378, %v377
    %s383 = scalar_lea.vmem %s1, 93
    %384 = vst.msk [vmem:[%s383] sm:$0x4] %vm378, %v377
    %s385 = scalar_lea.vmem %s1, 124
    %386 = vst.msk [vmem:[%s385] sm:$0x8] %vm378, %v377

// kernel: split_quant_forward.1
$region0: #{split_quant_forward.1}
  #allocation0 [shape = 'u32[]', space=smem, size = 0x4, offset = 0x4, fixed_abs, tag = 'smem constant byte address 0x4 - core index']
  #allocation1 [shape = 'u32[72,128]{1,0:T(1,128)}', space=vmem, size = 0x9000, scoped, tag = 'internal scratch']
  #allocation2 [shape = 'f32[128,512]{1,0:T(8,128)}', space=vmem, size = 0x40000, scoped, tag = 'scratch operand']
  %s0 = inlined_call_operand.vmem [shape: f32[2,32,1024], index: 0, kind: input, shape index: {}]
  %s1 = inlined_call_operand.vmem [shape: f32[32,32], index: 1, kind: input, shape index: {}]
  %s2 = inlined_call_operand.vmem [shape: f32[32,1], index: 2, kind: input, shape index: {}]
  %s3 = inlined_call_operand.vmem [shape: f32[128,32], index: 3, kind: input, shape index: {}]
  %s4 = inlined_call_operand.vmem [shape: f32[128,1], index: 4, kind: input, shape index: {}]
  %s5 = inlined_call_operand.vmem [shape: f32[32,128], index: 5, kind: input, shape index: {}]
  %s6 = inlined_call_operand.hbm [shape: f32[2,32,1024], index: 6, kind: output, shape index: {0}]
  %s7 = inlined_call_operand.hbm [shape: s32[2,4,1024], index: 7, kind: output, shape index: {1}]
  %s8 = inlined_call_operand.vmem [shape: f32[2,2,128,1], index: 8, kind: output, shape index: {2}]
  %s9 = inlined_call_operand.vmem [shape: f32[2,2,32,1], index: 9, kind: output, shape index: {3}]
  %10 = xla_tuple %s6, %s7, %s8, %s9
  %s11 = sld [smem:[#allocation0]]
  $region104: #{split_quant_forward.1} parent=0
    _
  %s13 = ssub.s32 1, %s11
  %s14 = scalar_select 0, %s13, %s11
  $region1: #{split_quant_forward.1} parent=0
    #allocation3 [shape = 'u8[131072]{0}', space=vmem, size = 0x20000, scoped, tag = 'input window, operand 0']
    #allocation4 [shape = 'u8[131072]{0}', space=vmem, size = 0x20000, scoped, tag = 'output window, operand 0']
    #allocation5 [shape = 's32[2]{0}', space=sflag, size = 0x8, scoped, tag = 'scoped memory for split_quant_forward.1']
    #allocation6 [shape = 'u8[16384]{0}', space=vmem, size = 0x4000, scoped, tag = 'output window, operand 1']
    #allocation7 [shape = 's32[2]{0}', space=sflag, size = 0x8, scoped, tag = 'scoped memory for split_quant_forward.1']
    %15 = vsyncpa [#allocation5], 0
    %s16 = scalar_lea.sflag [#allocation5], 1
    %17 = vsyncpa %s16, 0
    %18 = vsyncpa [#allocation7], 0
    %s19 = scalar_lea.sflag [#allocation7], 1
    %20 = vsyncpa %s19, 0
    loop: start=0, step=1, limit=6
    $region2: #{split_quant_forward.1} parent=1 // loop_pre_header
      _
    $region3: #{split_quant_forward.1} parent=1 // loop_header
      %s22 = sphi 0, %s26
      %p23 = scmp.ge.s32.totalorder %s22, 6
      %s29 = sphi 0, %s41
      %s30 = sphi 0, %s37
      %s31 = sphi 0, %s29
      %s32 = sphi 0, %s30
      %s33 = sphi 0, %s31
      %s34 = sphi 0, %s32
      %s46 = sphi 0, %s48
      %s49 = sphi 0, %s46
      %s50 = sphi 0, %s49
      %s66 = sphi 0, %s50
      %s70 = sphi 0, %s70
      %s72 = sphi 0, %s70
      %s73 = sphi 0, %s72
      %s87 = sphi 0, %s73
      %s91 = sphi 0, %s91
      %s93 = sphi 0, %s91
      %s94 = sphi 0, %s93
      %s108 = sphi 0, %s94
      %s112 = sphi 0, %s112
      %s114 = sphi 0, %s112
      %s115 = sphi 0, %s114
      %s129 = sphi 0, %s115
      %s133 = sphi 0, %s133
      %s135 = sphi 0, %s133
      %s136 = sphi 0, %s135
      %s150 = sphi 0, %s136
      %s154 = sphi 0, %s154
      %s156 = sphi 0, %s154
      %s157 = sphi 0, %s156
      %s171 = sphi 0, %s157
      %s179 = sphi 0, %s181
      %s182 = sphi 0, %s179
      %s183 = sphi 0, %s182
      %s199 = sphi 0, %s183
      %s207 = sphi 0, %s209
      %s210 = sphi 0, %s207
      %s211 = sphi 0, %s210
      %s227 = sphi 0, %s211
      %s235 = sphi 0, %s237
      %s238 = sphi 0, %s235
      %s239 = sphi 0, %s238
      %s255 = sphi 0, %s239
      %s263 = sphi 0, %s265
      %s266 = sphi 0, %s263
      %s267 = sphi 0, %s266
      %s283 = sphi 0, %s267
    $region4: #{split_quant_forward.1} parent=1 // loop_header_branch
      %25 = sbr.rel (%p23) target = $region8
    $region5: #{split_quant_forward.1} parent=1 // loop_body
      %s27 = ssub.s32 %s22, 1
      %s28 = ssub.s32 %s22, 2
      %s35 = sadd.s32 1, %s30
      %p36 = scmp.ge.s32.totalorder %s35, 2
      %s37 = scalar_select %p36, 0, %s35
      %s38 = sadd.s32 1, %s29
      %s39 = scalar_select %p36, %s38, %s29
      %p40 = scmp.ge.s32.totalorder %s39, 2
      %s41 = scalar_select %p40, 0, %s39
      %s42 = ssub.s32 %s29, %s41
      %s43 = ssub.s32 %s30, %s37
      %s44 = sor.u32 %s42, %s43
      %p45 = scmp.eq.s32.totalorder %s44, 0
      %s47 = sadd.s32 %s46, 1
      %s48 = scalar_select %p45, %s46, %s47
      %p51 = pneg %p45
      %p52 = scmp.eq.s32.totalorder %s22, 3
      %p53 = por %p51, %p52
      %p54 = scmp.ne.s32.totalorder %s46, %s49
      %p55 = scmp.eq.s32.totalorder %s22, 0
      %p56 = por %p54, %p55
      %p57 = scmp.ne.s32.totalorder %s46, %s49
      %p58 = scmp.eq.s32.totalorder %s27, 3
      %p59 = por %p57, %p58
      %p60 = scmp.ne.s32.totalorder %s49, %s50
      %p61 = scmp.eq.s32.totalorder %s27, 0
      %p62 = por %p60, %p61
      %p63 = scmp.ne.s32.totalorder %s49, %s50
      %p64 = scmp.eq.s32.totalorder %s28, 3
      %p65 = por %p63, %p64
      %p67 = scmp.ne.s32.totalorder %s50, %s66
      %p68 = scmp.eq.s32.totalorder %s28, 0
      %p69 = por %p67, %p68
      %s71 = sadd.s32 %s70, 1
      %p74 = scmp.eq.s32.totalorder %s22, 3
      %p75 = scmp.ne.s32.totalorder %s70, %s72
      %p76 = scmp.eq.s32.totalorder %s22, 0
      %p77 = por %p75, %p76
      %p78 = scmp.ne.s32.totalorder %s70, %s72
      %p79 = scmp.eq.s32.totalorder %s27, 3
      %p80 = por %p78, %p79
      %p81 = scmp.ne.s32.totalorder %s72, %s73
      %p82 = scmp.eq.s32.totalorder %s27, 0
      %p83 = por %p81, %p82
      %p84 = scmp.ne.s32.totalorder %s72, %s73
      %p85 = scmp.eq.s32.totalorder %s28, 3
      %p86 = por %p84, %p85
      %p88 = scmp.ne.s32.totalorder %s73, %s87
      %p89 = scmp.eq.s32.totalorder %s28, 0
      %p90 = por %p88, %p89
      %s92 = sadd.s32 %s91, 1
      %p95 = scmp.eq.s32.totalorder %s22, 3
      %p96 = scmp.ne.s32.totalorder %s91, %s93
      %p97 = scmp.eq.s32.totalorder %s22, 0
      %p98 = por %p96, %p97
      %p99 = scmp.ne.s32.totalorder %s91, %s93
      %p100 = scmp.eq.s32.totalorder %s27, 3
      %p101 = por %p99, %p100
      %p102 = scmp.ne.s32.totalorder %s93, %s94
      %p103 = scmp.eq.s32.totalorder %s27, 0
      %p104 = por %p102, %p103
      %p105 = scmp.ne.s32.totalorder %s93, %s94
      %p106 = scmp.eq.s32.totalorder %s28, 3
      %p107 = por %p105, %p106
      %p109 = scmp.ne.s32.totalorder %s94, %s108
      %p110 = scmp.eq.s32.totalorder %s28, 0
      %p111 = por %p109, %p110
      %s113 = sadd.s32 %s112, 1
      %p116 = scmp.eq.s32.totalorder %s22, 3
      %p117 = scmp.ne.s32.totalorder %s112, %s114
      %p118 = scmp.eq.s32.totalorder %s22, 0
      %p119 = por %p117, %p118
      %p120 = scmp.ne.s32.totalorder %s112, %s114
      %p121 = scmp.eq.s32.totalorder %s27, 3
      %p122 = por %p120, %p121
      %p123 = scmp.ne.s32.totalorder %s114, %s115
      %p124 = scmp.eq.s32.totalorder %s27, 0
      %p125 = por %p123, %p124
      %p126 = scmp.ne.s32.totalorder %s114, %s115
      %p127 = scmp.eq.s32.totalorder %s28, 3
      %p128 = por %p126, %p127
      %p130 = scmp.ne.s32.totalorder %s115, %s129
      %p131 = scmp.eq.s32.totalorder %s28, 0
      %p132 = por %p130, %p131
      %s134 = sadd.s32 %s133, 1
      %p137 = scmp.eq.s32.totalorder %s22, 3
      %p138 = scmp.ne.s32.totalorder %s133, %s135
      %p139 = scmp.eq.s32.totalorder %s22, 0
      %p140 = por %p138, %p139
      %p141 = scmp.ne.s32.totalorder %s133, %s135
      %p142 = scmp.eq.s32.totalorder %s27, 3
      %p143 = por %p141, %p142
      %p144 = scmp.ne.s32.totalorder %s135, %s136
      %p145 = scmp.eq.s32.totalorder %s27, 0
      %p146 = por %p144, %p145
      %p147 = scmp.ne.s32.totalorder %s135, %s136
      %p148 = scmp.eq.s32.totalorder %s28, 3
      %p149 = por %p147, %p148
      %p151 = scmp.ne.s32.totalorder %s136, %s150
      %p152 = scmp.eq.s32.totalorder %s28, 0
      %p153 = por %p151, %p152
      %s155 = sadd.s32 %s154, 1
      %p158 = scmp.eq.s32.totalorder %s22, 3
      %p159 = scmp.ne.s32.totalorder %s154, %s156
      %p160 = scmp.eq.s32.totalorder %s22, 0
      %p161 = por %p159, %p160
      %p162 = scmp.ne.s32.totalorder %s154, %s156
      %p163 = scmp.eq.s32.totalorder %s27, 3
      %p164 = por %p162, %p163
      %p165 = scmp.ne.s32.totalorder %s156, %s157
      %p166 = scmp.eq.s32.totalorder %s27, 0
      %p167 = por %p165, %p166
      %p168 = scmp.ne.s32.totalorder %s156, %s157
      %p169 = scmp.eq.s32.totalorder %s28, 3
      %p170 = por %p168, %p169
      %p172 = scmp.ne.s32.totalorder %s157, %s171
      %p173 = scmp.eq.s32.totalorder %s28, 0
      %p174 = por %p172, %p173
      %s175 = ssub.s32 %s29, %s41
      %s176 = ssub.s32 %s30, %s37
      %s177 = sor.u32 %s175, %s176
      %p178 = scmp.eq.s32.totalorder %s177, 0
      %s180 = sadd.s32 %s179, 1
      %s181 = scalar_select %p178, %s179, %s180
      %p184 = pneg %p178
      %p185 = scmp.eq.s32.totalorder %s22, 3
      %p186 = por %p184, %p185
      %p187 = scmp.ne.s32.totalorder %s179, %s182
      %p188 = scmp.eq.s32.totalorder %s22, 0
      %p189 = por %p187, %p188
      %p190 = scmp.ne.s32.totalorder %s179, %s182
      %p191 = scmp.eq.s32.totalorder %s27, 3
      %p192 = por %p190, %p191
      %p193 = scmp.ne.s32.totalorder %s182, %s183
      %p194 = scmp.eq.s32.totalorder %s27, 0
      %p195 = por %p193, %p194
      %p196 = scmp.ne.s32.totalorder %s182, %s183
      %p197 = scmp.eq.s32.totalorder %s28, 3
      %p198 = por %p196, %p197
      %p200 = scmp.ne.s32.totalorder %s183, %s199
      %p201 = scmp.eq.s32.totalorder %s28, 0
      %p202 = por %p200, %p201
      %s203 = ssub.s32 %s29, %s41
      %s204 = ssub.s32 %s30, %s37
      %s205 = sor.u32 %s203, %s204
      %p206 = scmp.eq.s32.totalorder %s205, 0
      %s208 = sadd.s32 %s207, 1
      %s209 = scalar_select %p206, %s207, %s208
      %p212 = pneg %p206
      %p213 = scmp.eq.s32.totalorder %s22, 3
      %p214 = por %p212, %p213
      %p215 = scmp.ne.s32.totalorder %s207, %s210
      %p216 = scmp.eq.s32.totalorder %s22, 0
      %p217 = por %p215, %p216
      %p218 = scmp.ne.s32.totalorder %s207, %s210
      %p219 = scmp.eq.s32.totalorder %s27, 3
      %p220 = por %p218, %p219
      %p221 = scmp.ne.s32.totalorder %s210, %s211
      %p222 = scmp.eq.s32.totalorder %s27, 0
      %p223 = por %p221, %p222
      %p224 = scmp.ne.s32.totalorder %s210, %s211
      %p225 = scmp.eq.s32.totalorder %s28, 3
      %p226 = por %p224, %p225
      %p228 = scmp.ne.s32.totalorder %s211, %s227
      %p229 = scmp.eq.s32.totalorder %s28, 0
      %p230 = por %p228, %p229
      %s231 = ssub.s32 %s29, %s41
      %s232 = ssub.s32 %s30, %s37
      %s233 = sor.u32 %s231, %s232
      %p234 = scmp.eq.s32.totalorder %s233, 0
      %s236 = sadd.s32 %s235, 1
      %s237 = scalar_select %p234, %s235, %s236
      %p240 = pneg %p234
      %p241 = scmp.eq.s32.totalorder %s22, 3
      %p242 = por %p240, %p241
      %p243 = scmp.ne.s32.totalorder %s235, %s238
      %p244 = scmp.eq.s32.totalorder %s22, 0
      %p245 = por %p243, %p244
      %p246 = scmp.ne.s32.totalorder %s235, %s238
      %p247 = scmp.eq.s32.totalorder %s27, 3
      %p248 = por %p246, %p247
      %p249 = scmp.ne.s32.totalorder %s238, %s239
      %p250 = scmp.eq.s32.totalorder %s27, 0
      %p251 = por %p249, %p250
      %p252 = scmp.ne.s32.totalorder %s238, %s239
      %p253 = scmp.eq.s32.totalorder %s28, 3
      %p254 = por %p252, %p253
      %p256 = scmp.ne.s32.totalorder %s239, %s255
      %p257 = scmp.eq.s32.totalorder %s28, 0
      %p258 = por %p256, %p257
      %s259 = ssub.s32 %s29, %s41
      %s260 = ssub.s32 %s30, %s37
      %s261 = sor.u32 %s259, %s260
      %p262 = scmp.eq.s32.totalorder %s261, 0
      %s264 = sadd.s32 %s263, 1
      %s265 = scalar_select %p262, %s263, %s264
      %p268 = pneg %p262
      %p269 = scmp.eq.s32.totalorder %s22, 3
      %p270 = por %p268, %p269
      %p271 = scmp.ne.s32.totalorder %s263, %s266
      %p272 = scmp.eq.s32.totalorder %s22, 0
      %p273 = por %p271, %p272
      %p274 = scmp.ne.s32.totalorder %s263, %s266
      %p275 = scmp.eq.s32.totalorder %s27, 3
      %p276 = por %p274, %p275
      %p277 = scmp.ne.s32.totalorder %s266, %s267
      %p278 = scmp.eq.s32.totalorder %s27, 0
      %p279 = por %p277, %p278
      %p280 = scmp.ne.s32.totalorder %s266, %s267
      %p281 = scmp.eq.s32.totalorder %s28, 3
      %p282 = por %p280, %p281
      %p284 = scmp.ne.s32.totalorder %s267, %s283
      %p285 = scmp.eq.s32.totalorder %s28, 0
      %p286 = por %p284, %p285
      %p287 = scmp.le.s32.totalorder 1, %s22
      %p288 = scmp.lt.s32.totalorder %s22, 5
      %p289 = pnand %p287, %p288
      %p290 = pneg %p289
      // Predicated region
      $region9: #{split_quant_forward.1} parent=5 // pred_check
        _
      $region10: #{split_quant_forward.1} parent=5 // pred_check_branch
        %292 = sbr.rel (%p289) target = $region12
      $region11: #{split_quant_forward.1} parent=5 // pred_region
        %s293 = ssub.s32 %s22, 1
        // Predicated region
        $region13: #{split_quant_forward.1} parent=11 // pred_check
          %p294 = pneg %p83
        $region14: #{split_quant_forward.1} parent=11 // pred_check_branch
          %296 = sbr.rel (%p294) target = $region16
        $region15: #{split_quant_forward.1} parent=11 // pred_region
          _
        $region16: #{split_quant_forward.1} parent=11 // pred_fallthru
          _
        // Predicated region
        $region17: #{split_quant_forward.1} parent=11 // pred_check
          %p297 = pneg %p104
        $region18: #{split_quant_forward.1} parent=11 // pred_check_branch
          %299 = sbr.rel (%p297) target = $region20
        $region19: #{split_quant_forward.1} parent=11 // pred_region
          _
        $region20: #{split_quant_forward.1} parent=11 // pred_fallthru
          _
        // Predicated region
        $region21: #{split_quant_forward.1} parent=11 // pred_check
          %p300 = pneg %p125
        $region22: #{split_quant_forward.1} parent=11 // pred_check_branch
          %302 = sbr.rel (%p300) target = $region24
        $region23: #{split_quant_forward.1} parent=11 // pred_region
          _
        $region24: #{split_quant_forward.1} parent=11 // pred_fallthru
          _
        // Predicated region
        $region25: #{split_quant_forward.1} parent=11 // pred_check
          %p303 = pneg %p146
        $region26: #{split_quant_forward.1} parent=11 // pred_check_branch
          %305 = sbr.rel (%p303) target = $region28
        $region27: #{split_quant_forward.1} parent=11 // pred_region
          _
        $region28: #{split_quant_forward.1} parent=11 // pred_fallthru
          _
        // Predicated region
        $region29: #{split_quant_forward.1} parent=11 // pred_check
          %p306 = pneg %p167
        $region30: #{split_quant_forward.1} parent=11 // pred_check_branch
          %308 = sbr.rel (%p306) target = $region32
        $region31: #{split_quant_forward.1} parent=11 // pred_region
          _
        $region32: #{split_quant_forward.1} parent=11 // pred_fallthru
          _
      $region12: #{split_quant_forward.1} parent=5 // pred_fallthru
        _
      %p309 = scmp.lt.s32.totalorder %s22, 4
      // Predicated region
      $region33: #{split_quant_forward.1} parent=5 // pred_check
        %p310 = pneg %p309
      $region34: #{split_quant_forward.1} parent=5 // pred_check_branch
        %312 = sbr.rel (%p310) target = $region36
      $region35: #{split_quant_forward.1} parent=5 // pred_region
        // Predicated region
        $region37: #{split_quant_forward.1} parent=35 // pred_check
          %p313 = pneg %p56
        $region38: #{split_quant_forward.1} parent=35 // pred_check_branch
          %315 = sbr.rel (%p313) target = $region40
        $region39: #{split_quant_forward.1} parent=35 // pred_region
          %s316 = sand.u32 %s46, 1
          %s317 = sand.u32 %s46, 1
          %s318 = smul.addr %s317, 128
          %s319 = scalar_lea.vmem [#allocation3], %s318
          %s320 = smul.u32 4, %s30
          %s321 = smul.addr %s29, 32
          %s322 = sadd.s32 %s320, %s321
          %s323 = smul.addr %s322, 8
          %s324 = scalar_lea.vmem %s0, %s323
          // Predicated region
          $region41: #{split_quant_forward.1} parent=39 // pred_check
            _
          $region42: #{split_quant_forward.1} parent=39 // pred_check_branch
            %326 = sbr.rel (0) target = $region44
          $region43: #{split_quant_forward.1} parent=39 // pred_region
            // Predicated region
            $region45: #{split_quant_forward.1} parent=43 // pred_check
              _
            $region46: #{split_quant_forward.1} parent=43 // pred_check_branch
              %328 = sbr.rel (0) target = $region48
            $region47: #{split_quant_forward.1} parent=43 // pred_region
              loop: start=0, step=1, limit=1
              $region49: #{split_quant_forward.1} parent=47 // loop_pre_header
                _
              $region50: #{split_quant_forward.1} parent=47 // loop_header
                %s330 = sphi 0, %s334
                %p331 = scmp.ge.s32.totalorder %s330, 1
                %s335 = sphi %s324, %s324
                %s336 = sphi %s319, %s319
              $region51: #{split_quant_forward.1} parent=47 // loop_header_branch
                %333 = sbr.rel (%p331) target = $region55
              $region52: #{split_quant_forward.1} parent=47 // loop_body
                %v337 = vld [vmem:[%s335] sm:$0xff]
                %338 = vst [vmem:[%s336] sm:$0xff] %v337
                %v339 = vld [vmem:[%s335 + $0x8] sm:$0xff]
                %340 = vst [vmem:[%s336 + $0x8] sm:$0xff] %v339
                %v341 = vld [vmem:[%s335 + $0x10] sm:$0xff]
                %342 = vst [vmem:[%s336 + $0x10] sm:$0xff] %v341
                %v343 = vld [vmem:[%s335 + $0x18] sm:$0xff]
                %344 = vst [vmem:[%s336 + $0x18] sm:$0xff] %v343
                %v345 = vld [vmem:[%s335 + $0x40] sm:$0xff]
                %346 = vst [vmem:[%s336 + $0x20] sm:$0xff] %v345
                %v347 = vld [vmem:[%s335 + $0x48] sm:$0xff]
                %348 = vst [vmem:[%s336 + $0x28] sm:$0xff] %v347
                %v349 = vld [vmem:[%s335 + $0x50] sm:$0xff]
                %350 = vst [vmem:[%s336 + $0x30] sm:$0xff] %v349
                %v351 = vld [vmem:[%s335 + $0x58] sm:$0xff]
                %352 = vst [vmem:[%s336 + $0x38] sm:$0xff] %v351
                %v353 = vld [vmem:[%s335 + $0x80] sm:$0xff]
                %354 = vst [vmem:[%s336 + $0x40] sm:$0xff] %v353
                %v355 = vld [vmem:[%s335 + $0x88] sm:$0xff]
                %356 = vst [vmem:[%s336 + $0x48] sm:$0xff] %v355
                %v357 = vld [vmem:[%s335 + $0x90] sm:$0xff]
                %358 = vst [vmem:[%s336 + $0x50] sm:$0xff] %v357
                %v359 = vld [vmem:[%s335 + $0x98] sm:$0xff]
                %360 = vst [vmem:[%s336 + $0x58] sm:$0xff] %v359
                %v361 = vld [vmem:[%s335 + $0xc0] sm:$0xff]
                %362 = vst [vmem:[%s336 + $0x60] sm:$0xff] %v361
                %v363 = vld [vmem:[%s335 + $0xc8] sm:$0xff]
                %364 = vst [vmem:[%s336 + $0x68] sm:$0xff] %v363
                %v365 = vld [vmem:[%s335 + $0xd0] sm:$0xff]
                %366 = vst [vmem:[%s336 + $0x70] sm:$0xff] %v365
                %v367 = vld [vmem:[%s335 + $0xd8] sm:$0xff]
                %368 = vst [vmem:[%s336 + $0x78] sm:$0xff] %v367
              $region53: #{split_quant_forward.1} parent=47 // loop_footer
                %s334 = sadd.s32 1, %s330
              $region54: #{split_quant_forward.1} parent=47 // loop_footer_branch
                %329 = sbr.rel target = $region50
              $region55: #{split_quant_forward.1} parent=47 // loop_exit
                _
            $region48: #{split_quant_forward.1} parent=43 // pred_fallthru
              _
            // Predicated region
            $region56: #{split_quant_forward.1} parent=43 // pred_check
              _
            $region57: #{split_quant_forward.1} parent=43 // pred_check_branch
              %370 = sbr.rel target = $region59
            $region58: #{split_quant_forward.1} parent=43 // pred_region
              _
            $region59: #{split_quant_forward.1} parent=43 // pred_fallthru
              _
          $region44: #{split_quant_forward.1} parent=39 // pred_fallthru
            _
          %371 = vnop
        $region40: #{split_quant_forward.1} parent=35 // pred_fallthru
          _
      $region36: #{split_quant_forward.1} parent=5 // pred_fallthru
        _
      %p372 = scmp.le.s32.totalorder 1, %s22
      %p373 = scmp.lt.s32.totalorder %s22, 5
      %p374 = pnand %p372, %p373
      %p375 = pneg %p374
      // Predicated region
      $region60: #{split_quant_forward.1} parent=5 // pred_check
        _
      $region61: #{split_quant_forward.1} parent=5 // pred_check_branch
        %377 = sbr.rel (%p374) target = $region63
      $region62: #{split_quant_forward.1} parent=5 // pred_region
        %s378 = ssub.s32 %s22, 1
        %s379 = sand.u32 %s49, 1
        %s380 = sand.u32 %s49, 1
        %s381 = smul.addr %s380, 128
        %s382 = scalar_lea.vmem [#allocation3], %s381
        // Predicated region
        $region64: #{split_quant_forward.1} parent=62 // pred_check
          %p383 = pneg %p62
        $region65: #{split_quant_forward.1} parent=62 // pred_check_branch
          %385 = sbr.rel (%p383) target = $region67
        $region66: #{split_quant_forward.1} parent=62 // pred_region
          _
        $region67: #{split_quant_forward.1} parent=62 // pred_fallthru
          _
        %s386 = sand.u32 %s49, 1
        %s387 = sand.u32 %s49, 1
        %s388 = smul.addr %s387, 128
        %s389 = scalar_lea.vmem [#allocation3], %s388
        %p390 = pneg %p62
        %p391 = pneg %p59
        %p392 = pneg %p83
        %p393 = pneg %p80
        %p394 = pneg %p104
        %p395 = pneg %p101
        %p396 = pneg %p125
        %p397 = pneg %p122
        %p398 = pneg %p146
        %p399 = pneg %p143
        %p400 = pneg %p167
        %p401 = pneg %p164
        %p402 = pneg %p195
        %p403 = pneg %p192
        %s404 = sand.u32 %s182, 1
        %s405 = scalar_lea.sflag [#allocation5], %s404
        %s406 = sand.u32 %s182, 1
        %s407 = smul.addr %s406, 128
        %s408 = scalar_lea.vmem [#allocation4], %s407
        %p409 = pneg %p223
        %p410 = pneg %p220
        %s411 = sand.u32 %s210, 1
        %s412 = scalar_lea.sflag [#allocation7], %s411
        %s413 = sand.u32 %s210, 1
        %s414 = smul.addr %s413, 16
        %s415 = scalar_lea.vmem [#allocation6], %s414
        %p416 = pneg %p251
        %p417 = pneg %p248
        %p418 = scmp.lt.s32.totalorder %s31, 1
        %s419 = scalar_select %p418, %s31, 1
        %p420 = scmp.lt.s32.totalorder %s32, 1
        %s421 = scalar_select %p420, %s32, 1
        %s422 = smul.addr %s421, 16
        %s423 = smul.addr %s419, 32
        %s424 = sadd.s32 %s422, %s423
        %s425 = smul.addr %s424, 8
        %s426 = scalar_lea.vmem %s8, %s425
        %p427 = pneg %p279
        %p428 = pneg %p276
        %p429 = scmp.lt.s32.totalorder %s31, 1
        %s430 = scalar_select %p429, %s31, 1
        %p431 = scmp.lt.s32.totalorder %s32, 1
        %s432 = scalar_select %p431, %s32, 1
        %s433 = smul.addr %s432, 4
        %s434 = smul.addr %s430, 8
        %s435 = sadd.s32 %s433, %s434
        %s436 = smul.addr %s435, 8
        %s437 = scalar_lea.vmem %s9, %s436
        %s438 = smul.u32 4, %s32
        %s439 = smul.u32 4, %s32
        %s440 = smul.u32 4, %s32
        %p441 = scmp.lt.s32.totalorder %s31, 1
        %s442 = scalar_select %p441, %s31, 1
        %p443 = scmp.lt.s32.totalorder %s32, 1
        %s444 = scalar_select %p443, %s32, 1
        %s445 = smul.addr %s444, 16
        %s446 = smul.addr %s442, 32
        %s447 = sadd.s32 %s445, %s446
        %s448 = smul.addr %s447, 8
        %s449 = scalar_lea.vmem %s8, %s448
        %p450 = scmp.lt.s32.totalorder %s31, 1
        %s451 = scalar_select %p450, %s31, 1
        %p452 = scmp.lt.s32.totalorder %s32, 1
        %s453 = scalar_select %p452, %s32, 1
        %s454 = smul.addr %s453, 4
        %s455 = smul.addr %s451, 8
        %s456 = sadd.s32 %s454, %s455
        %s457 = smul.addr %s456, 8
        %s458 = scalar_lea.vmem %s9, %s457
        %v459 = vld [vmem:[%s382] sm:$0xff]
        %v460 = vld [vmem:[%s382 + $0x8] sm:$0xff]
        %v461 = vld [vmem:[%s382 + $0x10] sm:$0xff]
        %v462 = vld [vmem:[%s382 + $0x18] sm:$0xff]
        %v463 = vld [vmem:[%s382 + $0x20] sm:$0xff]
        %v464 = vld [vmem:[%s382 + $0x28] sm:$0xff]
        %v465 = vld [vmem:[%s382 + $0x30] sm:$0xff]
        %v466 = vld [vmem:[%s382 + $0x38] sm:$0xff]
        %v467 = vld [vmem:[%s382 + $0x40] sm:$0xff]
        %v468 = vld [vmem:[%s382 + $0x48] sm:$0xff]
        %v469 = vld [vmem:[%s382 + $0x50] sm:$0xff]
        %v470 = vld [vmem:[%s382 + $0x58] sm:$0xff]
        %v471 = vld [vmem:[%s382 + $0x60] sm:$0xff]
        %v472 = vld [vmem:[%s382 + $0x68] sm:$0xff]
        %v473 = vld [vmem:[%s382 + $0x70] sm:$0xff]
        %v474 = vld [vmem:[%s382 + $0x78] sm:$0xff]
        %v475 = vld [vmem:[%s1] sm:$0xff]
        %v476 = vld [vmem:[%s1 + $0x8] sm:$0xff]
        %v477 = vld [vmem:[%s1 + $0x10] sm:$0xff]
        %v478 = vld [vmem:[%s1 + $0x18] sm:$0xff]
        %v479 = vld [vmem:[%s2] sm:$0xff]
        %v480 = vld [vmem:[%s2 + $0x8] sm:$0xff]
        %v481 = vld [vmem:[%s2 + $0x10] sm:$0xff]
        %v482 = vld [vmem:[%s2 + $0x18] sm:$0xff]
        %484 = vset.pattern.permute.xlu0 0
        %485 = vperm.xlu0 %484, %v479
        %v486 = vpop.permute.xlu0 %485
        %489 = vset.pattern.permute.xlu0 0
        %490 = vperm.xlu0 %489, %v480
        %v491 = vpop.permute.xlu0 %490
        %494 = vset.pattern.permute.xlu0 0
        %495 = vperm.xlu0 %494, %v481
        %v496 = vpop.permute.xlu0 %495
        %499 = vset.pattern.permute.xlu0 0
        %500 = vperm.xlu0 %499, %v482
        %v501 = vpop.permute.xlu0 %500
        %vm503 = vcmask 261120
        %v505 = vsel %vm503, %v475, 0
        %v508 = vsel %vm503, %v476, 0
        %v511 = vsel %vm503, %v477, 0
        %v514 = vsel %vm503, %v478, 0
        %516 = vmatpush.msra.mxu0 0.0
        %517 = vmatpush.msra.mxu0 0.0
        %518 = vmatpush.msra.mxu0 0.0
        %519 = vmatpush.msra.mxu0 0.0
        %520 = vmatpush.msra.mxu0 0.0
        %521 = vmatpush.msra.mxu0 0.0
        %522 = vmatpush.msra.mxu0 0.0
        %523 = vmatpush.msra.mxu0 0.0
        %524 = vmatpush.msra.mxu0 0.0
        %525 = vmatpush.msra.mxu0 0.0
        %526 = vmatpush.msra.mxu0 0.0
        %527 = vmatpush.msra.mxu0 0.0
        %528 = vmatpush.msra.mxu0 %v471
        %529 = vmatpush.msra.mxu0 %v467
        %530 = vmatpush.msra.mxu0 %v463
        %531 = vmatpush.msra.mxu0 %v459
        %532 = vmatmul.f32.gmra.mxu0 %v505
        %v533 = vpop.f32.mrf.mxu0
        %v534 = vadd.f32 %v486, %v533
        %535 = vmatmul.f32.gmra.mxu0 %v508
        %v536 = vpop.f32.mrf.mxu0
        %v537 = vadd.f32 %v491, %v536
        %538 = vmatmul.f32.gmra.mxu0 %v511
        %v539 = vpop.f32.mrf.mxu0
        %v540 = vadd.f32 %v496, %v539
        %541 = vmatmul.f32.gmra.mxu0 %v514
        %v542 = vpop.f32.mrf.mxu0
        %v543 = vadd.f32 %v501, %v542
        %544 = vdwg.mxu0
        %545 = vmatpush.msra.mxu0 0.0
        %546 = vmatpush.msra.mxu0 0.0
        %547 = vmatpush.msra.mxu0 0.0
        %548 = vmatpush.msra.mxu0 0.0
        %549 = vmatpush.msra.mxu0 0.0
        %550 = vmatpush.msra.mxu0 0.0
        %551 = vmatpush.msra.mxu0 0.0
        %552 = vmatpush.msra.mxu0 0.0
        %553 = vmatpush.msra.mxu0 0.0
        %554 = vmatpush.msra.mxu0 0.0
        %555 = vmatpush.msra.mxu0 0.0
        %556 = vmatpush.msra.mxu0 0.0
        %557 = vmatpush.msra.mxu0 %v472
        %558 = vmatpush.msra.mxu0 %v468
        %559 = vmatpush.msra.mxu0 %v464
        %560 = vmatpush.msra.mxu0 %v460
        %561 = vmatmul.f32.gmra.mxu0 %v505
        %v562 = vpop.f32.mrf.mxu0
        %v563 = vadd.f32 %v486, %v562
        %564 = vmatmul.f32.gmra.mxu0 %v508
        %v565 = vpop.f32.mrf.mxu0
        %v566 = vadd.f32 %v491, %v565
        %567 = vmatmul.f32.gmra.mxu0 %v511
        %v568 = vpop.f32.mrf.mxu0
        %v569 = vadd.f32 %v496, %v568
        %570 = vmatmul.f32.gmra.mxu0 %v514
        %v571 = vpop.f32.mrf.mxu0
        %v572 = vadd.f32 %v501, %v571
        %573 = vdwg.mxu0
        %574 = vmatpush.msra.mxu0 0.0
        %575 = vmatpush.msra.mxu0 0.0
        %576 = vmatpush.msra.mxu0 0.0
        %577 = vmatpush.msra.mxu0 0.0
        %578 = vmatpush.msra.mxu0 0.0
        %579 = vmatpush.msra.mxu0 0.0
        %580 = vmatpush.msra.mxu0 0.0
        %581 = vmatpush.msra.mxu0 0.0
        %582 = vmatpush.msra.mxu0 0.0
        %583 = vmatpush.msra.mxu0 0.0
        %584 = vmatpush.msra.mxu0 0.0
        %585 = vmatpush.msra.mxu0 0.0
        %586 = vmatpush.msra.mxu0 %v473
        %587 = vmatpush.msra.mxu0 %v469
        %588 = vmatpush.msra.mxu0 %v465
        %589 = vmatpush.msra.mxu0 %v461
        %590 = vmatmul.f32.gmra.mxu0 %v505
        %v591 = vpop.f32.mrf.mxu0
        %v592 = vadd.f32 %v486, %v591
        %593 = vmatmul.f32.gmra.mxu0 %v508
        %v594 = vpop.f32.mrf.mxu0
        %v595 = vadd.f32 %v491, %v594
        %596 = vmatmul.f32.gmra.mxu0 %v511
        %v597 = vpop.f32.mrf.mxu0
        %v598 = vadd.f32 %v496, %v597
        %599 = vmatmul.f32.gmra.mxu0 %v514
        %v600 = vpop.f32.mrf.mxu0
        %v601 = vadd.f32 %v501, %v600
        %602 = vdwg.mxu0
        %603 = vmatpush.msra.mxu0 0.0
        %604 = vmatpush.msra.mxu0 0.0
        %605 = vmatpush.msra.mxu0 0.0
        %606 = vmatpush.msra.mxu0 0.0
        %607 = vmatpush.msra.mxu0 0.0
        %608 = vmatpush.msra.mxu0 0.0
        %609 = vmatpush.msra.mxu0 0.0
        %610 = vmatpush.msra.mxu0 0.0
        %611 = vmatpush.msra.mxu0 0.0
        %612 = vmatpush.msra.mxu0 0.0
        %613 = vmatpush.msra.mxu0 0.0
        %614 = vmatpush.msra.mxu0 0.0
        %615 = vmatpush.msra.mxu0 %v474
        %616 = vmatpush.msra.mxu0 %v470
        %617 = vmatpush.msra.mxu0 %v466
        %618 = vmatpush.msra.mxu0 %v462
        %619 = vmatmul.f32.gmra.mxu0 %v505
        %v620 = vpop.f32.mrf.mxu0
        %v621 = vadd.f32 %v486, %v620
        %622 = vmatmul.f32.gmra.mxu0 %v508
        %v623 = vpop.f32.mrf.mxu0
        %v624 = vadd.f32 %v491, %v623
        %625 = vmatmul.f32.gmra.mxu0 %v511
        %v626 = vpop.f32.mrf.mxu0
        %v627 = vadd.f32 %v496, %v626
        %628 = vmatmul.f32.gmra.mxu0 %v514
        %v629 = vpop.f32.mrf.mxu0
        %v630 = vadd.f32 %v501, %v629
        %631 = vdwg.mxu0
        %v632 = vld [vmem:[%s3] sm:$0xff]
        %v633 = vld [vmem:[%s3 + $0x8] sm:$0xff]
        %v634 = vld [vmem:[%s3 + $0x10] sm:$0xff]
        %v635 = vld [vmem:[%s3 + $0x18] sm:$0xff]
        %v636 = vld [vmem:[%s3 + $0x20] sm:$0xff]
        %v637 = vld [vmem:[%s3 + $0x28] sm:$0xff]
        %v638 = vld [vmem:[%s3 + $0x30] sm:$0xff]
        %v639 = vld [vmem:[%s3 + $0x38] sm:$0xff]
        %v640 = vld [vmem:[%s3 + $0x40] sm:$0xff]
        %v641 = vld [vmem:[%s3 + $0x48] sm:$0xff]
        %v642 = vld [vmem:[%s3 + $0x50] sm:$0xff]
        %v643 = vld [vmem:[%s3 + $0x58] sm:$0xff]
        %v644 = vld [vmem:[%s3 + $0x60] sm:$0xff]
        %v645 = vld [vmem:[%s3 + $0x68] sm:$0xff]
        %v646 = vld [vmem:[%s3 + $0x70] sm:$0xff]
        %v647 = vld [vmem:[%s3 + $0x78] sm:$0xff]
        %v649 = vsel %vm503, %v632, 0
        %v652 = vsel %vm503, %v633, 0
        %v655 = vsel %vm503, %v634, 0
        %v658 = vsel %vm503, %v635, 0
        %v661 = vsel %vm503, %v636, 0
        %v664 = vsel %vm503, %v637, 0
        %v667 = vsel %vm503, %v638, 0
        %v670 = vsel %vm503, %v639, 0
        %v673 = vsel %vm503, %v640, 0
        %v676 = vsel %vm503, %v641, 0
        %v679 = vsel %vm503, %v642, 0
        %v682 = vsel %vm503, %v643, 0
        %v685 = vsel %vm503, %v644, 0
        %v688 = vsel %vm503, %v645, 0
        %v691 = vsel %vm503, %v646, 0
        %v694 = vsel %vm503, %v647, 0
        %696 = vmatpush.msra.mxu0 0.0
        %697 = vmatpush.msra.mxu0 0.0
        %698 = vmatpush.msra.mxu0 0.0
        %699 = vmatpush.msra.mxu0 0.0
        %700 = vmatpush.msra.mxu0 0.0
        %701 = vmatpush.msra.mxu0 0.0
        %702 = vmatpush.msra.mxu0 0.0
        %703 = vmatpush.msra.mxu0 0.0
        %704 = vmatpush.msra.mxu0 0.0
        %705 = vmatpush.msra.mxu0 0.0
        %706 = vmatpush.msra.mxu0 0.0
        %707 = vmatpush.msra.mxu0 0.0
        %708 = vmatpush.msra.mxu0 %v543
        %709 = vmatpush.msra.mxu0 %v540
        %710 = vmatpush.msra.mxu0 %v537
        %711 = vmatpush.msra.mxu0 %v534
        %712 = vmatmul.f32.gmra.mxu0 %v649
        %v713 = vpop.f32.mrf.mxu0
        %v714 = vadd.f32 0.0, %v713
        %715 = vmatmul.f32.gmra.mxu0 %v652
        %v716 = vpop.f32.mrf.mxu0
        %v717 = vadd.f32 0.0, %v716
        %718 = vmatmul.f32.gmra.mxu0 %v655
        %v719 = vpop.f32.mrf.mxu0
        %v720 = vadd.f32 0.0, %v719
        %721 = vmatmul.f32.gmra.mxu0 %v658
        %v722 = vpop.f32.mrf.mxu0
        %v723 = vadd.f32 0.0, %v722
        %724 = vmatmul.f32.gmra.mxu0 %v661
        %v725 = vpop.f32.mrf.mxu0
        %v726 = vadd.f32 0.0, %v725
        %727 = vmatmul.f32.gmra.mxu0 %v664
        %v728 = vpop.f32.mrf.mxu0
        %v729 = vadd.f32 0.0, %v728
        %730 = vmatmul.f32.gmra.mxu0 %v667
        %v731 = vpop.f32.mrf.mxu0
        %v732 = vadd.f32 0.0, %v731
        %733 = vmatmul.f32.gmra.mxu0 %v670
        %v734 = vpop.f32.mrf.mxu0
        %v735 = vadd.f32 0.0, %v734
        %736 = vmatmul.f32.gmra.mxu0 %v673
        %v737 = vpop.f32.mrf.mxu0
        %v738 = vadd.f32 0.0, %v737
        %739 = vmatmul.f32.gmra.mxu0 %v676
        %v740 = vpop.f32.mrf.mxu0
        %v741 = vadd.f32 0.0, %v740
        %742 = vmatmul.f32.gmra.mxu0 %v679
        %v743 = vpop.f32.mrf.mxu0
        %v744 = vadd.f32 0.0, %v743
        %745 = vmatmul.f32.gmra.mxu0 %v682
        %v746 = vpop.f32.mrf.mxu0
        %v747 = vadd.f32 0.0, %v746
        %748 = vmatmul.f32.gmra.mxu0 %v685
        %v749 = vpop.f32.mrf.mxu0
        %v750 = vadd.f32 0.0, %v749
        %751 = vmatmul.f32.gmra.mxu0 %v688
        %v752 = vpop.f32.mrf.mxu0
        %v753 = vadd.f32 0.0, %v752
        %754 = vmatmul.f32.gmra.mxu0 %v691
        %v755 = vpop.f32.mrf.mxu0
        %v756 = vadd.f32 0.0, %v755
        %757 = vmatmul.f32.gmra.mxu0 %v694
        %v758 = vpop.f32.mrf.mxu0
        %v759 = vadd.f32 0.0, %v758
        %760 = vdwg.mxu0
        %761 = vmatpush.msra.mxu0 0.0
        %762 = vmatpush.msra.mxu0 0.0
        %763 = vmatpush.msra.mxu0 0.0
        %764 = vmatpush.msra.mxu0 0.0
        %765 = vmatpush.msra.mxu0 0.0
        %766 = vmatpush.msra.mxu0 0.0
        %767 = vmatpush.msra.mxu0 0.0
        %768 = vmatpush.msra.mxu0 0.0
        %769 = vmatpush.msra.mxu0 0.0
        %770 = vmatpush.msra.mxu0 0.0
        %771 = vmatpush.msra.mxu0 0.0
        %772 = vmatpush.msra.mxu0 0.0
        %773 = vmatpush.msra.mxu0 %v572
        %774 = vmatpush.msra.mxu0 %v569
        %775 = vmatpush.msra.mxu0 %v566
        %776 = vmatpush.msra.mxu0 %v563
        %777 = vmatmul.f32.gmra.mxu0 %v649
        %v778 = vpop.f32.mrf.mxu0
        %v779 = vadd.f32 0.0, %v778
        %780 = vmatmul.f32.gmra.mxu0 %v652
        %v781 = vpop.f32.mrf.mxu0
        %v782 = vadd.f32 0.0, %v781
        %783 = vmatmul.f32.gmra.mxu0 %v655
        %v784 = vpop.f32.mrf.mxu0
        %v785 = vadd.f32 0.0, %v784
        %786 = vmatmul.f32.gmra.mxu0 %v658
        %v787 = vpop.f32.mrf.mxu0
        %v788 = vadd.f32 0.0, %v787
        %789 = vmatmul.f32.gmra.mxu0 %v661
        %v790 = vpop.f32.mrf.mxu0
        %v791 = vadd.f32 0.0, %v790
        %792 = vmatmul.f32.gmra.mxu0 %v664
        %v793 = vpop.f32.mrf.mxu0
        %v794 = vadd.f32 0.0, %v793
        %795 = vmatmul.f32.gmra.mxu0 %v667
        %v796 = vpop.f32.mrf.mxu0
        %v797 = vadd.f32 0.0, %v796
        %798 = vmatmul.f32.gmra.mxu0 %v670
        %v799 = vpop.f32.mrf.mxu0
        %v800 = vadd.f32 0.0, %v799
        %801 = vmatmul.f32.gmra.mxu0 %v673
        %v802 = vpop.f32.mrf.mxu0
        %v803 = vadd.f32 0.0, %v802
        %804 = vmatmul.f32.gmra.mxu0 %v676
        %v805 = vpop.f32.mrf.mxu0
        %v806 = vadd.f32 0.0, %v805
        %807 = vmatmul.f32.gmra.mxu0 %v679
        %v808 = vpop.f32.mrf.mxu0
        %v809 = vadd.f32 0.0, %v808
        %810 = vmatmul.f32.gmra.mxu0 %v682
        %v811 = vpop.f32.mrf.mxu0
        %v812 = vadd.f32 0.0, %v811
        %813 = vmatmul.f32.gmra.mxu0 %v685
        %v814 = vpop.f32.mrf.mxu0
        %v815 = vadd.f32 0.0, %v814
        %816 = vmatmul.f32.gmra.mxu0 %v688
        %v817 = vpop.f32.mrf.mxu0
        %v818 = vadd.f32 0.0, %v817
        %819 = vmatmul.f32.gmra.mxu0 %v691
        %v820 = vpop.f32.mrf.mxu0
        %v821 = vadd.f32 0.0, %v820
        %822 = vmatmul.f32.gmra.mxu0 %v694
        %v823 = vpop.f32.mrf.mxu0
        %v824 = vadd.f32 0.0, %v823
        %825 = vdwg.mxu0
        %826 = vmatpush.msra.mxu0 0.0
        %827 = vmatpush.msra.mxu0 0.0
        %828 = vmatpush.msra.mxu0 0.0
        %829 = vmatpush.msra.mxu0 0.0
        %830 = vmatpush.msra.mxu0 0.0
        %831 = vmatpush.msra.mxu0 0.0
        %832 = vmatpush.msra.mxu0 0.0
        %833 = vmatpush.msra.mxu0 0.0
        %834 = vmatpush.msra.mxu0 0.0
        %835 = vmatpush.msra.mxu0 0.0
        %836 = vmatpush.msra.mxu0 0.0
        %837 = vmatpush.msra.mxu0 0.0
        %838 = vmatpush.msra.mxu0 %v601
        %839 = vmatpush.msra.mxu0 %v598
        %840 = vmatpush.msra.mxu0 %v595
        %841 = vmatpush.msra.mxu0 %v592
        %842 = vmatmul.f32.gmra.mxu0 %v649
        %v843 = vpop.f32.mrf.mxu0
        %v844 = vadd.f32 0.0, %v843
        %845 = vmatmul.f32.gmra.mxu0 %v652
        %v846 = vpop.f32.mrf.mxu0
        %v847 = vadd.f32 0.0, %v846
        %848 = vmatmul.f32.gmra.mxu0 %v655
        %v849 = vpop.f32.mrf.mxu0
        %v850 = vadd.f32 0.0, %v849
        %851 = vmatmul.f32.gmra.mxu0 %v658
        %v852 = vpop.f32.mrf.mxu0
        %v853 = vadd.f32 0.0, %v852
        %854 = vmatmul.f32.gmra.mxu0 %v661
        %v855 = vpop.f32.mrf.mxu0
        %v856 = vadd.f32 0.0, %v855
        %857 = vmatmul.f32.gmra.mxu0 %v664
        %v858 = vpop.f32.mrf.mxu0
        %v859 = vadd.f32 0.0, %v858
        %860 = vmatmul.f32.gmra.mxu0 %v667
        %v861 = vpop.f32.mrf.mxu0
        %v862 = vadd.f32 0.0, %v861
        %863 = vmatmul.f32.gmra.mxu0 %v670
        %v864 = vpop.f32.mrf.mxu0
        %v865 = vadd.f32 0.0, %v864
        %866 = vmatmul.f32.gmra.mxu0 %v673
        %v867 = vpop.f32.mrf.mxu0
        %v868 = vadd.f32 0.0, %v867
        %869 = vmatmul.f32.gmra.mxu0 %v676
        %v870 = vpop.f32.mrf.mxu0
        %v871 = vadd.f32 0.0, %v870
        %872 = vmatmul.f32.gmra.mxu0 %v679
        %v873 = vpop.f32.mrf.mxu0
        %v874 = vadd.f32 0.0, %v873
        %875 = vmatmul.f32.gmra.mxu0 %v682
        %v876 = vpop.f32.mrf.mxu0
        %v877 = vadd.f32 0.0, %v876
        %878 = vmatmul.f32.gmra.mxu0 %v685
        %v879 = vpop.f32.mrf.mxu0
        %v880 = vadd.f32 0.0, %v879
        %881 = vmatmul.f32.gmra.mxu0 %v688
        %v882 = vpop.f32.mrf.mxu0
        %v883 = vadd.f32 0.0, %v882
        %884 = vmatmul.f32.gmra.mxu0 %v691
        %v885 = vpop.f32.mrf.mxu0
        %v886 = vadd.f32 0.0, %v885
        %887 = vmatmul.f32.gmra.mxu0 %v694
        %v888 = vpop.f32.mrf.mxu0
        %v889 = vadd.f32 0.0, %v888
        %890 = vdwg.mxu0
        %891 = vmatpush.msra.mxu0 0.0
        %892 = vmatpush.msra.mxu0 0.0
        %893 = vmatpush.msra.mxu0 0.0
        %894 = vmatpush.msra.mxu0 0.0
        %895 = vmatpush.msra.mxu0 0.0
        %896 = vmatpush.msra.mxu0 0.0
        %897 = vmatpush.msra.mxu0 0.0
        %898 = vmatpush.msra.mxu0 0.0
        %899 = vmatpush.msra.mxu0 0.0
        %900 = vmatpush.msra.mxu0 0.0
        %901 = vmatpush.msra.mxu0 0.0
        %902 = vmatpush.msra.mxu0 0.0
        %903 = vmatpush.msra.mxu0 %v630
        %904 = vmatpush.msra.mxu0 %v627
        %905 = vmatpush.msra.mxu0 %v624
        %906 = vmatpush.msra.mxu0 %v621
        %907 = vmatmul.f32.gmra.mxu0 %v649
        %v908 = vpop.f32.mrf.mxu0
        %v909 = vadd.f32 0.0, %v908
        %910 = vmatmul.f32.gmra.mxu0 %v652
        %v911 = vpop.f32.mrf.mxu0
        %v912 = vadd.f32 0.0, %v911
        %913 = vmatmul.f32.gmra.mxu0 %v655
        %v914 = vpop.f32.mrf.mxu0
        %v915 = vadd.f32 0.0, %v914
        %916 = vmatmul.f32.gmra.mxu0 %v658
        %v917 = vpop.f32.mrf.mxu0
        %v918 = vadd.f32 0.0, %v917
        %919 = vmatmul.f32.gmra.mxu0 %v661
        %v920 = vpop.f32.mrf.mxu0
        %v921 = vadd.f32 0.0, %v920
        %922 = vmatmul.f32.gmra.mxu0 %v664
        %v923 = vpop.f32.mrf.mxu0
        %v924 = vadd.f32 0.0, %v923
        %925 = vmatmul.f32.gmra.mxu0 %v667
        %v926 = vpop.f32.mrf.mxu0
        %v927 = vadd.f32 0.0, %v926
        %928 = vmatmul.f32.gmra.mxu0 %v670
        %v929 = vpop.f32.mrf.mxu0
        %v930 = vadd.f32 0.0, %v929
        %931 = vmatmul.f32.gmra.mxu0 %v673
        %v932 = vpop.f32.mrf.mxu0
        %v933 = vadd.f32 0.0, %v932
        %934 = vmatmul.f32.gmra.mxu0 %v676
        %v935 = vpop.f32.mrf.mxu0
        %v936 = vadd.f32 0.0, %v935
        %937 = vmatmul.f32.gmra.mxu0 %v679
        %v938 = vpop.f32.mrf.mxu0
        %v939 = vadd.f32 0.0, %v938
        %940 = vmatmul.f32.gmra.mxu0 %v682
        %v941 = vpop.f32.mrf.mxu0
        %v942 = vadd.f32 0.0, %v941
        %943 = vmatmul.f32.gmra.mxu0 %v685
        %v944 = vpop.f32.mrf.mxu0
        %v945 = vadd.f32 0.0, %v944
        %946 = vmatmul.f32.gmra.mxu0 %v688
        %v947 = vpop.f32.mrf.mxu0
        %v948 = vadd.f32 0.0, %v947
        %949 = vmatmul.f32.gmra.mxu0 %v691
        %v950 = vpop.f32.mrf.mxu0
        %v951 = vadd.f32 0.0, %v950
        %952 = vmatmul.f32.gmra.mxu0 %v694
        %v953 = vpop.f32.mrf.mxu0
        %v954 = vadd.f32 0.0, %v953
        %955 = vdwg.mxu0
        %v956 = vld [vmem:[%s4] sm:$0xff]
        %v957 = vld [vmem:[%s4 + $0x8] sm:$0xff]
        %v958 = vld [vmem:[%s4 + $0x10] sm:$0xff]
        %v959 = vld [vmem:[%s4 + $0x18] sm:$0xff]
        %v960 = vld [vmem:[%s4 + $0x20] sm:$0xff]
        %v961 = vld [vmem:[%s4 + $0x28] sm:$0xff]
        %v962 = vld [vmem:[%s4 + $0x30] sm:$0xff]
        %v963 = vld [vmem:[%s4 + $0x38] sm:$0xff]
        %v964 = vld [vmem:[%s4 + $0x40] sm:$0xff]
        %v965 = vld [vmem:[%s4 + $0x48] sm:$0xff]
        %v966 = vld [vmem:[%s4 + $0x50] sm:$0xff]
        %v967 = vld [vmem:[%s4 + $0x58] sm:$0xff]
        %v968 = vld [vmem:[%s4 + $0x60] sm:$0xff]
        %v969 = vld [vmem:[%s4 + $0x68] sm:$0xff]
        %v970 = vld [vmem:[%s4 + $0x70] sm:$0xff]
        %v971 = vld [vmem:[%s4 + $0x78] sm:$0xff]
        %v972 = vmul.f32 %v714, 2.0
        %v973 = vmul.f32 %v779, 2.0
        %v974 = vmul.f32 %v844, 2.0
        %v975 = vmul.f32 %v909, 2.0
        %v976 = vmul.f32 %v717, 2.0
        %v977 = vmul.f32 %v782, 2.0
        %v978 = vmul.f32 %v847, 2.0
        %v979 = vmul.f32 %v912, 2.0
        %v980 = vmul.f32 %v720, 2.0
        %v981 = vmul.f32 %v785, 2.0
        %v982 = vmul.f32 %v850, 2.0
        %v983 = vmul.f32 %v915, 2.0
        %v984 = vmul.f32 %v723, 2.0
        %v985 = vmul.f32 %v788, 2.0
        %v986 = vmul.f32 %v853, 2.0
        %v987 = vmul.f32 %v918, 2.0
        %v988 = vmul.f32 %v726, 2.0
        %v989 = vmul.f32 %v791, 2.0
        %v990 = vmul.f32 %v856, 2.0
        %v991 = vmul.f32 %v921, 2.0
        %v992 = vmul.f32 %v729, 2.0
        %v993 = vmul.f32 %v794, 2.0
        %v994 = vmul.f32 %v859, 2.0
        %v995 = vmul.f32 %v924, 2.0
        %v996 = vmul.f32 %v732, 2.0
        %v997 = vmul.f32 %v797, 2.0
        %v998 = vmul.f32 %v862, 2.0
        %v999 = vmul.f32 %v927, 2.0
        %v1000 = vmul.f32 %v735, 2.0
        %v1001 = vmul.f32 %v800, 2.0
        %v1002 = vmul.f32 %v865, 2.0
        %v1003 = vmul.f32 %v930, 2.0
        %v1004 = vmul.f32 %v738, 2.0
        %v1005 = vmul.f32 %v803, 2.0
        %v1006 = vmul.f32 %v868, 2.0
        %v1007 = vmul.f32 %v933, 2.0
        %v1008 = vmul.f32 %v741, 2.0
        %v1009 = vmul.f32 %v806, 2.0
        %v1010 = vmul.f32 %v871, 2.0
        %v1011 = vmul.f32 %v936, 2.0
        %v1012 = vmul.f32 %v744, 2.0
        %v1013 = vmul.f32 %v809, 2.0
        %v1014 = vmul.f32 %v874, 2.0
        %v1015 = vmul.f32 %v939, 2.0
        %v1016 = vmul.f32 %v747, 2.0
        %v1017 = vmul.f32 %v812, 2.0
        %v1018 = vmul.f32 %v877, 2.0
        %v1019 = vmul.f32 %v942, 2.0
        %v1020 = vmul.f32 %v750, 2.0
        %v1021 = vmul.f32 %v815, 2.0
        %v1022 = vmul.f32 %v880, 2.0
        %v1023 = vmul.f32 %v945, 2.0
        %v1024 = vmul.f32 %v753, 2.0
        %v1025 = vmul.f32 %v818, 2.0
        %v1026 = vmul.f32 %v883, 2.0
        %v1027 = vmul.f32 %v948, 2.0
        %v1028 = vmul.f32 %v756, 2.0
        %v1029 = vmul.f32 %v821, 2.0
        %v1030 = vmul.f32 %v886, 2.0
        %v1031 = vmul.f32 %v951, 2.0
        %v1032 = vmul.f32 %v759, 2.0
        %v1033 = vmul.f32 %v824, 2.0
        %v1034 = vmul.f32 %v889, 2.0
        %v1035 = vmul.f32 %v954, 2.0
        %1037 = vset.pattern.permute.xlu0 0
        %1038 = vperm.xlu0 %1037, %v956
        %v1039 = vpop.permute.xlu0 %1038
        %1042 = vset.pattern.permute.xlu0 0
        %1043 = vperm.xlu0 %1042, %v957
        %v1044 = vpop.permute.xlu0 %1043
        %1047 = vset.pattern.permute.xlu0 0
        %1048 = vperm.xlu0 %1047, %v958
        %v1049 = vpop.permute.xlu0 %1048
        %1052 = vset.pattern.permute.xlu0 0
        %1053 = vperm.xlu0 %1052, %v959
        %v1054 = vpop.permute.xlu0 %1053
        %1057 = vset.pattern.permute.xlu0 0
        %1058 = vperm.xlu0 %1057, %v960
        %v1059 = vpop.permute.xlu0 %1058
        %1062 = vset.pattern.permute.xlu0 0
        %1063 = vperm.xlu0 %1062, %v961
        %v1064 = vpop.permute.xlu0 %1063
        %1067 = vset.pattern.permute.xlu0 0
        %1068 = vperm.xlu0 %1067, %v962
        %v1069 = vpop.permute.xlu0 %1068
        %1072 = vset.pattern.permute.xlu0 0
        %1073 = vperm.xlu0 %1072, %v963
        %v1074 = vpop.permute.xlu0 %1073
        %1077 = vset.pattern.permute.xlu0 0
        %1078 = vperm.xlu0 %1077, %v964
        %v1079 = vpop.permute.xlu0 %1078
        %1082 = vset.pattern.permute.xlu0 0
        %1083 = vperm.xlu0 %1082, %v965
        %v1084 = vpop.permute.xlu0 %1083
        %1087 = vset.pattern.permute.xlu0 0
        %1088 = vperm.xlu0 %1087, %v966
        %v1089 = vpop.permute.xlu0 %1088
        %1092 = vset.pattern.permute.xlu0 0
        %1093 = vperm.xlu0 %1092, %v967
        %v1094 = vpop.permute.xlu0 %1093
        %1097 = vset.pattern.permute.xlu0 0
        %1098 = vperm.xlu0 %1097, %v968
        %v1099 = vpop.permute.xlu0 %1098
        %1102 = vset.pattern.permute.xlu0 0
        %1103 = vperm.xlu0 %1102, %v969
        %v1104 = vpop.permute.xlu0 %1103
        %1107 = vset.pattern.permute.xlu0 0
        %1108 = vperm.xlu0 %1107, %v970
        %v1109 = vpop.permute.xlu0 %1108
        %1112 = vset.pattern.permute.xlu0 0
        %1113 = vperm.xlu0 %1112, %v971
        %v1114 = vpop.permute.xlu0 %1113
        %v1116 = vsub.f32 %v1039, %v972
        %v1117 = vsub.f32 %v1039, %v973
        %v1118 = vsub.f32 %v1039, %v974
        %v1119 = vsub.f32 %v1039, %v975
        %v1120 = vsub.f32 %v1044, %v976
        %v1121 = vsub.f32 %v1044, %v977
        %v1122 = vsub.f32 %v1044, %v978
        %v1123 = vsub.f32 %v1044, %v979
        %v1124 = vsub.f32 %v1049, %v980
        %v1125 = vsub.f32 %v1049, %v981
        %v1126 = vsub.f32 %v1049, %v982
        %v1127 = vsub.f32 %v1049, %v983
        %v1128 = vsub.f32 %v1054, %v984
        %v1129 = vsub.f32 %v1054, %v985
        %v1130 = vsub.f32 %v1054, %v986
        %v1131 = vsub.f32 %v1054, %v987
        %v1132 = vsub.f32 %v1059, %v988
        %v1133 = vsub.f32 %v1059, %v989
        %v1134 = vsub.f32 %v1059, %v990
        %v1135 = vsub.f32 %v1059, %v991
        %v1136 = vsub.f32 %v1064, %v992
        %v1137 = vsub.f32 %v1064, %v993
        %v1138 = vsub.f32 %v1064, %v994
        %v1139 = vsub.f32 %v1064, %v995
        %v1140 = vsub.f32 %v1069, %v996
        %v1141 = vsub.f32 %v1069, %v997
        %v1142 = vsub.f32 %v1069, %v998
        %v1143 = vsub.f32 %v1069, %v999
        %v1144 = vsub.f32 %v1074, %v1000
        %v1145 = vsub.f32 %v1074, %v1001
        %v1146 = vsub.f32 %v1074, %v1002
        %v1147 = vsub.f32 %v1074, %v1003
        %v1148 = vsub.f32 %v1079, %v1004
        %v1149 = vsub.f32 %v1079, %v1005
        %v1150 = vsub.f32 %v1079, %v1006
        %v1151 = vsub.f32 %v1079, %v1007
        %v1152 = vsub.f32 %v1084, %v1008
        %v1153 = vsub.f32 %v1084, %v1009
        %v1154 = vsub.f32 %v1084, %v1010
        %v1155 = vsub.f32 %v1084, %v1011
        %v1156 = vsub.f32 %v1089, %v1012
        %v1157 = vsub.f32 %v1089, %v1013
        %v1158 = vsub.f32 %v1089, %v1014
        %v1159 = vsub.f32 %v1089, %v1015
        %v1160 = vsub.f32 %v1094, %v1016
        %v1161 = vsub.f32 %v1094, %v1017
        %v1162 = vsub.f32 %v1094, %v1018
        %v1163 = vsub.f32 %v1094, %v1019
        %v1164 = vsub.f32 %v1099, %v1020
        %v1165 = vsub.f32 %v1099, %v1021
        %v1166 = vsub.f32 %v1099, %v1022
        %v1167 = vsub.f32 %v1099, %v1023
        %v1168 = vsub.f32 %v1104, %v1024
        %v1169 = vsub.f32 %v1104, %v1025
        %v1170 = vsub.f32 %v1104, %v1026
        %v1171 = vsub.f32 %v1104, %v1027
        %v1172 = vsub.f32 %v1109, %v1028
        %v1173 = vsub.f32 %v1109, %v1029
        %v1174 = vsub.f32 %v1109, %v1030
        %v1175 = vsub.f32 %v1109, %v1031
        %v1176 = vsub.f32 %v1114, %v1032
        %v1177 = vsub.f32 %v1114, %v1033
        %v1178 = vsub.f32 %v1114, %v1034
        %v1179 = vsub.f32 %v1114, %v1035
        %v1180 = vlaneseq
        %v1181 = vshrl.u32 %v1180, 7
        %v1182 = vadd.s32 %v1181, 8
        %v1183 = vadd.s32 %v1181, 16
        %v1184 = vadd.s32 %v1181, 24
        %v1185 = vcvt.s32.f32 %v1181
        %v1186 = vcvt.s32.f32 %v1182
        %v1187 = vcvt.s32.f32 %v1183
        %v1188 = vcvt.s32.f32 %v1184
        %v1189 = vmin.f32 %v1116, %v1120
        %v1190 = vmin.f32 %v1189, %v1124
        %v1191 = vmin.f32 %v1190, %v1128
        %v1192 = vrot.slane %v1191, 4
        %v1193 = vmin.f32 %v1191, %v1192
        %v1194 = vrot.slane %v1193, 2
        %v1195 = vmin.f32 %v1193, %v1194
        %v1196 = vrot.slane %v1195, 1
        %v1197 = vmin.f32 %v1195, %v1196
        %v1198 = vmin.f32 %v1117, %v1121
        %v1199 = vmin.f32 %v1198, %v1125
        %v1200 = vmin.f32 %v1199, %v1129
        %v1201 = vrot.slane %v1200, 4
        %v1202 = vmin.f32 %v1200, %v1201
        %v1203 = vrot.slane %v1202, 2
        %v1204 = vmin.f32 %v1202, %v1203
        %v1205 = vrot.slane %v1204, 1
        %v1206 = vmin.f32 %v1204, %v1205
        %v1207 = vmin.f32 %v1118, %v1122
        %v1208 = vmin.f32 %v1207, %v1126
        %v1209 = vmin.f32 %v1208, %v1130
        %v1210 = vrot.slane %v1209, 4
        %v1211 = vmin.f32 %v1209, %v1210
        %v1212 = vrot.slane %v1211, 2
        %v1213 = vmin.f32 %v1211, %v1212
        %v1214 = vrot.slane %v1213, 1
        %v1215 = vmin.f32 %v1213, %v1214
        %v1216 = vmin.f32 %v1119, %v1123
        %v1217 = vmin.f32 %v1216, %v1127
        %v1218 = vmin.f32 %v1217, %v1131
        %v1219 = vrot.slane %v1218, 4
        %v1220 = vmin.f32 %v1218, %v1219
        %v1221 = vrot.slane %v1220, 2
        %v1222 = vmin.f32 %v1220, %v1221
        %v1223 = vrot.slane %v1222, 1
        %v1224 = vmin.f32 %v1222, %v1223
        %vm1225 = vcmp.eq.f32.partialorder %v1116, %v1197
        %vm1226 = vcmp.eq.f32.partialorder %v1117, %v1206
        %vm1227 = vcmp.eq.f32.partialorder %v1118, %v1215
        %vm1228 = vcmp.eq.f32.partialorder %v1119, %v1224
        %vm1229 = vcmp.eq.f32.partialorder %v1120, %v1197
        %vm1230 = vcmp.eq.f32.partialorder %v1121, %v1206
        %vm1231 = vcmp.eq.f32.partialorder %v1122, %v1215
        %vm1232 = vcmp.eq.f32.partialorder %v1123, %v1224
        %vm1233 = vcmp.eq.f32.partialorder %v1124, %v1197
        %vm1234 = vcmp.eq.f32.partialorder %v1125, %v1206
        %vm1235 = vcmp.eq.f32.partialorder %v1126, %v1215
        %vm1236 = vcmp.eq.f32.partialorder %v1127, %v1224
        %vm1237 = vcmp.eq.f32.partialorder %v1128, %v1197
        %vm1238 = vcmp.eq.f32.partialorder %v1129, %v1206
        %vm1239 = vcmp.eq.f32.partialorder %v1130, %v1215
        %vm1240 = vcmp.eq.f32.partialorder %v1131, %v1224
        %v1241 = vsel %vm1225, %v1185, 32.0
        %v1242 = vsel %vm1226, %v1185, 32.0
        %v1243 = vsel %vm1227, %v1185, 32.0
        %v1244 = vsel %vm1228, %v1185, 32.0
        %v1245 = vsel %vm1229, %v1186, 32.0
        %v1246 = vsel %vm1230, %v1186, 32.0
        %v1247 = vsel %vm1231, %v1186, 32.0
        %v1248 = vsel %vm1232, %v1186, 32.0
        %v1249 = vsel %vm1233, %v1187, 32.0
        %v1250 = vsel %vm1234, %v1187, 32.0
        %v1251 = vsel %vm1235, %v1187, 32.0
        %v1252 = vsel %vm1236, %v1187, 32.0
        %v1253 = vsel %vm1237, %v1188, 32.0
        %v1254 = vsel %vm1238, %v1188, 32.0
        %v1255 = vsel %vm1239, %v1188, 32.0
        %v1256 = vsel %vm1240, %v1188, 32.0
        %v1257 = vmin.f32 %v1241, %v1245
        %v1258 = vmin.f32 %v1257, %v1249
        %v1259 = vmin.f32 %v1258, %v1253
        %v1260 = vrot.slane %v1259, 4
        %v1261 = vmin.f32 %v1259, %v1260
        %v1262 = vrot.slane %v1261, 2
        %v1263 = vmin.f32 %v1261, %v1262
        %v1264 = vrot.slane %v1263, 1
        %v1265 = vmin.f32 %v1263, %v1264
        %v1266 = vmin.f32 %v1242, %v1246
        %v1267 = vmin.f32 %v1266, %v1250
        %v1268 = vmin.f32 %v1267, %v1254
        %v1269 = vrot.slane %v1268, 4
        %v1270 = vmin.f32 %v1268, %v1269
        %v1271 = vrot.slane %v1270, 2
        %v1272 = vmin.f32 %v1270, %v1271
        %v1273 = vrot.slane %v1272, 1
        %v1274 = vmin.f32 %v1272, %v1273
        %v1275 = vmin.f32 %v1243, %v1247
        %v1276 = vmin.f32 %v1275, %v1251
        %v1277 = vmin.f32 %v1276, %v1255
        %v1278 = vrot.slane %v1277, 4
        %v1279 = vmin.f32 %v1277, %v1278
        %v1280 = vrot.slane %v1279, 2
        %v1281 = vmin.f32 %v1279, %v1280
        %v1282 = vrot.slane %v1281, 1
        %v1283 = vmin.f32 %v1281, %v1282
        %v1284 = vmin.f32 %v1244, %v1248
        %v1285 = vmin.f32 %v1284, %v1252
        %v1286 = vmin.f32 %v1285, %v1256
        %v1287 = vrot.slane %v1286, 4
        %v1288 = vmin.f32 %v1286, %v1287
        %v1289 = vrot.slane %v1288, 2
        %v1290 = vmin.f32 %v1288, %v1289
        %v1291 = vrot.slane %v1290, 1
        %v1292 = vmin.f32 %v1290, %v1291
        %vm1293 = vcmp.eq.f32.partialorder %v1185, %v1265
        %vm1294 = vcmp.eq.f32.partialorder %v1185, %v1274
        %vm1295 = vcmp.eq.f32.partialorder %v1185, %v1283
        %vm1296 = vcmp.eq.f32.partialorder %v1185, %v1292
        %vm1297 = vcmp.eq.f32.partialorder %v1186, %v1265
        %vm1298 = vcmp.eq.f32.partialorder %v1186, %v1274
        %vm1299 = vcmp.eq.f32.partialorder %v1186, %v1283
        %vm1300 = vcmp.eq.f32.partialorder %v1186, %v1292
        %vm1301 = vcmp.eq.f32.partialorder %v1187, %v1265
        %vm1302 = vcmp.eq.f32.partialorder %v1187, %v1274
        %vm1303 = vcmp.eq.f32.partialorder %v1187, %v1283
        %vm1304 = vcmp.eq.f32.partialorder %v1187, %v1292
        %vm1305 = vcmp.eq.f32.partialorder %v1188, %v1265
        %vm1306 = vcmp.eq.f32.partialorder %v1188, %v1274
        %vm1307 = vcmp.eq.f32.partialorder %v1188, %v1283
        %vm1308 = vcmp.eq.f32.partialorder %v1188, %v1292
        %v1309 = vsel %vm1293, 1, 0
        %v1310 = vsel %vm1294, 1, 0
        %v1311 = vsel %vm1295, 1, 0
        %v1312 = vsel %vm1296, 1, 0
        %v1313 = vsel %vm1297, 1, 0
        %v1314 = vsel %vm1298, 1, 0
        %v1315 = vsel %vm1299, 1, 0
        %v1316 = vsel %vm1300, 1, 0
        %v1317 = vsel %vm1301, 1, 0
        %v1318 = vsel %vm1302, 1, 0
        %v1319 = vsel %vm1303, 1, 0
        %v1320 = vsel %vm1304, 1, 0
        %v1321 = vsel %vm1305, 1, 0
        %v1322 = vsel %vm1306, 1, 0
        %v1323 = vsel %vm1307, 1, 0
        %v1324 = vsel %vm1308, 1, 0
        %v1325 = vcvt.s32.f32 %v1309
        %v1326 = vcvt.s32.f32 %v1310
        %v1327 = vcvt.s32.f32 %v1311
        %v1328 = vcvt.s32.f32 %v1312
        %v1329 = vcvt.s32.f32 %v1313
        %v1330 = vcvt.s32.f32 %v1314
        %v1331 = vcvt.s32.f32 %v1315
        %v1332 = vcvt.s32.f32 %v1316
        %v1333 = vcvt.s32.f32 %v1317
        %v1334 = vcvt.s32.f32 %v1318
        %v1335 = vcvt.s32.f32 %v1319
        %v1336 = vcvt.s32.f32 %v1320
        %v1337 = vcvt.s32.f32 %v1321
        %v1338 = vcvt.s32.f32 %v1322
        %v1339 = vcvt.s32.f32 %v1323
        %v1340 = vcvt.s32.f32 %v1324
        %1341 = vst [vmem:[#allocation2] sm:$0xff] %v1325
        %1342 = vst [vmem:[#allocation2 + $0x8] sm:$0xff] %v1326
        %1343 = vst [vmem:[#allocation2 + $0x10] sm:$0xff] %v1327
        %1344 = vst [vmem:[#allocation2 + $0x18] sm:$0xff] %v1328
        %1345 = vst [vmem:[#allocation2 + $0x20] sm:$0xff] %v1329
        %1346 = vst [vmem:[#allocation2 + $0x28] sm:$0xff] %v1330
        %1347 = vst [vmem:[#allocation2 + $0x30] sm:$0xff] %v1331
        %1348 = vst [vmem:[#allocation2 + $0x38] sm:$0xff] %v1332
        %1349 = vst [vmem:[#allocation2 + $0x40] sm:$0xff] %v1333
        %1350 = vst [vmem:[#allocation2 + $0x48] sm:$0xff] %v1334
        %1351 = vst [vmem:[#allocation2 + $0x50] sm:$0xff] %v1335
        %1352 = vst [vmem:[#allocation2 + $0x58] sm:$0xff] %v1336
        %1353 = vst [vmem:[#allocation2 + $0x60] sm:$0xff] %v1337
        %1354 = vst [vmem:[#allocation2 + $0x68] sm:$0xff] %v1338
        %1355 = vst [vmem:[#allocation2 + $0x70] sm:$0xff] %v1339
        %1356 = vst [vmem:[#allocation2 + $0x78] sm:$0xff] %v1340
        %v1357 = vadd.f32 %v1325, %v1326
        %v1358 = vadd.f32 %v1357, %v1327
        %v1359 = vadd.f32 %v1358, %v1328
        %1360 = vadd.xlane.f32.xlu0 %v1359
        %v1361 = vpop.xlane.xlu0 %1360
        %v1362 = vadd.f32 %v1329, %v1330
        %v1363 = vadd.f32 %v1362, %v1331
        %v1364 = vadd.f32 %v1363, %v1332
        %1365 = vadd.xlane.f32.xlu0 %v1364
        %v1366 = vpop.xlane.xlu0 %1365
        %v1367 = vadd.f32 %v1333, %v1334
        %v1368 = vadd.f32 %v1367, %v1335
        %v1369 = vadd.f32 %v1368, %v1336
        %1370 = vadd.xlane.f32.xlu0 %v1369
        %v1371 = vpop.xlane.xlu0 %1370
        %v1372 = vadd.f32 %v1337, %v1338
        %v1373 = vadd.f32 %v1372, %v1339
        %v1374 = vadd.f32 %v1373, %v1340
        %1375 = vadd.xlane.f32.xlu0 %v1374
        %v1376 = vpop.xlane.xlu0 %1375
        %vm1377 = vcmask 7168
        %1378 = vst.msk [vmem:[%s449] sm:$0xff] %vm1377, %v1361
        %1379 = vst.msk [vmem:[%s449 + $0x8] sm:$0xff] %vm1377, %v1366
        %1380 = vst.msk [vmem:[%s449 + $0x10] sm:$0xff] %vm1377, %v1371
        %1381 = vst.msk [vmem:[%s449 + $0x18] sm:$0xff] %vm1377, %v1376
        %vm1382 = vcmp.eq.s32.totalorder %v1181, 0
        %v1383 = vcvt.f32.s32.to.zero.pseudo %v1265
        %v1384 = vcvt.f32.s32.to.zero.pseudo %v1274
        %v1385 = vcvt.f32.s32.to.zero.pseudo %v1283
        %v1386 = vcvt.f32.s32.to.zero.pseudo %v1292
        %v1387 = vsel %vm1382, %v1383, 0
        %v1388 = vsel %vm1382, %v1384, 0
        %v1389 = vsel %vm1382, %v1385, 0
        %v1390 = vsel %vm1382, %v1386, 0
        %v1391 = vmin.f32 %v1132, %v1136
        %v1392 = vmin.f32 %v1391, %v1140
        %v1393 = vmin.f32 %v1392, %v1144
        %v1394 = vrot.slane %v1393, 4
        %v1395 = vmin.f32 %v1393, %v1394
        %v1396 = vrot.slane %v1395, 2
        %v1397 = vmin.f32 %v1395, %v1396
        %v1398 = vrot.slane %v1397, 1
        %v1399 = vmin.f32 %v1397, %v1398
        %v1400 = vmin.f32 %v1133, %v1137
        %v1401 = vmin.f32 %v1400, %v1141
        %v1402 = vmin.f32 %v1401, %v1145
        %v1403 = vrot.slane %v1402, 4
        %v1404 = vmin.f32 %v1402, %v1403
        %v1405 = vrot.slane %v1404, 2
        %v1406 = vmin.f32 %v1404, %v1405
        %v1407 = vrot.slane %v1406, 1
        %v1408 = vmin.f32 %v1406, %v1407
        %v1409 = vmin.f32 %v1134, %v1138
        %v1410 = vmin.f32 %v1409, %v1142
        %v1411 = vmin.f32 %v1410, %v1146
        %v1412 = vrot.slane %v1411, 4
        %v1413 = vmin.f32 %v1411, %v1412
        %v1414 = vrot.slane %v1413, 2
        %v1415 = vmin.f32 %v1413, %v1414
        %v1416 = vrot.slane %v1415, 1
        %v1417 = vmin.f32 %v1415, %v1416
        %v1418 = vmin.f32 %v1135, %v1139
        %v1419 = vmin.f32 %v1418, %v1143
        %v1420 = vmin.f32 %v1419, %v1147
        %v1421 = vrot.slane %v1420, 4
        %v1422 = vmin.f32 %v1420, %v1421
        %v1423 = vrot.slane %v1422, 2
        %v1424 = vmin.f32 %v1422, %v1423
        %v1425 = vrot.slane %v1424, 1
        %v1426 = vmin.f32 %v1424, %v1425
        %vm1427 = vcmp.eq.f32.partialorder %v1132, %v1399
        %vm1428 = vcmp.eq.f32.partialorder %v1133, %v1408
        %vm1429 = vcmp.eq.f32.partialorder %v1134, %v1417
        %vm1430 = vcmp.eq.f32.partialorder %v1135, %v1426
        %vm1431 = vcmp.eq.f32.partialorder %v1136, %v1399
        %vm1432 = vcmp.eq.f32.partialorder %v1137, %v1408
        %vm1433 = vcmp.eq.f32.partialorder %v1138, %v1417
        %vm1434 = vcmp.eq.f32.partialorder %v1139, %v1426
        %vm1435 = vcmp.eq.f32.partialorder %v1140, %v1399
        %vm1436 = vcmp.eq.f32.partialorder %v1141, %v1408
        %vm1437 = vcmp.eq.f32.partialorder %v1142, %v1417
        %vm1438 = vcmp.eq.f32.partialorder %v1143, %v1426
        %vm1439 = vcmp.eq.f32.partialorder %v1144, %v1399
        %vm1440 = vcmp.eq.f32.partialorder %v1145, %v1408
        %vm1441 = vcmp.eq.f32.partialorder %v1146, %v1417
        %vm1442 = vcmp.eq.f32.partialorder %v1147, %v1426
        %v1443 = vsel %vm1427, %v1185, 32.0
        %v1444 = vsel %vm1428, %v1185, 32.0
        %v1445 = vsel %vm1429, %v1185, 32.0
        %v1446 = vsel %vm1430, %v1185, 32.0
        %v1447 = vsel %vm1431, %v1186, 32.0
        %v1448 = vsel %vm1432, %v1186, 32.0
        %v1449 = vsel %vm1433, %v1186, 32.0
        %v1450 = vsel %vm1434, %v1186, 32.0
        %v1451 = vsel %vm1435, %v1187, 32.0
        %v1452 = vsel %vm1436, %v1187, 32.0
        %v1453 = vsel %vm1437, %v1187, 32.0
        %v1454 = vsel %vm1438, %v1187, 32.0
        %v1455 = vsel %vm1439, %v1188, 32.0
        %v1456 = vsel %vm1440, %v1188, 32.0
        %v1457 = vsel %vm1441, %v1188, 32.0
        %v1458 = vsel %vm1442, %v1188, 32.0
        %v1459 = vmin.f32 %v1443, %v1447
        %v1460 = vmin.f32 %v1459, %v1451
        %v1461 = vmin.f32 %v1460, %v1455
        %v1462 = vrot.slane %v1461, 4
        %v1463 = vmin.f32 %v1461, %v1462
        %v1464 = vrot.slane %v1463, 2
        %v1465 = vmin.f32 %v1463, %v1464
        %v1466 = vrot.slane %v1465, 1
        %v1467 = vmin.f32 %v1465, %v1466
        %v1468 = vmin.f32 %v1444, %v1448
        %v1469 = vmin.f32 %v1468, %v1452
        %v1470 = vmin.f32 %v1469, %v1456
        %v1471 = vrot.slane %v1470, 4
        %v1472 = vmin.f32 %v1470, %v1471
        %v1473 = vrot.slane %v1472, 2
        %v1474 = vmin.f32 %v1472, %v1473
        %v1475 = vrot.slane %v1474, 1
        %v1476 = vmin.f32 %v1474, %v1475
        %v1477 = vmin.f32 %v1445, %v1449
        %v1478 = vmin.f32 %v1477, %v1453
        %v1479 = vmin.f32 %v1478, %v1457
        %v1480 = vrot.slane %v1479, 4
        %v1481 = vmin.f32 %v1479, %v1480
        %v1482 = vrot.slane %v1481, 2
        %v1483 = vmin.f32 %v1481, %v1482
        %v1484 = vrot.slane %v1483, 1
        %v1485 = vmin.f32 %v1483, %v1484
        %v1486 = vmin.f32 %v1446, %v1450
        %v1487 = vmin.f32 %v1486, %v1454
        %v1488 = vmin.f32 %v1487, %v1458
        %v1489 = vrot.slane %v1488, 4
        %v1490 = vmin.f32 %v1488, %v1489
        %v1491 = vrot.slane %v1490, 2
        %v1492 = vmin.f32 %v1490, %v1491
        %v1493 = vrot.slane %v1492, 1
        %v1494 = vmin.f32 %v1492, %v1493
        %vm1495 = vcmp.eq.f32.partialorder %v1185, %v1467
        %vm1496 = vcmp.eq.f32.partialorder %v1185, %v1476
        %vm1497 = vcmp.eq.f32.partialorder %v1185, %v1485
        %vm1498 = vcmp.eq.f32.partialorder %v1185, %v1494
        %vm1499 = vcmp.eq.f32.partialorder %v1186, %v1467
        %vm1500 = vcmp.eq.f32.partialorder %v1186, %v1476
        %vm1501 = vcmp.eq.f32.partialorder %v1186, %v1485
        %vm1502 = vcmp.eq.f32.partialorder %v1186, %v1494
        %vm1503 = vcmp.eq.f32.partialorder %v1187, %v1467
        %vm1504 = vcmp.eq.f32.partialorder %v1187, %v1476
        %vm1505 = vcmp.eq.f32.partialorder %v1187, %v1485
        %vm1506 = vcmp.eq.f32.partialorder %v1187, %v1494
        %vm1507 = vcmp.eq.f32.partialorder %v1188, %v1467
        %vm1508 = vcmp.eq.f32.partialorder %v1188, %v1476
        %vm1509 = vcmp.eq.f32.partialorder %v1188, %v1485
        %vm1510 = vcmp.eq.f32.partialorder %v1188, %v1494
        %v1511 = vsel %vm1495, 1, 0
        %v1512 = vsel %vm1496, 1, 0
        %v1513 = vsel %vm1497, 1, 0
        %v1514 = vsel %vm1498, 1, 0
        %v1515 = vsel %vm1499, 1, 0
        %v1516 = vsel %vm1500, 1, 0
        %v1517 = vsel %vm1501, 1, 0
        %v1518 = vsel %vm1502, 1, 0
        %v1519 = vsel %vm1503, 1, 0
        %v1520 = vsel %vm1504, 1, 0
        %v1521 = vsel %vm1505, 1, 0
        %v1522 = vsel %vm1506, 1, 0
        %v1523 = vsel %vm1507, 1, 0
        %v1524 = vsel %vm1508, 1, 0
        %v1525 = vsel %vm1509, 1, 0
        %v1526 = vsel %vm1510, 1, 0
        %v1527 = vcvt.s32.f32 %v1511
        %v1528 = vcvt.s32.f32 %v1512
        %v1529 = vcvt.s32.f32 %v1513
        %v1530 = vcvt.s32.f32 %v1514
        %v1531 = vcvt.s32.f32 %v1515
        %v1532 = vcvt.s32.f32 %v1516
        %v1533 = vcvt.s32.f32 %v1517
        %v1534 = vcvt.s32.f32 %v1518
        %v1535 = vcvt.s32.f32 %v1519
        %v1536 = vcvt.s32.f32 %v1520
        %v1537 = vcvt.s32.f32 %v1521
        %v1538 = vcvt.s32.f32 %v1522
        %v1539 = vcvt.s32.f32 %v1523
        %v1540 = vcvt.s32.f32 %v1524
        %v1541 = vcvt.s32.f32 %v1525
        %v1542 = vcvt.s32.f32 %v1526
        %1543 = vst [vmem:[#allocation2 + $0x80] sm:$0xff] %v1527
        %1544 = vst [vmem:[#allocation2 + $0x88] sm:$0xff] %v1528
        %1545 = vst [vmem:[#allocation2 + $0x90] sm:$0xff] %v1529
        %1546 = vst [vmem:[#allocation2 + $0x98] sm:$0xff] %v1530
        %1547 = vst [vmem:[#allocation2 + $0xa0] sm:$0xff] %v1531
        %1548 = vst [vmem:[#allocation2 + $0xa8] sm:$0xff] %v1532
        %1549 = vst [vmem:[#allocation2 + $0xb0] sm:$0xff] %v1533
        %1550 = vst [vmem:[#allocation2 + $0xb8] sm:$0xff] %v1534
        %1551 = vst [vmem:[#allocation2 + $0xc0] sm:$0xff] %v1535
        %1552 = vst [vmem:[#allocation2 + $0xc8] sm:$0xff] %v1536
        %1553 = vst [vmem:[#allocation2 + $0xd0] sm:$0xff] %v1537
        %1554 = vst [vmem:[#allocation2 + $0xd8] sm:$0xff] %v1538
        %1555 = vst [vmem:[#allocation2 + $0xe0] sm:$0xff] %v1539
        %1556 = vst [vmem:[#allocation2 + $0xe8] sm:$0xff] %v1540
        %1557 = vst [vmem:[#allocation2 + $0xf0] sm:$0xff] %v1541
        %1558 = vst [vmem:[#allocation2 + $0xf8] sm:$0xff] %v1542
        %v1559 = vadd.f32 %v1527, %v1528
        %v1560 = vadd.f32 %v1559, %v1529
        %v1561 = vadd.f32 %v1560, %v1530
        %1562 = vadd.xlane.f32.xlu0 %v1561
        %v1563 = vpop.xlane.xlu0 %1562
        %v1564 = vadd.f32 %v1531, %v1532
        %v1565 = vadd.f32 %v1564, %v1533
        %v1566 = vadd.f32 %v1565, %v1534
        %1567 = vadd.xlane.f32.xlu0 %v1566
        %v1568 = vpop.xlane.xlu0 %1567
        %v1569 = vadd.f32 %v1535, %v1536
        %v1570 = vadd.f32 %v1569, %v1537
        %v1571 = vadd.f32 %v1570, %v1538
        %1572 = vadd.xlane.f32.xlu0 %v1571
        %v1573 = vpop.xlane.xlu0 %1572
        %v1574 = vadd.f32 %v1539, %v1540
        %v1575 = vadd.f32 %v1574, %v1541
        %v1576 = vadd.f32 %v1575, %v1542
        %1577 = vadd.xlane.f32.xlu0 %v1576
        %v1578 = vpop.xlane.xlu0 %1577
        %1579 = vst.msk [vmem:[%s449 + $0x20] sm:$0xff] %vm1377, %v1563
        %1580 = vst.msk [vmem:[%s449 + $0x28] sm:$0xff] %vm1377, %v1568
        %1581 = vst.msk [vmem:[%s449 + $0x30] sm:$0xff] %vm1377, %v1573
        %1582 = vst.msk [vmem:[%s449 + $0x38] sm:$0xff] %vm1377, %v1578
        %vm1583 = vcmp.eq.s32.totalorder %v1181, 1
        %v1584 = vcvt.f32.s32.to.zero.pseudo %v1467
        %v1585 = vcvt.f32.s32.to.zero.pseudo %v1476
        %v1586 = vcvt.f32.s32.to.zero.pseudo %v1485
        %v1587 = vcvt.f32.s32.to.zero.pseudo %v1494
        %v1588 = vsel %vm1583, %v1584, %v1387
        %v1589 = vsel %vm1583, %v1585, %v1388
        %v1590 = vsel %vm1583, %v1586, %v1389
        %v1591 = vsel %vm1583, %v1587, %v1390
        %v1592 = vmin.f32 %v1148, %v1152
        %v1593 = vmin.f32 %v1592, %v1156
        %v1594 = vmin.f32 %v1593, %v1160
        %v1595 = vrot.slane %v1594, 4
        %v1596 = vmin.f32 %v1594, %v1595
        %v1597 = vrot.slane %v1596, 2
        %v1598 = vmin.f32 %v1596, %v1597
        %v1599 = vrot.slane %v1598, 1
        %v1600 = vmin.f32 %v1598, %v1599
        %v1601 = vmin.f32 %v1149, %v1153
        %v1602 = vmin.f32 %v1601, %v1157
        %v1603 = vmin.f32 %v1602, %v1161
        %v1604 = vrot.slane %v1603, 4
        %v1605 = vmin.f32 %v1603, %v1604
        %v1606 = vrot.slane %v1605, 2
        %v1607 = vmin.f32 %v1605, %v1606
        %v1608 = vrot.slane %v1607, 1
        %v1609 = vmin.f32 %v1607, %v1608
        %v1610 = vmin.f32 %v1150, %v1154
        %v1611 = vmin.f32 %v1610, %v1158
        %v1612 = vmin.f32 %v1611, %v1162
        %v1613 = vrot.slane %v1612, 4
        %v1614 = vmin.f32 %v1612, %v1613
        %v1615 = vrot.slane %v1614, 2
        %v1616 = vmin.f32 %v1614, %v1615
        %v1617 = vrot.slane %v1616, 1
        %v1618 = vmin.f32 %v1616, %v1617
        %v1619 = vmin.f32 %v1151, %v1155
        %v1620 = vmin.f32 %v1619, %v1159
        %v1621 = vmin.f32 %v1620, %v1163
        %v1622 = vrot.slane %v1621, 4
        %v1623 = vmin.f32 %v1621, %v1622
        %v1624 = vrot.slane %v1623, 2
        %v1625 = vmin.f32 %v1623, %v1624
        %v1626 = vrot.slane %v1625, 1
        %v1627 = vmin.f32 %v1625, %v1626
        %vm1628 = vcmp.eq.f32.partialorder %v1148, %v1600
        %vm1629 = vcmp.eq.f32.partialorder %v1149, %v1609
        %vm1630 = vcmp.eq.f32.partialorder %v1150, %v1618
        %vm1631 = vcmp.eq.f32.partialorder %v1151, %v1627
        %vm1632 = vcmp.eq.f32.partialorder %v1152, %v1600
        %vm1633 = vcmp.eq.f32.partialorder %v1153, %v1609
        %vm1634 = vcmp.eq.f32.partialorder %v1154, %v1618
        %vm1635 = vcmp.eq.f32.partialorder %v1155, %v1627
        %vm1636 = vcmp.eq.f32.partialorder %v1156, %v1600
        %vm1637 = vcmp.eq.f32.partialorder %v1157, %v1609
        %vm1638 = vcmp.eq.f32.partialorder %v1158, %v1618
        %vm1639 = vcmp.eq.f32.partialorder %v1159, %v1627
        %vm1640 = vcmp.eq.f32.partialorder %v1160, %v1600
        %vm1641 = vcmp.eq.f32.partialorder %v1161, %v1609
        %vm1642 = vcmp.eq.f32.partialorder %v1162, %v1618
        %vm1643 = vcmp.eq.f32.partialorder %v1163, %v1627
        %v1644 = vsel %vm1628, %v1185, 32.0
        %v1645 = vsel %vm1629, %v1185, 32.0
        %v1646 = vsel %vm1630, %v1185, 32.0
        %v1647 = vsel %vm1631, %v1185, 32.0
        %v1648 = vsel %vm1632, %v1186, 32.0
        %v1649 = vsel %vm1633, %v1186, 32.0
        %v1650 = vsel %vm1634, %v1186, 32.0
        %v1651 = vsel %vm1635, %v1186, 32.0
        %v1652 = vsel %vm1636, %v1187, 32.0
        %v1653 = vsel %vm1637, %v1187, 32.0
        %v1654 = vsel %vm1638, %v1187, 32.0
        %v1655 = vsel %vm1639, %v1187, 32.0
        %v1656 = vsel %vm1640, %v1188, 32.0
        %v1657 = vsel %vm1641, %v1188, 32.0
        %v1658 = vsel %vm1642, %v1188, 32.0
        %v1659 = vsel %vm1643, %v1188, 32.0
        %v1660 = vmin.f32 %v1644, %v1648
        %v1661 = vmin.f32 %v1660, %v1652
        %v1662 = vmin.f32 %v1661, %v1656
        %v1663 = vrot.slane %v1662, 4
        %v1664 = vmin.f32 %v1662, %v1663
        %v1665 = vrot.slane %v1664, 2
        %v1666 = vmin.f32 %v1664, %v1665
        %v1667 = vrot.slane %v1666, 1
        %v1668 = vmin.f32 %v1666, %v1667
        %v1669 = vmin.f32 %v1645, %v1649
        %v1670 = vmin.f32 %v1669, %v1653
        %v1671 = vmin.f32 %v1670, %v1657
        %v1672 = vrot.slane %v1671, 4
        %v1673 = vmin.f32 %v1671, %v1672
        %v1674 = vrot.slane %v1673, 2
        %v1675 = vmin.f32 %v1673, %v1674
        %v1676 = vrot.slane %v1675, 1
        %v1677 = vmin.f32 %v1675, %v1676
        %v1678 = vmin.f32 %v1646, %v1650
        %v1679 = vmin.f32 %v1678, %v1654
        %v1680 = vmin.f32 %v1679, %v1658
        %v1681 = vrot.slane %v1680, 4
        %v1682 = vmin.f32 %v1680, %v1681
        %v1683 = vrot.slane %v1682, 2
        %v1684 = vmin.f32 %v1682, %v1683
        %v1685 = vrot.slane %v1684, 1
        %v1686 = vmin.f32 %v1684, %v1685
        %v1687 = vmin.f32 %v1647, %v1651
        %v1688 = vmin.f32 %v1687, %v1655
        %v1689 = vmin.f32 %v1688, %v1659
        %v1690 = vrot.slane %v1689, 4
        %v1691 = vmin.f32 %v1689, %v1690
        %v1692 = vrot.slane %v1691, 2
        %v1693 = vmin.f32 %v1691, %v1692
        %v1694 = vrot.slane %v1693, 1
        %v1695 = vmin.f32 %v1693, %v1694
        %vm1696 = vcmp.eq.f32.partialorder %v1185, %v1668
        %vm1697 = vcmp.eq.f32.partialorder %v1185, %v1677
        %vm1698 = vcmp.eq.f32.partialorder %v1185, %v1686
        %vm1699 = vcmp.eq.f32.partialorder %v1185, %v1695
        %vm1700 = vcmp.eq.f32.partialorder %v1186, %v1668
        %vm1701 = vcmp.eq.f32.partialorder %v1186, %v1677
        %vm1702 = vcmp.eq.f32.partialorder %v1186, %v1686
        %vm1703 = vcmp.eq.f32.partialorder %v1186, %v1695
        %vm1704 = vcmp.eq.f32.partialorder %v1187, %v1668
        %vm1705 = vcmp.eq.f32.partialorder %v1187, %v1677
        %vm1706 = vcmp.eq.f32.partialorder %v1187, %v1686
        %vm1707 = vcmp.eq.f32.partialorder %v1187, %v1695
        %vm1708 = vcmp.eq.f32.partialorder %v1188, %v1668
        %vm1709 = vcmp.eq.f32.partialorder %v1188, %v1677
        %vm1710 = vcmp.eq.f32.partialorder %v1188, %v1686
        %vm1711 = vcmp.eq.f32.partialorder %v1188, %v1695
        %v1712 = vsel %vm1696, 1, 0
        %v1713 = vsel %vm1697, 1, 0
        %v1714 = vsel %vm1698, 1, 0
        %v1715 = vsel %vm1699, 1, 0
        %v1716 = vsel %vm1700, 1, 0
        %v1717 = vsel %vm1701, 1, 0
        %v1718 = vsel %vm1702, 1, 0
        %v1719 = vsel %vm1703, 1, 0
        %v1720 = vsel %vm1704, 1, 0
        %v1721 = vsel %vm1705, 1, 0
        %v1722 = vsel %vm1706, 1, 0
        %v1723 = vsel %vm1707, 1, 0
        %v1724 = vsel %vm1708, 1, 0
        %v1725 = vsel %vm1709, 1, 0
        %v1726 = vsel %vm1710, 1, 0
        %v1727 = vsel %vm1711, 1, 0
        %v1728 = vcvt.s32.f32 %v1712
        %v1729 = vcvt.s32.f32 %v1713
        %v1730 = vcvt.s32.f32 %v1714
        %v1731 = vcvt.s32.f32 %v1715
        %v1732 = vcvt.s32.f32 %v1716
        %v1733 = vcvt.s32.f32 %v1717
        %v1734 = vcvt.s32.f32 %v1718
        %v1735 = vcvt.s32.f32 %v1719
        %v1736 = vcvt.s32.f32 %v1720
        %v1737 = vcvt.s32.f32 %v1721
        %v1738 = vcvt.s32.f32 %v1722
        %v1739 = vcvt.s32.f32 %v1723
        %v1740 = vcvt.s32.f32 %v1724
        %v1741 = vcvt.s32.f32 %v1725
        %v1742 = vcvt.s32.f32 %v1726
        %v1743 = vcvt.s32.f32 %v1727
        %1744 = vst [vmem:[#allocation2 + $0x100] sm:$0xff] %v1728
        %1745 = vst [vmem:[#allocation2 + $0x108] sm:$0xff] %v1729
        %1746 = vst [vmem:[#allocation2 + $0x110] sm:$0xff] %v1730
        %1747 = vst [vmem:[#allocation2 + $0x118] sm:$0xff] %v1731
        %1748 = vst [vmem:[#allocation2 + $0x120] sm:$0xff] %v1732
        %1749 = vst [vmem:[#allocation2 + $0x128] sm:$0xff] %v1733
        %1750 = vst [vmem:[#allocation2 + $0x130] sm:$0xff] %v1734
        %1751 = vst [vmem:[#allocation2 + $0x138] sm:$0xff] %v1735
        %1752 = vst [vmem:[#allocation2 + $0x140] sm:$0xff] %v1736
        %1753 = vst [vmem:[#allocation2 + $0x148] sm:$0xff] %v1737
        %1754 = vst [vmem:[#allocation2 + $0x150] sm:$0xff] %v1738
        %1755 = vst [vmem:[#allocation2 + $0x158] sm:$0xff] %v1739
        %1756 = vst [vmem:[#allocation2 + $0x160] sm:$0xff] %v1740
        %1757 = vst [vmem:[#allocation2 + $0x168] sm:$0xff] %v1741
        %1758 = vst [vmem:[#allocation2 + $0x170] sm:$0xff] %v1742
        %1759 = vst [vmem:[#allocation2 + $0x178] sm:$0xff] %v1743
        %v1760 = vadd.f32 %v1728, %v1729
        %v1761 = vadd.f32 %v1760, %v1730
        %v1762 = vadd.f32 %v1761, %v1731
        %1763 = vadd.xlane.f32.xlu0 %v1762
        %v1764 = vpop.xlane.xlu0 %1763
        %v1765 = vadd.f32 %v1732, %v1733
        %v1766 = vadd.f32 %v1765, %v1734
        %v1767 = vadd.f32 %v1766, %v1735
        %1768 = vadd.xlane.f32.xlu0 %v1767
        %v1769 = vpop.xlane.xlu0 %1768
        %v1770 = vadd.f32 %v1736, %v1737
        %v1771 = vadd.f32 %v1770, %v1738
        %v1772 = vadd.f32 %v1771, %v1739
        %1773 = vadd.xlane.f32.xlu0 %v1772
        %v1774 = vpop.xlane.xlu0 %1773
        %v1775 = vadd.f32 %v1740, %v1741
        %v1776 = vadd.f32 %v1775, %v1742
        %v1777 = vadd.f32 %v1776, %v1743
        %1778 = vadd.xlane.f32.xlu0 %v1777
        %v1779 = vpop.xlane.xlu0 %1778
        %1780 = vst.msk [vmem:[%s449 + $0x40] sm:$0xff] %vm1377, %v1764
        %1781 = vst.msk [vmem:[%s449 + $0x48] sm:$0xff] %vm1377, %v1769
        %1782 = vst.msk [vmem:[%s449 + $0x50] sm:$0xff] %vm1377, %v1774
        %1783 = vst.msk [vmem:[%s449 + $0x58] sm:$0xff] %vm1377, %v1779
        %vm1784 = vcmp.eq.s32.totalorder %v1181, 2
        %v1785 = vcvt.f32.s32.to.zero.pseudo %v1668
        %v1786 = vcvt.f32.s32.to.zero.pseudo %v1677
        %v1787 = vcvt.f32.s32.to.zero.pseudo %v1686
        %v1788 = vcvt.f32.s32.to.zero.pseudo %v1695
        %v1789 = vsel %vm1784, %v1785, %v1588
        %v1790 = vsel %vm1784, %v1786, %v1589
        %v1791 = vsel %vm1784, %v1787, %v1590
        %v1792 = vsel %vm1784, %v1788, %v1591
        %v1793 = vmin.f32 %v1164, %v1168
        %v1794 = vmin.f32 %v1793, %v1172
        %v1795 = vmin.f32 %v1794, %v1176
        %v1796 = vrot.slane %v1795, 4
        %v1797 = vmin.f32 %v1795, %v1796
        %v1798 = vrot.slane %v1797, 2
        %v1799 = vmin.f32 %v1797, %v1798
        %v1800 = vrot.slane %v1799, 1
        %v1801 = vmin.f32 %v1799, %v1800
        %v1802 = vmin.f32 %v1165, %v1169
        %v1803 = vmin.f32 %v1802, %v1173
        %v1804 = vmin.f32 %v1803, %v1177
        %v1805 = vrot.slane %v1804, 4
        %v1806 = vmin.f32 %v1804, %v1805
        %v1807 = vrot.slane %v1806, 2
        %v1808 = vmin.f32 %v1806, %v1807
        %v1809 = vrot.slane %v1808, 1
        %v1810 = vmin.f32 %v1808, %v1809
        %v1811 = vmin.f32 %v1166, %v1170
        %v1812 = vmin.f32 %v1811, %v1174
        %v1813 = vmin.f32 %v1812, %v1178
        %v1814 = vrot.slane %v1813, 4
        %v1815 = vmin.f32 %v1813, %v1814
        %v1816 = vrot.slane %v1815, 2
        %v1817 = vmin.f32 %v1815, %v1816
        %v1818 = vrot.slane %v1817, 1
        %v1819 = vmin.f32 %v1817, %v1818
        %v1820 = vmin.f32 %v1167, %v1171
        %v1821 = vmin.f32 %v1820, %v1175
        %v1822 = vmin.f32 %v1821, %v1179
        %v1823 = vrot.slane %v1822, 4
        %v1824 = vmin.f32 %v1822, %v1823
        %v1825 = vrot.slane %v1824, 2
        %v1826 = vmin.f32 %v1824, %v1825
        %v1827 = vrot.slane %v1826, 1
        %v1828 = vmin.f32 %v1826, %v1827
        %vm1829 = vcmp.eq.f32.partialorder %v1164, %v1801
        %vm1830 = vcmp.eq.f32.partialorder %v1165, %v1810
        %vm1831 = vcmp.eq.f32.partialorder %v1166, %v1819
        %vm1832 = vcmp.eq.f32.partialorder %v1167, %v1828
        %vm1833 = vcmp.eq.f32.partialorder %v1168, %v1801
        %vm1834 = vcmp.eq.f32.partialorder %v1169, %v1810
        %vm1835 = vcmp.eq.f32.partialorder %v1170, %v1819
        %vm1836 = vcmp.eq.f32.partialorder %v1171, %v1828
        %vm1837 = vcmp.eq.f32.partialorder %v1172, %v1801
        %vm1838 = vcmp.eq.f32.partialorder %v1173, %v1810
        %vm1839 = vcmp.eq.f32.partialorder %v1174, %v1819
        %vm1840 = vcmp.eq.f32.partialorder %v1175, %v1828
        %vm1841 = vcmp.eq.f32.partialorder %v1176, %v1801
        %vm1842 = vcmp.eq.f32.partialorder %v1177, %v1810
        %vm1843 = vcmp.eq.f32.partialorder %v1178, %v1819
        %vm1844 = vcmp.eq.f32.partialorder %v1179, %v1828
        %v1845 = vsel %vm1829, %v1185, 32.0
        %v1846 = vsel %vm1830, %v1185, 32.0
        %v1847 = vsel %vm1831, %v1185, 32.0
        %v1848 = vsel %vm1832, %v1185, 32.0
        %v1849 = vsel %vm1833, %v1186, 32.0
        %v1850 = vsel %vm1834, %v1186, 32.0
        %v1851 = vsel %vm1835, %v1186, 32.0
        %v1852 = vsel %vm1836, %v1186, 32.0
        %v1853 = vsel %vm1837, %v1187, 32.0
        %v1854 = vsel %vm1838, %v1187, 32.0
        %v1855 = vsel %vm1839, %v1187, 32.0
        %v1856 = vsel %vm1840, %v1187, 32.0
        %v1857 = vsel %vm1841, %v1188, 32.0
        %v1858 = vsel %vm1842, %v1188, 32.0
        %v1859 = vsel %vm1843, %v1188, 32.0
        %v1860 = vsel %vm1844, %v1188, 32.0
        %v1861 = vmin.f32 %v1845, %v1849
        %v1862 = vmin.f32 %v1861, %v1853
        %v1863 = vmin.f32 %v1862, %v1857
        %v1864 = vrot.slane %v1863, 4
        %v1865 = vmin.f32 %v1863, %v1864
        %v1866 = vrot.slane %v1865, 2
        %v1867 = vmin.f32 %v1865, %v1866
        %v1868 = vrot.slane %v1867, 1
        %v1869 = vmin.f32 %v1867, %v1868
        %v1870 = vmin.f32 %v1846, %v1850
        %v1871 = vmin.f32 %v1870, %v1854
        %v1872 = vmin.f32 %v1871, %v1858
        %v1873 = vrot.slane %v1872, 4
        %v1874 = vmin.f32 %v1872, %v1873
        %v1875 = vrot.slane %v1874, 2
        %v1876 = vmin.f32 %v1874, %v1875
        %v1877 = vrot.slane %v1876, 1
        %v1878 = vmin.f32 %v1876, %v1877
        %v1879 = vmin.f32 %v1847, %v1851
        %v1880 = vmin.f32 %v1879, %v1855
        %v1881 = vmin.f32 %v1880, %v1859
        %v1882 = vrot.slane %v1881, 4
        %v1883 = vmin.f32 %v1881, %v1882
        %v1884 = vrot.slane %v1883, 2
        %v1885 = vmin.f32 %v1883, %v1884
        %v1886 = vrot.slane %v1885, 1
        %v1887 = vmin.f32 %v1885, %v1886
        %v1888 = vmin.f32 %v1848, %v1852
        %v1889 = vmin.f32 %v1888, %v1856
        %v1890 = vmin.f32 %v1889, %v1860
        %v1891 = vrot.slane %v1890, 4
        %v1892 = vmin.f32 %v1890, %v1891
        %v1893 = vrot.slane %v1892, 2
        %v1894 = vmin.f32 %v1892, %v1893
        %v1895 = vrot.slane %v1894, 1
        %v1896 = vmin.f32 %v1894, %v1895
        %vm1897 = vcmp.eq.f32.partialorder %v1185, %v1869
        %vm1898 = vcmp.eq.f32.partialorder %v1185, %v1878
        %vm1899 = vcmp.eq.f32.partialorder %v1185, %v1887
        %vm1900 = vcmp.eq.f32.partialorder %v1185, %v1896
        %vm1901 = vcmp.eq.f32.partialorder %v1186, %v1869
        %vm1902 = vcmp.eq.f32.partialorder %v1186, %v1878
        %vm1903 = vcmp.eq.f32.partialorder %v1186, %v1887
        %vm1904 = vcmp.eq.f32.partialorder %v1186, %v1896
        %vm1905 = vcmp.eq.f32.partialorder %v1187, %v1869
        %vm1906 = vcmp.eq.f32.partialorder %v1187, %v1878
        %vm1907 = vcmp.eq.f32.partialorder %v1187, %v1887
        %vm1908 = vcmp.eq.f32.partialorder %v1187, %v1896
        %vm1909 = vcmp.eq.f32.partialorder %v1188, %v1869
        %vm1910 = vcmp.eq.f32.partialorder %v1188, %v1878
        %vm1911 = vcmp.eq.f32.partialorder %v1188, %v1887
        %vm1912 = vcmp.eq.f32.partialorder %v1188, %v1896
        %v1913 = vsel %vm1897, 1, 0
        %v1914 = vsel %vm1898, 1, 0
        %v1915 = vsel %vm1899, 1, 0
        %v1916 = vsel %vm1900, 1, 0
        %v1917 = vsel %vm1901, 1, 0
        %v1918 = vsel %vm1902, 1, 0
        %v1919 = vsel %vm1903, 1, 0
        %v1920 = vsel %vm1904, 1, 0
        %v1921 = vsel %vm1905, 1, 0
        %v1922 = vsel %vm1906, 1, 0
        %v1923 = vsel %vm1907, 1, 0
        %v1924 = vsel %vm1908, 1, 0
        %v1925 = vsel %vm1909, 1, 0
        %v1926 = vsel %vm1910, 1, 0
        %v1927 = vsel %vm1911, 1, 0
        %v1928 = vsel %vm1912, 1, 0
        %v1929 = vcvt.s32.f32 %v1913
        %v1930 = vcvt.s32.f32 %v1914
        %v1931 = vcvt.s32.f32 %v1915
        %v1932 = vcvt.s32.f32 %v1916
        %v1933 = vcvt.s32.f32 %v1917
        %v1934 = vcvt.s32.f32 %v1918
        %v1935 = vcvt.s32.f32 %v1919
        %v1936 = vcvt.s32.f32 %v1920
        %v1937 = vcvt.s32.f32 %v1921
        %v1938 = vcvt.s32.f32 %v1922
        %v1939 = vcvt.s32.f32 %v1923
        %v1940 = vcvt.s32.f32 %v1924
        %v1941 = vcvt.s32.f32 %v1925
        %v1942 = vcvt.s32.f32 %v1926
        %v1943 = vcvt.s32.f32 %v1927
        %v1944 = vcvt.s32.f32 %v1928
        %1945 = vst [vmem:[#allocation2 + $0x180] sm:$0xff] %v1929
        %1946 = vst [vmem:[#allocation2 + $0x188] sm:$0xff] %v1930
        %1947 = vst [vmem:[#allocation2 + $0x190] sm:$0xff] %v1931
        %1948 = vst [vmem:[#allocation2 + $0x198] sm:$0xff] %v1932
        %1949 = vst [vmem:[#allocation2 + $0x1a0] sm:$0xff] %v1933
        %1950 = vst [vmem:[#allocation2 + $0x1a8] sm:$0xff] %v1934
        %1951 = vst [vmem:[#allocation2 + $0x1b0] sm:$0xff] %v1935
        %1952 = vst [vmem:[#allocation2 + $0x1b8] sm:$0xff] %v1936
        %1953 = vst [vmem:[#allocation2 + $0x1c0] sm:$0xff] %v1937
        %1954 = vst [vmem:[#allocation2 + $0x1c8] sm:$0xff] %v1938
        %1955 = vst [vmem:[#allocation2 + $0x1d0] sm:$0xff] %v1939
        %1956 = vst [vmem:[#allocation2 + $0x1d8] sm:$0xff] %v1940
        %1957 = vst [vmem:[#allocation2 + $0x1e0] sm:$0xff] %v1941
        %1958 = vst [vmem:[#allocation2 + $0x1e8] sm:$0xff] %v1942
        %1959 = vst [vmem:[#allocation2 + $0x1f0] sm:$0xff] %v1943
        %1960 = vst [vmem:[#allocation2 + $0x1f8] sm:$0xff] %v1944
        %v1961 = vadd.f32 %v1929, %v1930
        %v1962 = vadd.f32 %v1961, %v1931
        %v1963 = vadd.f32 %v1962, %v1932
        %1964 = vadd.xlane.f32.xlu0 %v1963
        %v1965 = vpop.xlane.xlu0 %1964
        %v1966 = vadd.f32 %v1933, %v1934
        %v1967 = vadd.f32 %v1966, %v1935
        %v1968 = vadd.f32 %v1967, %v1936
        %1969 = vadd.xlane.f32.xlu0 %v1968
        %v1970 = vpop.xlane.xlu0 %1969
        %v1971 = vadd.f32 %v1937, %v1938
        %v1972 = vadd.f32 %v1971, %v1939
        %v1973 = vadd.f32 %v1972, %v1940
        %1974 = vadd.xlane.f32.xlu0 %v1973
        %v1975 = vpop.xlane.xlu0 %1974
        %v1976 = vadd.f32 %v1941, %v1942
        %v1977 = vadd.f32 %v1976, %v1943
        %v1978 = vadd.f32 %v1977, %v1944
        %1979 = vadd.xlane.f32.xlu0 %v1978
        %v1980 = vpop.xlane.xlu0 %1979
        %1981 = vst.msk [vmem:[%s449 + $0x60] sm:$0xff] %vm1377, %v1965
        %1982 = vst.msk [vmem:[%s449 + $0x68] sm:$0xff] %vm1377, %v1970
        %1983 = vst.msk [vmem:[%s449 + $0x70] sm:$0xff] %vm1377, %v1975
        %1984 = vst.msk [vmem:[%s449 + $0x78] sm:$0xff] %vm1377, %v1980
        %vm1985 = vcmp.eq.s32.totalorder %v1181, 3
        %v1986 = vcvt.f32.s32.to.zero.pseudo %v1869
        %v1987 = vcvt.f32.s32.to.zero.pseudo %v1878
        %v1988 = vcvt.f32.s32.to.zero.pseudo %v1887
        %v1989 = vcvt.f32.s32.to.zero.pseudo %v1896
        %v1990 = vsel %vm1985, %v1986, %v1789
        %v1991 = vsel %vm1985, %v1987, %v1790
        %v1992 = vsel %vm1985, %v1988, %v1791
        %v1993 = vsel %vm1985, %v1989, %v1792
        %v1994 = vld [vmem:[%s5] sm:$0xff]
        %v1995 = vld [vmem:[%s5 + $0x8] sm:$0xff]
        %v1996 = vld [vmem:[%s5 + $0x10] sm:$0xff]
        %v1997 = vld [vmem:[%s5 + $0x18] sm:$0xff]
        %v1998 = vld [vmem:[#allocation2] sm:$0xff]
        %v1999 = vld [vmem:[#allocation2 + $0x8] sm:$0xff]
        %v2000 = vld [vmem:[#allocation2 + $0x10] sm:$0xff]
        %v2001 = vld [vmem:[#allocation2 + $0x18] sm:$0xff]
        %v2002 = vld [vmem:[#allocation2 + $0x20] sm:$0xff]
        %v2003 = vld [vmem:[#allocation2 + $0x28] sm:$0xff]
        %v2004 = vld [vmem:[#allocation2 + $0x30] sm:$0xff]
        %v2005 = vld [vmem:[#allocation2 + $0x38] sm:$0xff]
        %v2006 = vld [vmem:[#allocation2 + $0x40] sm:$0xff]
        %v2007 = vld [vmem:[#allocation2 + $0x48] sm:$0xff]
        %v2008 = vld [vmem:[#allocation2 + $0x50] sm:$0xff]
        %v2009 = vld [vmem:[#allocation2 + $0x58] sm:$0xff]
        %v2010 = vld [vmem:[#allocation2 + $0x60] sm:$0xff]
        %v2011 = vld [vmem:[#allocation2 + $0x68] sm:$0xff]
        %v2012 = vld [vmem:[#allocation2 + $0x70] sm:$0xff]
        %v2013 = vld [vmem:[#allocation2 + $0x78] sm:$0xff]
        %v2014 = vld [vmem:[#allocation2 + $0x80] sm:$0xff]
        %v2015 = vld [vmem:[#allocation2 + $0x88] sm:$0xff]
        %v2016 = vld [vmem:[#allocation2 + $0x90] sm:$0xff]
        %v2017 = vld [vmem:[#allocation2 + $0x98] sm:$0xff]
        %v2018 = vld [vmem:[#allocation2 + $0xa0] sm:$0xff]
        %v2019 = vld [vmem:[#allocation2 + $0xa8] sm:$0xff]
        %v2020 = vld [vmem:[#allocation2 + $0xb0] sm:$0xff]
        %v2021 = vld [vmem:[#allocation2 + $0xb8] sm:$0xff]
        %v2022 = vld [vmem:[#allocation2 + $0xc0] sm:$0xff]
        %v2023 = vld [vmem:[#allocation2 + $0xc8] sm:$0xff]
        %v2024 = vld [vmem:[#allocation2 + $0xd0] sm:$0xff]
        %v2025 = vld [vmem:[#allocation2 + $0xd8] sm:$0xff]
        %v2026 = vld [vmem:[#allocation2 + $0xe0] sm:$0xff]
        %v2027 = vld [vmem:[#allocation2 + $0xe8] sm:$0xff]
        %v2028 = vld [vmem:[#allocation2 + $0xf0] sm:$0xff]
        %v2029 = vld [vmem:[#allocation2 + $0xf8] sm:$0xff]
        %v2030 = vld [vmem:[#allocation2 + $0x100] sm:$0xff]
        %v2031 = vld [vmem:[#allocation2 + $0x108] sm:$0xff]
        %v2032 = vld [vmem:[#allocation2 + $0x110] sm:$0xff]
        %v2033 = vld [vmem:[#allocation2 + $0x118] sm:$0xff]
        %v2034 = vld [vmem:[#allocation2 + $0x120] sm:$0xff]
        %v2035 = vld [vmem:[#allocation2 + $0x128] sm:$0xff]
        %v2036 = vld [vmem:[#allocation2 + $0x130] sm:$0xff]
        %v2037 = vld [vmem:[#allocation2 + $0x138] sm:$0xff]
        %v2038 = vld [vmem:[#allocation2 + $0x140] sm:$0xff]
        %v2039 = vld [vmem:[#allocation2 + $0x148] sm:$0xff]
        %v2040 = vld [vmem:[#allocation2 + $0x150] sm:$0xff]
        %v2041 = vld [vmem:[#allocation2 + $0x158] sm:$0xff]
        %v2042 = vld [vmem:[#allocation2 + $0x160] sm:$0xff]
        %v2043 = vld [vmem:[#allocation2 + $0x168] sm:$0xff]
        %v2044 = vld [vmem:[#allocation2 + $0x170] sm:$0xff]
        %v2045 = vld [vmem:[#allocation2 + $0x178] sm:$0xff]
        %v2046 = vld [vmem:[#allocation2 + $0x180] sm:$0xff]
        %v2047 = vld [vmem:[#allocation2 + $0x188] sm:$0xff]
        %v2048 = vld [vmem:[#allocation2 + $0x190] sm:$0xff]
        %v2049 = vld [vmem:[#allocation2 + $0x198] sm:$0xff]
        %v2050 = vld [vmem:[#allocation2 + $0x1a0] sm:$0xff]
        %v2051 = vld [vmem:[#allocation2 + $0x1a8] sm:$0xff]
        %v2052 = vld [vmem:[#allocation2 + $0x1b0] sm:$0xff]
        %v2053 = vld [vmem:[#allocation2 + $0x1b8] sm:$0xff]
        %v2054 = vld [vmem:[#allocation2 + $0x1c0] sm:$0xff]
        %v2055 = vld [vmem:[#allocation2 + $0x1c8] sm:$0xff]
        %v2056 = vld [vmem:[#allocation2 + $0x1d0] sm:$0xff]
        %v2057 = vld [vmem:[#allocation2 + $0x1d8] sm:$0xff]
        %v2058 = vld [vmem:[#allocation2 + $0x1e0] sm:$0xff]
        %v2059 = vld [vmem:[#allocation2 + $0x1e8] sm:$0xff]
        %v2060 = vld [vmem:[#allocation2 + $0x1f0] sm:$0xff]
        %v2061 = vld [vmem:[#allocation2 + $0x1f8] sm:$0xff]
        %2062 = vmatpush.msra.mxu0 %v2058
        %2063 = vmatpush.msra.mxu0 %v2054
        %2064 = vmatpush.msra.mxu0 %v2050
        %2065 = vmatpush.msra.mxu0 %v2046
        %2066 = vmatpush.msra.mxu0 %v2042
        %2067 = vmatpush.msra.mxu0 %v2038
        %2068 = vmatpush.msra.mxu0 %v2034
        %2069 = vmatpush.msra.mxu0 %v2030
        %2070 = vmatpush.msra.mxu0 %v2026
        %2071 = vmatpush.msra.mxu0 %v2022
        %2072 = vmatpush.msra.mxu0 %v2018
        %2073 = vmatpush.msra.mxu0 %v2014
        %2074 = vmatpush.msra.mxu0 %v2010
        %2075 = vmatpush.msra.mxu0 %v2006
        %2076 = vmatpush.msra.mxu0 %v2002
        %2077 = vmatpush.msra.mxu0 %v1998
        %2078 = vmatmul.f32.gmra.mxu0 %v1994
        %v2079 = vpop.f32.mrf.mxu0
        %v2080 = vadd.f32 0.0, %v2079
        %2081 = vmatmul.f32.gmra.mxu0 %v1995
        %v2082 = vpop.f32.mrf.mxu0
        %v2083 = vadd.f32 0.0, %v2082
        %2084 = vmatmul.f32.gmra.mxu0 %v1996
        %v2085 = vpop.f32.mrf.mxu0
        %v2086 = vadd.f32 0.0, %v2085
        %2087 = vmatmul.f32.gmra.mxu0 %v1997
        %v2088 = vpop.f32.mrf.mxu0
        %v2089 = vadd.f32 0.0, %v2088
        %2090 = vdwg.mxu0
        %2091 = vmatpush.msra.mxu0 %v2059
        %2092 = vmatpush.msra.mxu0 %v2055
        %2093 = vmatpush.msra.mxu0 %v2051
        %2094 = vmatpush.msra.mxu0 %v2047
        %2095 = vmatpush.msra.mxu0 %v2043
        %2096 = vmatpush.msra.mxu0 %v2039
        %2097 = vmatpush.msra.mxu0 %v2035
        %2098 = vmatpush.msra.mxu0 %v2031
        %2099 = vmatpush.msra.mxu0 %v2027
        %2100 = vmatpush.msra.mxu0 %v2023
        %2101 = vmatpush.msra.mxu0 %v2019
        %2102 = vmatpush.msra.mxu0 %v2015
        %2103 = vmatpush.msra.mxu0 %v2011
        %2104 = vmatpush.msra.mxu0 %v2007
        %2105 = vmatpush.msra.mxu0 %v2003
        %2106 = vmatpush.msra.mxu0 %v1999
        %2107 = vmatmul.f32.gmra.mxu0 %v1994
        %v2108 = vpop.f32.mrf.mxu0
        %v2109 = vadd.f32 0.0, %v2108
        %2110 = vmatmul.f32.gmra.mxu0 %v1995
        %v2111 = vpop.f32.mrf.mxu0
        %v2112 = vadd.f32 0.0, %v2111
        %2113 = vmatmul.f32.gmra.mxu0 %v1996
        %v2114 = vpop.f32.mrf.mxu0
        %v2115 = vadd.f32 0.0, %v2114
        %2116 = vmatmul.f32.gmra.mxu0 %v1997
        %v2117 = vpop.f32.mrf.mxu0
        %v2118 = vadd.f32 0.0, %v2117
        %2119 = vdwg.mxu0
        %2120 = vmatpush.msra.mxu0 %v2060
        %2121 = vmatpush.msra.mxu0 %v2056
        %2122 = vmatpush.msra.mxu0 %v2052
        %2123 = vmatpush.msra.mxu0 %v2048
        %2124 = vmatpush.msra.mxu0 %v2044
        %2125 = vmatpush.msra.mxu0 %v2040
        %2126 = vmatpush.msra.mxu0 %v2036
        %2127 = vmatpush.msra.mxu0 %v2032
        %2128 = vmatpush.msra.mxu0 %v2028
        %2129 = vmatpush.msra.mxu0 %v2024
        %2130 = vmatpush.msra.mxu0 %v2020
        %2131 = vmatpush.msra.mxu0 %v2016
        %2132 = vmatpush.msra.mxu0 %v2012
        %2133 = vmatpush.msra.mxu0 %v2008
        %2134 = vmatpush.msra.mxu0 %v2004
        %2135 = vmatpush.msra.mxu0 %v2000
        %2136 = vmatmul.f32.gmra.mxu0 %v1994
        %v2137 = vpop.f32.mrf.mxu0
        %v2138 = vadd.f32 0.0, %v2137
        %2139 = vmatmul.f32.gmra.mxu0 %v1995
        %v2140 = vpop.f32.mrf.mxu0
        %v2141 = vadd.f32 0.0, %v2140
        %2142 = vmatmul.f32.gmra.mxu0 %v1996
        %v2143 = vpop.f32.mrf.mxu0
        %v2144 = vadd.f32 0.0, %v2143
        %2145 = vmatmul.f32.gmra.mxu0 %v1997
        %v2146 = vpop.f32.mrf.mxu0
        %v2147 = vadd.f32 0.0, %v2146
        %2148 = vdwg.mxu0
        %2149 = vmatpush.msra.mxu0 %v2061
        %2150 = vmatpush.msra.mxu0 %v2057
        %2151 = vmatpush.msra.mxu0 %v2053
        %2152 = vmatpush.msra.mxu0 %v2049
        %2153 = vmatpush.msra.mxu0 %v2045
        %2154 = vmatpush.msra.mxu0 %v2041
        %2155 = vmatpush.msra.mxu0 %v2037
        %2156 = vmatpush.msra.mxu0 %v2033
        %2157 = vmatpush.msra.mxu0 %v2029
        %2158 = vmatpush.msra.mxu0 %v2025
        %2159 = vmatpush.msra.mxu0 %v2021
        %2160 = vmatpush.msra.mxu0 %v2017
        %2161 = vmatpush.msra.mxu0 %v2013
        %2162 = vmatpush.msra.mxu0 %v2009
        %2163 = vmatpush.msra.mxu0 %v2005
        %2164 = vmatpush.msra.mxu0 %v2001
        %2165 = vmatmul.f32.gmra.mxu0 %v1994
        %v2166 = vpop.f32.mrf.mxu0
        %v2167 = vadd.f32 0.0, %v2166
        %2168 = vmatmul.f32.gmra.mxu0 %v1995
        %v2169 = vpop.f32.mrf.mxu0
        %v2170 = vadd.f32 0.0, %v2169
        %2171 = vmatmul.f32.gmra.mxu0 %v1996
        %v2172 = vpop.f32.mrf.mxu0
        %v2173 = vadd.f32 0.0, %v2172
        %2174 = vmatmul.f32.gmra.mxu0 %v1997
        %v2175 = vpop.f32.mrf.mxu0
        %v2176 = vadd.f32 0.0, %v2175
        %2177 = vdwg.mxu0
        %2178 = vst [vmem:[%s408] sm:$0xff] %v2080
        %2179 = vst [vmem:[%s408 + $0x8] sm:$0xff] %v2109
        %2180 = vst [vmem:[%s408 + $0x10] sm:$0xff] %v2138
        %2181 = vst [vmem:[%s408 + $0x18] sm:$0xff] %v2167
        %2182 = vst [vmem:[%s408 + $0x20] sm:$0xff] %v2083
        %2183 = vst [vmem:[%s408 + $0x28] sm:$0xff] %v2112
        %2184 = vst [vmem:[%s408 + $0x30] sm:$0xff] %v2141
        %2185 = vst [vmem:[%s408 + $0x38] sm:$0xff] %v2170
        %2186 = vst [vmem:[%s408 + $0x40] sm:$0xff] %v2086
        %2187 = vst [vmem:[%s408 + $0x48] sm:$0xff] %v2115
        %2188 = vst [vmem:[%s408 + $0x50] sm:$0xff] %v2144
        %2189 = vst [vmem:[%s408 + $0x58] sm:$0xff] %v2173
        %2190 = vst [vmem:[%s408 + $0x60] sm:$0xff] %v2089
        %2191 = vst [vmem:[%s408 + $0x68] sm:$0xff] %v2118
        %2192 = vst [vmem:[%s408 + $0x70] sm:$0xff] %v2147
        %2193 = vst [vmem:[%s408 + $0x78] sm:$0xff] %v2176
        %v2194 = vrot.slane %v1991, 4
        %v2195 = vrot.slane %v1993, 4
        %vm2196 = vcmask 1043456
        %v2197 = vsel %vm2196, %v1990, %v2194
        %v2198 = vsel %vm2196, %v1992, %v2195
        %2199 = vst [vmem:[%s415] sm:$0xff] %v2197
        %2200 = vst [vmem:[%s415 + $0x8] sm:$0xff] %v2198
        %v2201 = vsub.f32 %v2080, %v534
        %v2202 = vsub.f32 %v2109, %v563
        %v2203 = vsub.f32 %v2138, %v592
        %v2204 = vsub.f32 %v2167, %v621
        %v2205 = vsub.f32 %v2083, %v537
        %v2206 = vsub.f32 %v2112, %v566
        %v2207 = vsub.f32 %v2141, %v595
        %v2208 = vsub.f32 %v2170, %v624
        %v2209 = vsub.f32 %v2086, %v540
        %v2210 = vsub.f32 %v2115, %v569
        %v2211 = vsub.f32 %v2144, %v598
        %v2212 = vsub.f32 %v2173, %v627
        %v2213 = vsub.f32 %v2089, %v543
        %v2214 = vsub.f32 %v2118, %v572
        %v2215 = vsub.f32 %v2147, %v601
        %v2216 = vsub.f32 %v2176, %v630
        %v2217 = vmul.f32 %v2201, %v2201
        %v2218 = vmul.f32 %v2202, %v2202
        %v2219 = vmul.f32 %v2203, %v2203
        %v2220 = vmul.f32 %v2204, %v2204
        %v2221 = vmul.f32 %v2205, %v2205
        %v2222 = vmul.f32 %v2206, %v2206
        %v2223 = vmul.f32 %v2207, %v2207
        %v2224 = vmul.f32 %v2208, %v2208
        %v2225 = vmul.f32 %v2209, %v2209
        %v2226 = vmul.f32 %v2210, %v2210
        %v2227 = vmul.f32 %v2211, %v2211
        %v2228 = vmul.f32 %v2212, %v2212
        %v2229 = vmul.f32 %v2213, %v2213
        %v2230 = vmul.f32 %v2214, %v2214
        %v2231 = vmul.f32 %v2215, %v2215
        %v2232 = vmul.f32 %v2216, %v2216
        %v2233 = vadd.f32 %v2217, %v2218
        %v2234 = vadd.f32 %v2233, %v2219
        %v2235 = vadd.f32 %v2234, %v2220
        %2236 = vadd.xlane.f32.xlu0 %v2235
        %v2237 = vpop.xlane.xlu0 %2236
        %v2238 = vadd.f32 %v2221, %v2222
        %v2239 = vadd.f32 %v2238, %v2223
        %v2240 = vadd.f32 %v2239, %v2224
        %2241 = vadd.xlane.f32.xlu0 %v2240
        %v2242 = vpop.xlane.xlu0 %2241
        %v2243 = vadd.f32 %v2225, %v2226
        %v2244 = vadd.f32 %v2243, %v2227
        %v2245 = vadd.f32 %v2244, %v2228
        %2246 = vadd.xlane.f32.xlu0 %v2245
        %v2247 = vpop.xlane.xlu0 %2246
        %v2248 = vadd.f32 %v2229, %v2230
        %v2249 = vadd.f32 %v2248, %v2231
        %v2250 = vadd.f32 %v2249, %v2232
        %2251 = vadd.xlane.f32.xlu0 %v2250
        %v2252 = vpop.xlane.xlu0 %2251
        %2253 = vst.msk [vmem:[%s458] sm:$0xff] %vm1377, %v2237
        %2254 = vst.msk [vmem:[%s458 + $0x8] sm:$0xff] %vm1377, %v2242
        %2255 = vst.msk [vmem:[%s458 + $0x10] sm:$0xff] %vm1377, %v2247
        %2256 = vst.msk [vmem:[%s458 + $0x18] sm:$0xff] %vm1377, %v2252
        %s2257 = sand.u32 %s182, 1
        %s2258 = scalar_lea.sflag [#allocation5], %s2257
        %s2259 = sand.u32 %s182, 1
        %s2260 = smul.addr %s2259, 128
        %s2261 = scalar_lea.vmem [#allocation4], %s2260
        %s2262 = sand.u32 %s210, 1
        %s2263 = scalar_lea.sflag [#allocation7], %s2262
        %s2264 = sand.u32 %s210, 1
        %s2265 = smul.addr %s2264, 16
        %s2266 = scalar_lea.vmem [#allocation6], %s2265
        %p2267 = scmp.lt.s32.totalorder %s31, 1
        %s2268 = scalar_select %p2267, %s31, 1
        %p2269 = scmp.lt.s32.totalorder %s32, 1
        %s2270 = scalar_select %p2269, %s32, 1
        %s2271 = smul.addr %s2270, 16
        %s2272 = smul.addr %s2268, 32
        %s2273 = sadd.s32 %s2271, %s2272
        %s2274 = smul.addr %s2273, 8
        %s2275 = scalar_lea.vmem %s8, %s2274
        %p2276 = scmp.lt.s32.totalorder %s31, 1
        %s2277 = scalar_select %p2276, %s31, 1
        %p2278 = scmp.lt.s32.totalorder %s32, 1
        %s2279 = scalar_select %p2278, %s32, 1
        %s2280 = smul.addr %s2279, 4
        %s2281 = smul.addr %s2277, 8
        %s2282 = sadd.s32 %s2280, %s2281
        %s2283 = smul.addr %s2282, 8
        %s2284 = scalar_lea.vmem %s9, %s2283
        // Predicated region
        $region68: #{split_quant_forward.1} parent=62 // pred_check
          %p2285 = pneg %p192
        $region69: #{split_quant_forward.1} parent=62 // pred_check_branch
          %2287 = sbr.rel (%p2285) target = $region71
        $region70: #{split_quant_forward.1} parent=62 // pred_region
          %s2288 = smul.u32 4, %s32
          %2290 = vsyncadd %s2258, 0
          %s2291 = smul.addr %s31, 32
          %s2292 = sadd.s32 %s2288, %s2291
          %s2293 = smul.addr %s2292, 8
          %s2294 = scalar_lea.hbm %s6, %s2293
          %s2295 = sshll.u32 %s2261, 4
          %s2296 = int_to_ptr.vmem [resolvable:$true] %s2295
          %s2297 = sshll.u32 %s2294, 4
          %s2298 = int_to_ptr.hbm [resolvable:$true] %s2297
          %2303 = dma.vmem_to_hbm [thread:$0]  %s2296, 2048, %s2298, %s2258, 512, 1024, 32
        $region71: #{split_quant_forward.1} parent=62 // pred_fallthru
          _
        // Predicated region
        $region72: #{split_quant_forward.1} parent=62 // pred_check
          %p2304 = pneg %p220
        $region73: #{split_quant_forward.1} parent=62 // pred_check_branch
          %2306 = sbr.rel (%p2304) target = $region75
        $region74: #{split_quant_forward.1} parent=62 // pred_region
          %s2307 = smul.u32 4, %s32
          %2309 = vsyncadd %s2263, 0
          %s2310 = smul.addr %s31, 8
          %s2311 = sadd.s32 %s2307, %s2310
          %s2312 = smul.addr %s2311, 4
          %s2313 = scalar_lea.hbm %s7, %s2312
          %s2315 = sshll.u32 %s2266, 4
          %s2316 = int_to_ptr.vmem [resolvable:$true] %s2315
          %s2317 = sshll.u32 %s2313, 4
          %s2318 = int_to_ptr.hbm [resolvable:$true] %s2317
          %2320 = dma.vmem_to_hbm [thread:$0]  %s2316, 256, %s2318, %s2263
        $region75: #{split_quant_forward.1} parent=62 // pred_fallthru
          _
        // Predicated region
        $region76: #{split_quant_forward.1} parent=62 // pred_check
          %p2321 = pneg %p248
        $region77: #{split_quant_forward.1} parent=62 // pred_check_branch
          %2323 = sbr.rel (%p2321) target = $region79
        $region78: #{split_quant_forward.1} parent=62 // pred_region
          _
        $region79: #{split_quant_forward.1} parent=62 // pred_fallthru
          _
        // Predicated region
        $region80: #{split_quant_forward.1} parent=62 // pred_check
          %p2324 = pneg %p276
        $region81: #{split_quant_forward.1} parent=62 // pred_check_branch
          %2326 = sbr.rel (%p2324) target = $region83
        $region82: #{split_quant_forward.1} parent=62 // pred_region
          _
        $region83: #{split_quant_forward.1} parent=62 // pred_fallthru
          _
      $region63: #{split_quant_forward.1} parent=5 // pred_fallthru
        _
      %p2327 = scmp.le.s32.totalorder 2, %s22
      // Predicated region
      $region84: #{split_quant_forward.1} parent=5 // pred_check
        %p2328 = pneg %p2327
      $region85: #{split_quant_forward.1} parent=5 // pred_check_branch
        %2330 = sbr.rel (%p2328) target = $region87
      $region86: #{split_quant_forward.1} parent=5 // pred_region
        %s2331 = ssub.s32 %s22, 2
        // Predicated region
        $region88: #{split_quant_forward.1} parent=86 // pred_check
          %p2332 = pneg %p198
        $region89: #{split_quant_forward.1} parent=86 // pred_check_branch
          %2334 = sbr.rel (%p2332) target = $region91
        $region90: #{split_quant_forward.1} parent=86 // pred_region
          %s2335 = sand.u32 %s183, 1
          %s2336 = scalar_lea.sflag [#allocation5], %s2335
          %s2337 = sand.u32 %s183, 1
          %s2338 = smul.addr %s2337, 128
          %s2339 = scalar_lea.vmem [#allocation4], %s2338
          %2341 = dma.done %s2336, 2048
        $region91: #{split_quant_forward.1} parent=86 // pred_fallthru
          _
        // Predicated region
        $region92: #{split_quant_forward.1} parent=86 // pred_check
          %p2342 = pneg %p226
        $region93: #{split_quant_forward.1} parent=86 // pred_check_branch
          %2344 = sbr.rel (%p2342) target = $region95
        $region94: #{split_quant_forward.1} parent=86 // pred_region
          %s2345 = sand.u32 %s211, 1
          %s2346 = scalar_lea.sflag [#allocation7], %s2345
          %s2347 = sand.u32 %s211, 1
          %s2348 = smul.addr %s2347, 16
          %s2349 = scalar_lea.vmem [#allocation6], %s2348
          %2351 = dma.done %s2346, 256
        $region95: #{split_quant_forward.1} parent=86 // pred_fallthru
          _
        // Predicated region
        $region96: #{split_quant_forward.1} parent=86 // pred_check
          %p2352 = pneg %p254
        $region97: #{split_quant_forward.1} parent=86 // pred_check_branch
          %2354 = sbr.rel (%p2352) target = $region99
        $region98: #{split_quant_forward.1} parent=86 // pred_region
          %p2355 = scmp.lt.s32.totalorder %s33, 1
          %s2356 = scalar_select %p2355, %s33, 1
          %p2357 = scmp.lt.s32.totalorder %s34, 1
          %s2358 = scalar_select %p2357, %s34, 1
          %s2359 = smul.addr %s2358, 16
          %s2360 = smul.addr %s2356, 32
          %s2361 = sadd.s32 %s2359, %s2360
          %s2362 = smul.addr %s2361, 8
          %s2363 = scalar_lea.vmem %s8, %s2362
        $region99: #{split_quant_forward.1} parent=86 // pred_fallthru
          _
        // Predicated region
        $region100: #{split_quant_forward.1} parent=86 // pred_check
          %p2364 = pneg %p282
        $region101: #{split_quant_forward.1} parent=86 // pred_check_branch
          %2366 = sbr.rel (%p2364) target = $region103
        $region102: #{split_quant_forward.1} parent=86 // pred_region
          %p2367 = scmp.lt.s32.totalorder %s33, 1
          %s2368 = scalar_select %p2367, %s33, 1
          %p2369 = scmp.lt.s32.totalorder %s34, 1
          %s2370 = scalar_select %p2369, %s34, 1
          %s2371 = smul.addr %s2370, 4
          %s2372 = smul.addr %s2368, 8
          %s2373 = sadd.s32 %s2371, %s2372
          %s2374 = smul.addr %s2373, 8
          %s2375 = scalar_lea.vmem %s9, %s2374
        $region103: #{split_quant_forward.1} parent=86 // pred_fallthru
          _
      $region87: #{split_quant_forward.1} parent=5 // pred_fallthru
        _
    $region6: #{split_quant_forward.1} parent=1 // loop_footer
      %s26 = sadd.s32 1, %s22
    $region7: #{split_quant_forward.1} parent=1 // loop_footer_branch
      %21 = sbr.rel target = $region3
    $region8: #{split_quant_forward.1} parent=1 // loop_exit
      _
    %2376 = vsyncpa [#allocation5], 1
    %s2377 = scalar_lea.sflag [#allocation5], 1
    %2378 = vsyncpa %s2377, 1
    %2379 = vsyncpa [#allocation7], 1
    %s2380 = scalar_lea.sflag [#allocation7], 1
    %2381 = vsyncpa %s2380, 1

</llo_original>
